<compile_context>
chip_gen: v6e
topology: v6e:2x2x1
jax: 0.10.0
libtpu: 0.0.40
codegen_flags: <defaults>
</compile_context>

<pallas_src>
import numpy as np
import jax
import jax.numpy as jnp
from jax import lax
from jax.experimental import pallas as pl
from jax.experimental.pallas import tpu as pltpu

NEG = -1e30     # logit pad value for the 10 -> 128 class padding


# ------------------------------ fused kernel --------------------------------

def _make_kernel(tb):
    """tb = images per grid step (multiple of 8)."""

    def kernel(x_ref, c1_ref, c2_ref, wf1_ref, wf2_ref, bias_ref, o_ref):
        f32 = jnp.float32
        x = x_ref[...]                                     # (28*tb, 28), rows = h*tb + b

        # ---- conv1 (1->10, k5): 5 kh taps, even/odd merged into 256-lane dots
        y1 = jnp.dot(x[0:24 * tb, :], c1_ref[0], preferred_element_type=f32)
        for kh in range(1, 5):
            y1 = y1 + jnp.dot(x[kh * tb:(kh + 24) * tb, :], c1_ref[kh],
                              preferred_element_type=f32)  # (24*tb, 256)
        # fused 2x2 maxpool + bias + relu epilogue
        m1 = jnp.maximum(y1[:, :128], y1[:, 128:])         # width pool  (24*tb, 128)
        m1 = m1.reshape(12, 2 * tb, 128)
        m1 = jnp.maximum(m1[:, :tb, :], m1[:, tb:, :]).reshape(12 * tb, 128)  # height pool
        h1 = jnp.maximum(m1 + bias_ref[0:1, :], 0.0)       # (12*tb, 128), rows = ip*tb + b

        # ---- conv2 (10->20, k5); Dropout2d is identity in eval mode
        # TODO(synk): Dropout2d / Dropout are identity in eval mode; train-mode masking not implemented.
        y2 = jnp.dot(h1[0:8 * tb, :], c2_ref[0], preferred_element_type=f32)
        for kh in range(1, 5):
            y2 = y2 + jnp.dot(h1[kh * tb:(kh + 8) * tb, :], c2_ref[kh],
                              preferred_element_type=f32)  # (8*tb, 256)
        m2 = jnp.maximum(y2[:, :128], y2[:, 128:])
        m2 = m2.reshape(4, 2 * tb, 128)
        m2 = jnp.maximum(m2[:, :tb, :], m2[:, tb:, :]).reshape(4 * tb, 128)
        h2 = jnp.maximum(m2 + bias_ref[1:2, :], 0.0)       # (4*tb, 128), rows = oip*tb + b

        # ---- fc1 (320->50) + relu: single K=512 dot
        # lane-concat the 4 pooled-height row blocks -> (tb, 512);
        # the torch NCHW flatten is folded into wf1_ref's row layout.
        lhs = jnp.concatenate([h2[i * tb:(i + 1) * tb, :] for i in range(4)], axis=1)
        f1 = jnp.dot(lhs, wf1_ref[...], preferred_element_type=f32)
        f1 = jnp.maximum(f1 + bias_ref[2:3, :], 0.0)       # (tb, 128), lanes >= 50 are 0

        # ---- fc2 (50->10, padded to 128 lanes) + log_softmax
        z = jnp.dot(f1, wf2_ref[...], preferred_element_type=f32) + bias_ref[3:4, :]
        m = jnp.max(z, axis=-1, keepdims=True)
        lse = jnp.log(jnp.sum(jnp.exp(z - m), axis=-1, keepdims=True)) + m
        o_ref[...] = (z - lse).astype(o_ref.dtype)

    return kernel


# --------------------------- weight re-layout glue ---------------------------

def _conv1_band_merged(w1s):
    # w1s: (10, 5, 5) [oc, kh, kw] -> (5, 28, 256):
    #   cols   0..119 : even-width band  B[kh][w, jp*10+oc]
    #   cols 128..247 : odd-width  band
    def band(parity):
        w_pos = np.arange(28)[:, None]
        jp = np.arange(12)[None, :]
        kw = w_pos - (2 * jp + parity)
        valid = (kw >= 0) & (kw < 5)
        kw_c = np.clip(kw, 0, 4)
        g = w1s[:, :, kw_c]                               # (10, 5, 28, 12)
        g = jnp.where(valid[None, None, :, :], g, 0.0)
        return jnp.transpose(g, (1, 2, 3, 0)).reshape(5, 28, 120)
    out = jnp.zeros((5, 28, 256), jnp.float32)
    out = out.at[:, :, 0:120].set(band(0))
    out = out.at[:, :, 128:248].set(band(1))
    return out


def _conv2_band_merged(w2):
    # w2: (20, 10, 5, 5) [oc, ic, kh, kw] -> (5, 128, 256):
    #   rows 0..119 = jp*10+ic (rows >=120 zero);
    #   cols 0..79 even band (ojp*20+oc), cols 128..207 odd band.
    def band(parity):
        jp = np.arange(12)[:, None]
        ojp = np.arange(4)[None, :]
        kw = jp - (2 * ojp + parity)
        valid = (kw >= 0) & (kw < 5)
        kw_c = np.clip(kw, 0, 4)
        g = w2[:, :, :, kw_c]                             # (20, 10, 5, 12, 4)
        g = jnp.where(valid[None, None, None, :, :], g, 0.0)
        return jnp.transpose(g, (2, 3, 1, 4, 0)).reshape(5, 120, 80)
    out = jnp.zeros((5, 128, 256), jnp.float32)
    out = out.at[:, 0:120, 0:80].set(band(0))
    out = out.at[:, 0:120, 128:208].set(band(1))
    return out


def _fc1_weight_merged(wf1):
    # torch flatten index = oc*16 + oip*4 + ojp; kernel fc1 LHS K index is
    # oip*128 + (ojp*20 + oc)  (lanes 80..127 of each block are zero).
    w = jnp.transpose(wf1.reshape(50, 20, 4, 4), (2, 3, 1, 0)).reshape(4, 80, 50)
    out = jnp.zeros((4, 128, 128), jnp.float32).at[:, :80, :50].set(w)
    return out.reshape(512, 128)


def _const_spec(shape):
    nd = len(shape)
    return pl.BlockSpec(shape, lambda t, nd=nd: (0,) * nd)


def _pick_tb(n):
    # >= 2 grid steps when possible (keeps both v7x TensorCores busy), TB a
    # multiple of 8 (pool reshapes stay sublane-tile aligned), capped at 128.
    tb = max(1, (n + 1) // 2)
    tb = min(128, max(8, tb))
    return ((tb + 7) // 8) * 8


# --------------------------------- wrapper -----------------------------------

def torchplus_forward(x, params):
    """Forward pass of TorchPlusModel in eval mode (dropout = identity)."""
    w1, b1, w2, b2, wf1, bf1, wf2, bf2 = params
    N = x.shape[0]
    tb = _pick_tb(N)
    nt = (N + tb - 1) // tb
    npad = nt * tb

    xf = x.astype(jnp.float32)
    if npad != N:
        xf = jnp.pad(xf, ((0, npad - N), (0, 0), (0, 0), (0, 0)))
    # pack rows so that within tile t, row = h*tb + b  (b = image within tile)
    xk = xf[:, 0].reshape(nt, tb, 28, 28).transpose(0, 2, 1, 3)
    xk = xk.reshape(nt * 28 * tb, 28)

    c1m = _conv1_band_merged(w1[:, 0].astype(jnp.float32))
    c2m = _conv2_band_merged(w2.astype(jnp.float32))
    wf1m = _fc1_weight_merged(wf1.astype(jnp.float32))
    wf2m = jnp.zeros((128, 128), jnp.float32).at[:50, :10].set(wf2.T.astype(jnp.float32))

    biasm = jnp.zeros((4, 128), jnp.float32)
    biasm = biasm.at[0, :120].set(jnp.tile(b1.astype(jnp.float32), 12))   # conv1 bias
    biasm = biasm.at[1, :80].set(jnp.tile(b2.astype(jnp.float32), 4))     # conv2 bias
    biasm = biasm.at[2, :50].set(bf1.astype(jnp.float32))                 # fc1 bias
    biasm = biasm.at[3, :].set(NEG)
    biasm = biasm.at[3, :10].set(bf2.astype(jnp.float32))                 # fc2 bias (+pad)

    out = pl.pallas_call(
        _make_kernel(tb),
        out_shape=jax.ShapeDtypeStruct((npad, 128), jnp.float32),
        grid=(nt,),
        in_specs=[
            pl.BlockSpec((28 * tb, 28), lambda t: (t, 0)),   # input tile
            _const_spec((5, 28, 256)),                       # conv1 bands (even|odd)
            _const_spec((5, 128, 256)),                      # conv2 bands (even|odd)
            _const_spec((512, 128)),                         # fc1 weight (flatten folded)
            _const_spec((128, 128)),                         # fc2 weight (padded)
            _const_spec((4, 128)),                           # packed biases
        ],
        out_specs=pl.BlockSpec((tb, 128), lambda t: (t, 0)),
        compiler_params=pltpu.CompilerParams(
            dimension_semantics=("parallel",),
            vmem_limit_bytes=32 * 1024 * 1024,
        ),
    )(xk, c1m, c2m, wf1m, wf2m, biasm)

    return out[:N, :10]


# --------------------------- pure-JAX reference -----------------------------

def reference_forward(x, params):
    w1, b1, w2, b2, wf1, bf1, wf2, bf2 = params
    N = x.shape[0]
    y = lax.conv_general_dilated(x, w1, (1, 1), 'VALID',
                                 dimension_numbers=('NCHW', 'OIHW', 'NCHW'))
    y = y + b1.reshape(1, 10, 1, 1)
    y = y.reshape(N, 10, 12, 2, 12, 2).max(axis=(3, 5))
    y = jnp.maximum(y, 0.0)
    y2 = lax.conv_general_dilated(y, w2, (1, 1), 'VALID',
                                  dimension_numbers=('NCHW', 'OIHW', 'NCHW'))
    y2 = y2 + b2.reshape(1, 20, 1, 1)
    y2 = y2.reshape(N, 20, 4, 2, 4, 2).max(axis=(3, 5))
    y2 = jnp.maximum(y2, 0.0)
    flat = y2.reshape(N, 320)
    f1 = jnp.maximum(flat @ wf1.T + bf1, 0.0)
    z = f1 @ wf2.T + bf2
    return jax.nn.log_softmax(z, axis=1)


# --------------------------------- main --------------------------------------

def init_params(key):
    ks = jax.random.split(key, 8)
    w1 = 0.1 * jax.random.normal(ks[0], (10, 1, 5, 5), jnp.float32)
    b1 = 0.1 * jax.random.normal(ks[1], (10,), jnp.float32)
    w2 = 0.05 * jax.random.normal(ks[2], (20, 10, 5, 5), jnp.float32)
    b2 = 0.1 * jax.random.normal(ks[3], (20,), jnp.float32)
    wf1 = 0.05 * jax.random.normal(ks[4], (50, 320), jnp.float32)
    bf1 = 0.1 * jax.random.normal(ks[5], (50,), jnp.float32)
    wf2 = 0.1 * jax.random.normal(ks[6], (10, 50), jnp.float32)
    bf2 = 0.1 * jax.random.normal(ks[7], (10,), jnp.float32)
    return (w1, b1, w2, b2, wf1, bf1, wf2, bf2)


if __name__ == "__main__":
    key = jax.random.PRNGKey(0)
    kx, kp = jax.random.split(key)

    # batch=24 (TB=16, a 2-step "parallel" grid, plus 8 rows of batch padding);
    # spatial size is fixed at 28x28 by the fc1 = Linear(320, 50) contract.
    N = 24
    x = jax.random.normal(kx, (N, 1, 28, 28), jnp.float32)
    params = init_params(kp)

    out = jax.jit(torchplus_forward)(x, params)
    out = jax.block_until_ready(out)

    ref = jax.block_until_ready(reference_forward(x, params))
    assert out.shape == (N, 10) and out.dtype == jnp.float32
    assert jnp.allclose(out, ref, atol=1e-4, rtol=1e-4), \
        f"mismatch: max abs err {jnp.max(jnp.abs(out - ref))}"

    print("KERNEL_OK")
</pallas_src>

<mosaic_0001>
module attributes {stable_mosaic.version = 11 : i64} {
  func.func @kernel(%arg0: i32, %arg1: memref<448x28xf32, #tpu.memory_space<vmem>>, %arg2: memref<5x28x256xf32, #tpu.memory_space<vmem>>, %arg3: memref<5x128x256xf32, #tpu.memory_space<vmem>>, %arg4: memref<512x128xf32, #tpu.memory_space<vmem>>, %arg5: memref<128x128xf32, #tpu.memory_space<vmem>>, %arg6: memref<4x128xf32, #tpu.memory_space<vmem>>, %arg7: memref<16x128xf32, #tpu.memory_space<vmem>>) attributes {dimension_semantics = [#tpu.dimension_semantics<parallel>], iteration_bounds = array<i64: 2>, scalar_prefetch = 0 : i64, scratch_operands = 0 : i64, tpu.core_type = #tpu.core_type<tc>, window_params = [{transform_indices = @transform_0, window_bounds = array<i64: 448, 28>}, {pipeline_mode = #tpu.pipeline_mode<synchronous>, transform_indices = @transform_1, window_bounds = array<i64: 5, 28, 256>}, {pipeline_mode = #tpu.pipeline_mode<synchronous>, transform_indices = @transform_2, window_bounds = array<i64: 5, 128, 256>}, {pipeline_mode = #tpu.pipeline_mode<synchronous>, transform_indices = @transform_3, window_bounds = array<i64: 512, 128>}, {pipeline_mode = #tpu.pipeline_mode<synchronous>, transform_indices = @transform_4, window_bounds = array<i64: 128, 128>}, {pipeline_mode = #tpu.pipeline_mode<synchronous>, transform_indices = @transform_5, window_bounds = array<i64: 4, 128>}, {transform_indices = @transform_6, window_bounds = array<i64: 16, 128>}]} {
    %c0 = arith.constant 0 : index
    %c0_0 = arith.constant 0 : index
    %0 = vector.load %arg1[%c0, %c0_0] : memref<448x28xf32, #tpu.memory_space<vmem>>, vector<448x28xf32>
    %1 = vector.extract_strided_slice %0 {offsets = [0, 0], sizes = [384, 28], strides = [1, 1]} : vector<448x28xf32> to vector<384x28xf32>
    %c0_1 = arith.constant 0 : index
    %c0_2 = arith.constant 0 : index
    %c0_3 = arith.constant 0 : index
    %2 = vector.load %arg2[%c0_1, %c0_2, %c0_3] : memref<5x28x256xf32, #tpu.memory_space<vmem>>, vector<1x28x256xf32>
    %3 = vector.shape_cast %2 : vector<1x28x256xf32> to vector<28x256xf32>
    %cst = arith.constant dense<0.000000e+00> : vector<384x256xf32>
    %4 = tpu.matmul %1, %3, %cst {dimension_numbers = #tpu.dot_dimension_numbers<[1], [0], [0], [1], [0, 0, 1, 1], [], []>} : vector<384x28xf32>, vector<28x256xf32>, vector<384x256xf32> -> vector<384x256xf32>
    %5 = vector.extract_strided_slice %0 {offsets = [16, 0], sizes = [384, 28], strides = [1, 1]} : vector<448x28xf32> to vector<384x28xf32>
    %c1 = arith.constant 1 : index
    %c0_4 = arith.constant 0 : index
    %c0_5 = arith.constant 0 : index
    %6 = vector.load %arg2[%c1, %c0_4, %c0_5] : memref<5x28x256xf32, #tpu.memory_space<vmem>>, vector<1x28x256xf32>
    %7 = vector.shape_cast %6 : vector<1x28x256xf32> to vector<28x256xf32>
    %cst_6 = arith.constant dense<0.000000e+00> : vector<384x256xf32>
    %8 = tpu.matmul %5, %7, %cst_6 {dimension_numbers = #tpu.dot_dimension_numbers<[1], [0], [0], [1], [0, 0, 1, 1], [], []>} : vector<384x28xf32>, vector<28x256xf32>, vector<384x256xf32> -> vector<384x256xf32>
    %9 = arith.addf %4, %8 : vector<384x256xf32>
    %10 = vector.extract_strided_slice %0 {offsets = [32, 0], sizes = [384, 28], strides = [1, 1]} : vector<448x28xf32> to vector<384x28xf32>
    %c2 = arith.constant 2 : index
    %c0_7 = arith.constant 0 : index
    %c0_8 = arith.constant 0 : index
    %11 = vector.load %arg2[%c2, %c0_7, %c0_8] : memref<5x28x256xf32, #tpu.memory_space<vmem>>, vector<1x28x256xf32>
    %12 = vector.shape_cast %11 : vector<1x28x256xf32> to vector<28x256xf32>
    %cst_9 = arith.constant dense<0.000000e+00> : vector<384x256xf32>
    %13 = tpu.matmul %10, %12, %cst_9 {dimension_numbers = #tpu.dot_dimension_numbers<[1], [0], [0], [1], [0, 0, 1, 1], [], []>} : vector<384x28xf32>, vector<28x256xf32>, vector<384x256xf32> -> vector<384x256xf32>
    %14 = arith.addf %9, %13 : vector<384x256xf32>
    %15 = vector.extract_strided_slice %0 {offsets = [48, 0], sizes = [384, 28], strides = [1, 1]} : vector<448x28xf32> to vector<384x28xf32>
    %c3 = arith.constant 3 : index
    %c0_10 = arith.constant 0 : index
    %c0_11 = arith.constant 0 : index
    %16 = vector.load %arg2[%c3, %c0_10, %c0_11] : memref<5x28x256xf32, #tpu.memory_space<vmem>>, vector<1x28x256xf32>
    %17 = vector.shape_cast %16 : vector<1x28x256xf32> to vector<28x256xf32>
    %cst_12 = arith.constant dense<0.000000e+00> : vector<384x256xf32>
    %18 = tpu.matmul %15, %17, %cst_12 {dimension_numbers = #tpu.dot_dimension_numbers<[1], [0], [0], [1], [0, 0, 1, 1], [], []>} : vector<384x28xf32>, vector<28x256xf32>, vector<384x256xf32> -> vector<384x256xf32>
    %19 = arith.addf %14, %18 : vector<384x256xf32>
    %20 = vector.extract_strided_slice %0 {offsets = [64, 0], sizes = [384, 28], strides = [1, 1]} : vector<448x28xf32> to vector<384x28xf32>
    %c4 = arith.constant 4 : index
    %c0_13 = arith.constant 0 : index
    %c0_14 = arith.constant 0 : index
    %21 = vector.load %arg2[%c4, %c0_13, %c0_14] : memref<5x28x256xf32, #tpu.memory_space<vmem>>, vector<1x28x256xf32>
    %22 = vector.shape_cast %21 : vector<1x28x256xf32> to vector<28x256xf32>
    %cst_15 = arith.constant dense<0.000000e+00> : vector<384x256xf32>
    %23 = tpu.matmul %20, %22, %cst_15 {dimension_numbers = #tpu.dot_dimension_numbers<[1], [0], [0], [1], [0, 0, 1, 1], [], []>} : vector<384x28xf32>, vector<28x256xf32>, vector<384x256xf32> -> vector<384x256xf32>
    %24 = arith.addf %19, %23 : vector<384x256xf32>
    %25 = vector.extract_strided_slice %24 {offsets = [0, 0], sizes = [384, 128], strides = [1, 1]} : vector<384x256xf32> to vector<384x128xf32>
    %26 = vector.extract_strided_slice %24 {offsets = [0, 128], sizes = [384, 128], strides = [1, 1]} : vector<384x256xf32> to vector<384x128xf32>
    %27 = arith.maximumf %25, %26 : vector<384x128xf32>
    %28 = vector.shape_cast %27 : vector<384x128xf32> to vector<12x32x128xf32>
    %29 = vector.extract_strided_slice %28 {offsets = [0, 0, 0], sizes = [12, 16, 128], strides = [1, 1, 1]} : vector<12x32x128xf32> to vector<12x16x128xf32>
    %30 = vector.extract_strided_slice %28 {offsets = [0, 16, 0], sizes = [12, 16, 128], strides = [1, 1, 1]} : vector<12x32x128xf32> to vector<12x16x128xf32>
    %31 = arith.maximumf %29, %30 : vector<12x16x128xf32>
    %32 = vector.shape_cast %31 : vector<12x16x128xf32> to vector<192x128xf32>
    %c0_16 = arith.constant 0 : index
    %c0_17 = arith.constant 0 : index
    %33 = vector.load %arg6[%c0_16, %c0_17] : memref<4x128xf32, #tpu.memory_space<vmem>>, vector<1x128xf32>
    %34 = vector.broadcast %33 : vector<1x128xf32> to vector<192x128xf32>
    %35 = arith.addf %32, %34 : vector<192x128xf32>
    %cst_18 = arith.constant 0.000000e+00 : f32
    %36 = vector.broadcast %cst_18 : f32 to vector<192x128xf32>
    %37 = arith.maximumf %35, %36 : vector<192x128xf32>
    %38 = vector.extract_strided_slice %37 {offsets = [0, 0], sizes = [128, 128], strides = [1, 1]} : vector<192x128xf32> to vector<128x128xf32>
    %c0_19 = arith.constant 0 : index
    %c0_20 = arith.constant 0 : index
    %c0_21 = arith.constant 0 : index
    %39 = vector.load %arg3[%c0_19, %c0_20, %c0_21] : memref<5x128x256xf32, #tpu.memory_space<vmem>>, vector<1x128x256xf32>
    %40 = vector.shape_cast %39 : vector<1x128x256xf32> to vector<128x256xf32>
    %cst_22 = arith.constant dense<0.000000e+00> : vector<128x256xf32>
    %41 = tpu.matmul %38, %40, %cst_22 {dimension_numbers = #tpu.dot_dimension_numbers<[1], [0], [0], [1], [0, 0, 1, 1], [], []>} : vector<128x128xf32>, vector<128x256xf32>, vector<128x256xf32> -> vector<128x256xf32>
    %42 = vector.extract_strided_slice %37 {offsets = [16, 0], sizes = [128, 128], strides = [1, 1]} : vector<192x128xf32> to vector<128x128xf32>
    %c1_23 = arith.constant 1 : index
    %c0_24 = arith.constant 0 : index
    %c0_25 = arith.constant 0 : index
    %43 = vector.load %arg3[%c1_23, %c0_24, %c0_25] : memref<5x128x256xf32, #tpu.memory_space<vmem>>, vector<1x128x256xf32>
    %44 = vector.shape_cast %43 : vector<1x128x256xf32> to vector<128x256xf32>
    %cst_26 = arith.constant dense<0.000000e+00> : vector<128x256xf32>
    %45 = tpu.matmul %42, %44, %cst_26 {dimension_numbers = #tpu.dot_dimension_numbers<[1], [0], [0], [1], [0, 0, 1, 1], [], []>} : vector<128x128xf32>, vector<128x256xf32>, vector<128x256xf32> -> vector<128x256xf32>
    %46 = arith.addf %41, %45 : vector<128x256xf32>
    %47 = vector.extract_strided_slice %37 {offsets = [32, 0], sizes = [128, 128], strides = [1, 1]} : vector<192x128xf32> to vector<128x128xf32>
    %c2_27 = arith.constant 2 : index
    %c0_28 = arith.constant 0 : index
    %c0_29 = arith.constant 0 : index
    %48 = vector.load %arg3[%c2_27, %c0_28, %c0_29] : memref<5x128x256xf32, #tpu.memory_space<vmem>>, vector<1x128x256xf32>
    %49 = vector.shape_cast %48 : vector<1x128x256xf32> to vector<128x256xf32>
    %cst_30 = arith.constant dense<0.000000e+00> : vector<128x256xf32>
    %50 = tpu.matmul %47, %49, %cst_30 {dimension_numbers = #tpu.dot_dimension_numbers<[1], [0], [0], [1], [0, 0, 1, 1], [], []>} : vector<128x128xf32>, vector<128x256xf32>, vector<128x256xf32> -> vector<128x256xf32>
    %51 = arith.addf %46, %50 : vector<128x256xf32>
    %52 = vector.extract_strided_slice %37 {offsets = [48, 0], sizes = [128, 128], strides = [1, 1]} : vector<192x128xf32> to vector<128x128xf32>
    %c3_31 = arith.constant 3 : index
    %c0_32 = arith.constant 0 : index
    %c0_33 = arith.constant 0 : index
    %53 = vector.load %arg3[%c3_31, %c0_32, %c0_33] : memref<5x128x256xf32, #tpu.memory_space<vmem>>, vector<1x128x256xf32>
    %54 = vector.shape_cast %53 : vector<1x128x256xf32> to vector<128x256xf32>
    %cst_34 = arith.constant dense<0.000000e+00> : vector<128x256xf32>
    %55 = tpu.matmul %52, %54, %cst_34 {dimension_numbers = #tpu.dot_dimension_numbers<[1], [0], [0], [1], [0, 0, 1, 1], [], []>} : vector<128x128xf32>, vector<128x256xf32>, vector<128x256xf32> -> vector<128x256xf32>
    %56 = arith.addf %51, %55 : vector<128x256xf32>
    %57 = vector.extract_strided_slice %37 {offsets = [64, 0], sizes = [128, 128], strides = [1, 1]} : vector<192x128xf32> to vector<128x128xf32>
    %c4_35 = arith.constant 4 : index
    %c0_36 = arith.constant 0 : index
    %c0_37 = arith.constant 0 : index
    %58 = vector.load %arg3[%c4_35, %c0_36, %c0_37] : memref<5x128x256xf32, #tpu.memory_space<vmem>>, vector<1x128x256xf32>
    %59 = vector.shape_cast %58 : vector<1x128x256xf32> to vector<128x256xf32>
    %cst_38 = arith.constant dense<0.000000e+00> : vector<128x256xf32>
    %60 = tpu.matmul %57, %59, %cst_38 {dimension_numbers = #tpu.dot_dimension_numbers<[1], [0], [0], [1], [0, 0, 1, 1], [], []>} : vector<128x128xf32>, vector<128x256xf32>, vector<128x256xf32> -> vector<128x256xf32>
    %61 = arith.addf %56, %60 : vector<128x256xf32>
    %62 = vector.extract_strided_slice %61 {offsets = [0, 0], sizes = [128, 128], strides = [1, 1]} : vector<128x256xf32> to vector<128x128xf32>
    %63 = vector.extract_strided_slice %61 {offsets = [0, 128], sizes = [128, 128], strides = [1, 1]} : vector<128x256xf32> to vector<128x128xf32>
    %64 = arith.maximumf %62, %63 : vector<128x128xf32>
    %65 = vector.shape_cast %64 : vector<128x128xf32> to vector<4x32x128xf32>
    %66 = vector.extract_strided_slice %65 {offsets = [0, 0, 0], sizes = [4, 16, 128], strides = [1, 1, 1]} : vector<4x32x128xf32> to vector<4x16x128xf32>
    %67 = vector.extract_strided_slice %65 {offsets = [0, 16, 0], sizes = [4, 16, 128], strides = [1, 1, 1]} : vector<4x32x128xf32> to vector<4x16x128xf32>
    %68 = arith.maximumf %66, %67 : vector<4x16x128xf32>
    %69 = vector.shape_cast %68 : vector<4x16x128xf32> to vector<64x128xf32>
    %c1_39 = arith.constant 1 : index
    %c0_40 = arith.constant 0 : index
    %70 = vector.load %arg6[%c1_39, %c0_40] : memref<4x128xf32, #tpu.memory_space<vmem>>, vector<1x128xf32>
    %71 = vector.broadcast %70 : vector<1x128xf32> to vector<64x128xf32>
    %72 = arith.addf %69, %71 : vector<64x128xf32>
    %cst_41 = arith.constant 0.000000e+00 : f32
    %73 = vector.broadcast %cst_41 : f32 to vector<64x128xf32>
    %74 = arith.maximumf %72, %73 : vector<64x128xf32>
    %75 = vector.extract_strided_slice %74 {offsets = [0, 0], sizes = [16, 128], strides = [1, 1]} : vector<64x128xf32> to vector<16x128xf32>
    %76 = vector.extract_strided_slice %74 {offsets = [16, 0], sizes = [16, 128], strides = [1, 1]} : vector<64x128xf32> to vector<16x128xf32>
    %77 = vector.extract_strided_slice %74 {offsets = [32, 0], sizes = [16, 128], strides = [1, 1]} : vector<64x128xf32> to vector<16x128xf32>
    %78 = vector.extract_strided_slice %74 {offsets = [48, 0], sizes = [16, 128], strides = [1, 1]} : vector<64x128xf32> to vector<16x128xf32>
    %79 = tpu.concatenate %75, %76, %77, %78 in 1 : vector<16x128xf32>, vector<16x128xf32>, vector<16x128xf32>, vector<16x128xf32> -> vector<16x512xf32>
    %c0_42 = arith.constant 0 : index
    %c0_43 = arith.constant 0 : index
    %80 = vector.load %arg4[%c0_42, %c0_43] : memref<512x128xf32, #tpu.memory_space<vmem>>, vector<512x128xf32>
    %cst_44 = arith.constant dense<0.000000e+00> : vector<16x128xf32>
    %81 = tpu.matmul %79, %80, %cst_44 {dimension_numbers = #tpu.dot_dimension_numbers<[1], [0], [0], [1], [0, 0, 1, 1], [], []>} : vector<16x512xf32>, vector<512x128xf32>, vector<16x128xf32> -> vector<16x128xf32>
    %c2_45 = arith.constant 2 : index
    %c0_46 = arith.constant 0 : index
    %82 = vector.load %arg6[%c2_45, %c0_46] : memref<4x128xf32, #tpu.memory_space<vmem>>, vector<1x128xf32>
    %83 = vector.broadcast %82 : vector<1x128xf32> to vector<16x128xf32>
    %84 = arith.addf %81, %83 : vector<16x128xf32>
    %cst_47 = arith.constant 0.000000e+00 : f32
    %85 = vector.broadcast %cst_47 : f32 to vector<16x128xf32>
    %86 = arith.maximumf %84, %85 : vector<16x128xf32>
    %c0_48 = arith.constant 0 : index
    %c0_49 = arith.constant 0 : index
    %87 = vector.load %arg5[%c0_48, %c0_49] : memref<128x128xf32, #tpu.memory_space<vmem>>, vector<128x128xf32>
    %cst_50 = arith.constant dense<0.000000e+00> : vector<16x128xf32>
    %88 = tpu.matmul %86, %87, %cst_50 {dimension_numbers = #tpu.dot_dimension_numbers<[1], [0], [0], [1], [0, 0, 1, 1], [], []>} : vector<16x128xf32>, vector<128x128xf32>, vector<16x128xf32> -> vector<16x128xf32>
    %c3_51 = arith.constant 3 : index
    %c0_52 = arith.constant 0 : index
    %89 = vector.load %arg6[%c3_51, %c0_52] : memref<4x128xf32, #tpu.memory_space<vmem>>, vector<1x128xf32>
    %90 = vector.broadcast %89 : vector<1x128xf32> to vector<16x128xf32>
    %91 = arith.addf %88, %90 : vector<16x128xf32>
    %cst_53 = arith.constant dense<0xFF800000> : vector<16xf32>
    %92 = vector.multi_reduction <maximumf>, %91, %cst_53 [1] : vector<16x128xf32> to vector<16xf32>
    %93 = vector.shape_cast %92 : vector<16xf32> to vector<16x1xf32>
    %94 = vector.broadcast %93 : vector<16x1xf32> to vector<16x128xf32>
    %95 = arith.subf %91, %94 : vector<16x128xf32>
    %96 = math.exp %95 : vector<16x128xf32>
    %cst_54 = arith.constant dense<0.000000e+00> : vector<16xf32>
    %97 = vector.multi_reduction <add>, %96, %cst_54 [1] : vector<16x128xf32> to vector<16xf32>
    %98 = vector.shape_cast %97 : vector<16xf32> to vector<16x1xf32>
    %99 = math.log %98 : vector<16x1xf32>
    %100 = arith.addf %99, %93 : vector<16x1xf32>
    %101 = vector.broadcast %100 : vector<16x1xf32> to vector<16x128xf32>
    %102 = arith.subf %91, %101 : vector<16x128xf32>
    %c0_55 = arith.constant 0 : index
    %c0_56 = arith.constant 0 : index
    %103 = vector.load %arg7[%c0_55, %c0_56] : memref<16x128xf32, #tpu.memory_space<vmem>>, vector<16x128xf32>
    tpu.vector_store %arg7[%c0_55, %c0_56], %102 {strides = array<i32>} : memref<16x128xf32, #tpu.memory_space<vmem>>, vector<16x128xf32>,
    return
  }
  func.func @transform_0(%arg0: i32) -> (i32, i32) {
    %c0_i32 = arith.constant 0 : i32
    %c0_i32_0 = arith.constant 0 : i32
    return %arg0, %c0_i32 : i32, i32
  }
  func.func @transform_1(%arg0: i32) -> (i32, i32, i32) {
    %c0_i32 = arith.constant 0 : i32
    %c0_i32_0 = arith.constant 0 : i32
    %c0_i32_1 = arith.constant 0 : i32
    %c0_i32_2 = arith.constant 0 : i32
    return %c0_i32, %c0_i32_0, %c0_i32_1 : i32, i32, i32
  }
  func.func @transform_2(%arg0: i32) -> (i32, i32, i32) {
    %c0_i32 = arith.constant 0 : i32
    %c0_i32_0 = arith.constant 0 : i32
    %c0_i32_1 = arith.constant 0 : i32
    %c0_i32_2 = arith.constant 0 : i32
    return %c0_i32, %c0_i32_0, %c0_i32_1 : i32, i32, i32
  }
  func.func @transform_3(%arg0: i32) -> (i32, i32) {
    %c0_i32 = arith.constant 0 : i32
    %c0_i32_0 = arith.constant 0 : i32
    %c0_i32_1 = arith.constant 0 : i32
    return %c0_i32, %c0_i32_0 : i32, i32
  }
  func.func @transform_4(%arg0: i32) -> (i32, i32) {
    %c0_i32 = arith.constant 0 : i32
    %c0_i32_0 = arith.constant 0 : i32
    %c0_i32_1 = arith.constant 0 : i32
    return %c0_i32, %c0_i32_0 : i32, i32
  }
  func.func @transform_5(%arg0: i32) -> (i32, i32) {
    %c0_i32 = arith.constant 0 : i32
    %c0_i32_0 = arith.constant 0 : i32
    %c0_i32_1 = arith.constant 0 : i32
    return %c0_i32, %c0_i32_0 : i32, i32
  }
  func.func @transform_6(%arg0: i32) -> (i32, i32) {
    %c0_i32 = arith.constant 0 : i32
    %c0_i32_0 = arith.constant 0 : i32
    return %arg0, %c0_i32 : i32, i32
  }
}

</mosaic_0001>

<llo_original>
// kernel: tile.13
$region0: #{tile.13}
  #allocation0 [shape = 's32[1]{0}', space=sflag, size = 0x4, scoped, tag = 'scoped memory for tile.13']
  %s0 = inlined_call_operand.vmem [shape: f32[10], index: 0, kind: input, shape index: {}]
  %s1 = inlined_call_operand.vmem [shape: f32[12,10], index: 1, kind: output, shape index: {}]
  // Predicated region
  $region2: #{tile.13} parent=0 // pred_check
    _
  $region3: #{tile.13} parent=0 // pred_check_branch
    %3 = sbr.rel (0) target = $region5
  $region4: #{tile.13} parent=0 // pred_region
    _
  $region5: #{tile.13} parent=0 // pred_fallthru
    _
  %v4 = vld [vmem:[%s0] ss:$0 sm:$0xff]
  %5 = vst [vmem:[%s1] sm:$0xff] %v4
  %s6 = scalar_lea.vmem %s1, 8
  %7 = vst [vmem:[%s6] sm:$0xff] %v4

// kernel: tile.18
$region0: #{tile.18}
  #allocation0 [shape = 's32[1]{0}', space=sflag, size = 0x4, scoped, tag = 'scoped memory for tile.18']
  %s0 = inlined_call_operand.vmem [shape: f32[20], index: 0, kind: input, shape index: {}]
  %s1 = inlined_call_operand.vmem [shape: f32[4,20], index: 1, kind: output, shape index: {}]
  // Predicated region
  $region2: #{tile.18} parent=0 // pred_check
    _
  $region3: #{tile.18} parent=0 // pred_check_branch
    %3 = sbr.rel (0) target = $region5
  $region4: #{tile.18} parent=0 // pred_region
    _
  $region5: #{tile.18} parent=0 // pred_fallthru
    _
  %v4 = vld [vmem:[%s0] ss:$0 sm:$0xff]
  %5 = vst [vmem:[%s1] sm:$0xf] %v4

// kernel: torchplus_forward.1
$region0: #{torchplus_forward.1}
  #allocation0 [shape = 'u32[]', space=smem, size = 0x4, offset = 0x4, fixed_abs, tag = 'smem constant byte address 0x4 - core index']
  #allocation1 [shape = 'u32[144,128]{1,0:T(1,128)}', space=vmem, size = 0x12000, scoped, tag = 'internal scratch']
  %s0 = inlined_call_operand.vmem [shape: f32[896,28], index: 0, kind: input, shape index: {}]
  %s1 = inlined_call_operand.vmem [shape: f32[5,28,256], index: 1, kind: input, shape index: {}]
  %s2 = inlined_call_operand.vmem [shape: f32[5,128,256], index: 2, kind: input, shape index: {}]
  %s3 = inlined_call_operand.vmem [shape: f32[512,128], index: 3, kind: input, shape index: {}]
  %s4 = inlined_call_operand.vmem [shape: f32[128,128], index: 4, kind: input, shape index: {}]
  %s5 = inlined_call_operand.vmem [shape: f32[4,128], index: 5, kind: input, shape index: {}]
  %s6 = inlined_call_operand.vmem [shape: f32[32,128], index: 6, kind: output, shape index: {}]
  %s7 = sld [smem:[#allocation0]]
  $region57: #{torchplus_forward.1} parent=0
    _
  %s9 = ssub.s32 1, %s7
  %s10 = scalar_select 0, %s9, %s7
  loop: start=0, step=1, limit=4
  $region2: #{torchplus_forward.1} parent=0 // loop_pre_header
    _
  $region3: #{torchplus_forward.1} parent=0 // loop_header
    %s12 = sphi 0, %s16
    %p13 = scmp.ge.s32.totalorder %s12, 4
    %s22 = sphi 0, %s24
    %s25 = sphi 0, %s22
    %s26 = sphi 0, %s25
    %s42 = sphi 0, %s26
    %s46 = sphi 0, %s46
    %s48 = sphi 0, %s46
    %s49 = sphi 0, %s48
    %s63 = sphi 0, %s49
    %s67 = sphi 0, %s67
    %s69 = sphi 0, %s67
    %s70 = sphi 0, %s69
    %s84 = sphi 0, %s70
    %s88 = sphi 0, %s88
    %s90 = sphi 0, %s88
    %s91 = sphi 0, %s90
    %s105 = sphi 0, %s91
    %s109 = sphi 0, %s109
    %s111 = sphi 0, %s109
    %s112 = sphi 0, %s111
    %s126 = sphi 0, %s112
    %s130 = sphi 0, %s130
    %s132 = sphi 0, %s130
    %s133 = sphi 0, %s132
    %s147 = sphi 0, %s133
    %s153 = sphi 0, %s155
    %s156 = sphi 0, %s153
    %s157 = sphi 0, %s156
    %s173 = sphi 0, %s157
  $region4: #{torchplus_forward.1} parent=0 // loop_header_branch
    %15 = sbr.rel (%p13) target = $region8
  $region5: #{torchplus_forward.1} parent=0 // loop_body
    %s17 = ssub.s32 %s12, 1
    %s18 = ssub.s32 %s12, 2
    %s19 = sadd.s32 %s12, 1
    %s20 = ssub.s32 %s12, %s19
    %p21 = scmp.eq.s32.totalorder %s20, 0
    %s23 = sadd.s32 %s22, 1
    %s24 = scalar_select %p21, %s22, %s23
    %p27 = pneg %p21
    %p28 = scmp.eq.s32.totalorder %s12, 1
    %p29 = por %p27, %p28
    %p30 = scmp.ne.s32.totalorder %s22, %s25
    %p31 = scmp.eq.s32.totalorder %s12, 0
    %p32 = por %p30, %p31
    %p33 = scmp.ne.s32.totalorder %s22, %s25
    %p34 = scmp.eq.s32.totalorder %s17, 1
    %p35 = por %p33, %p34
    %p36 = scmp.ne.s32.totalorder %s25, %s26
    %p37 = scmp.eq.s32.totalorder %s17, 0
    %p38 = por %p36, %p37
    %p39 = scmp.ne.s32.totalorder %s25, %s26
    %p40 = scmp.eq.s32.totalorder %s18, 1
    %p41 = por %p39, %p40
    %p43 = scmp.ne.s32.totalorder %s26, %s42
    %p44 = scmp.eq.s32.totalorder %s18, 0
    %p45 = por %p43, %p44
    %s47 = sadd.s32 %s46, 1
    %p50 = scmp.eq.s32.totalorder %s12, 1
    %p51 = scmp.ne.s32.totalorder %s46, %s48
    %p52 = scmp.eq.s32.totalorder %s12, 0
    %p53 = por %p51, %p52
    %p54 = scmp.ne.s32.totalorder %s46, %s48
    %p55 = scmp.eq.s32.totalorder %s17, 1
    %p56 = por %p54, %p55
    %p57 = scmp.ne.s32.totalorder %s48, %s49
    %p58 = scmp.eq.s32.totalorder %s17, 0
    %p59 = por %p57, %p58
    %p60 = scmp.ne.s32.totalorder %s48, %s49
    %p61 = scmp.eq.s32.totalorder %s18, 1
    %p62 = por %p60, %p61
    %p64 = scmp.ne.s32.totalorder %s49, %s63
    %p65 = scmp.eq.s32.totalorder %s18, 0
    %p66 = por %p64, %p65
    %s68 = sadd.s32 %s67, 1
    %p71 = scmp.eq.s32.totalorder %s12, 1
    %p72 = scmp.ne.s32.totalorder %s67, %s69
    %p73 = scmp.eq.s32.totalorder %s12, 0
    %p74 = por %p72, %p73
    %p75 = scmp.ne.s32.totalorder %s67, %s69
    %p76 = scmp.eq.s32.totalorder %s17, 1
    %p77 = por %p75, %p76
    %p78 = scmp.ne.s32.totalorder %s69, %s70
    %p79 = scmp.eq.s32.totalorder %s17, 0
    %p80 = por %p78, %p79
    %p81 = scmp.ne.s32.totalorder %s69, %s70
    %p82 = scmp.eq.s32.totalorder %s18, 1
    %p83 = por %p81, %p82
    %p85 = scmp.ne.s32.totalorder %s70, %s84
    %p86 = scmp.eq.s32.totalorder %s18, 0
    %p87 = por %p85, %p86
    %s89 = sadd.s32 %s88, 1
    %p92 = scmp.eq.s32.totalorder %s12, 1
    %p93 = scmp.ne.s32.totalorder %s88, %s90
    %p94 = scmp.eq.s32.totalorder %s12, 0
    %p95 = por %p93, %p94
    %p96 = scmp.ne.s32.totalorder %s88, %s90
    %p97 = scmp.eq.s32.totalorder %s17, 1
    %p98 = por %p96, %p97
    %p99 = scmp.ne.s32.totalorder %s90, %s91
    %p100 = scmp.eq.s32.totalorder %s17, 0
    %p101 = por %p99, %p100
    %p102 = scmp.ne.s32.totalorder %s90, %s91
    %p103 = scmp.eq.s32.totalorder %s18, 1
    %p104 = por %p102, %p103
    %p106 = scmp.ne.s32.totalorder %s91, %s105
    %p107 = scmp.eq.s32.totalorder %s18, 0
    %p108 = por %p106, %p107
    %s110 = sadd.s32 %s109, 1
    %p113 = scmp.eq.s32.totalorder %s12, 1
    %p114 = scmp.ne.s32.totalorder %s109, %s111
    %p115 = scmp.eq.s32.totalorder %s12, 0
    %p116 = por %p114, %p115
    %p117 = scmp.ne.s32.totalorder %s109, %s111
    %p118 = scmp.eq.s32.totalorder %s17, 1
    %p119 = por %p117, %p118
    %p120 = scmp.ne.s32.totalorder %s111, %s112
    %p121 = scmp.eq.s32.totalorder %s17, 0
    %p122 = por %p120, %p121
    %p123 = scmp.ne.s32.totalorder %s111, %s112
    %p124 = scmp.eq.s32.totalorder %s18, 1
    %p125 = por %p123, %p124
    %p127 = scmp.ne.s32.totalorder %s112, %s126
    %p128 = scmp.eq.s32.totalorder %s18, 0
    %p129 = por %p127, %p128
    %s131 = sadd.s32 %s130, 1
    %p134 = scmp.eq.s32.totalorder %s12, 1
    %p135 = scmp.ne.s32.totalorder %s130, %s132
    %p136 = scmp.eq.s32.totalorder %s12, 0
    %p137 = por %p135, %p136
    %p138 = scmp.ne.s32.totalorder %s130, %s132
    %p139 = scmp.eq.s32.totalorder %s17, 1
    %p140 = por %p138, %p139
    %p141 = scmp.ne.s32.totalorder %s132, %s133
    %p142 = scmp.eq.s32.totalorder %s17, 0
    %p143 = por %p141, %p142
    %p144 = scmp.ne.s32.totalorder %s132, %s133
    %p145 = scmp.eq.s32.totalorder %s18, 1
    %p146 = por %p144, %p145
    %p148 = scmp.ne.s32.totalorder %s133, %s147
    %p149 = scmp.eq.s32.totalorder %s18, 0
    %p150 = por %p148, %p149
    %s151 = ssub.s32 %s12, %s19
    %p152 = scmp.eq.s32.totalorder %s151, 0
    %s154 = sadd.s32 %s153, 1
    %s155 = scalar_select %p152, %s153, %s154
    %p158 = pneg %p152
    %p159 = scmp.eq.s32.totalorder %s12, 1
    %p160 = por %p158, %p159
    %p161 = scmp.ne.s32.totalorder %s153, %s156
    %p162 = scmp.eq.s32.totalorder %s12, 0
    %p163 = por %p161, %p162
    %p164 = scmp.ne.s32.totalorder %s153, %s156
    %p165 = scmp.eq.s32.totalorder %s17, 1
    %p166 = por %p164, %p165
    %p167 = scmp.ne.s32.totalorder %s156, %s157
    %p168 = scmp.eq.s32.totalorder %s17, 0
    %p169 = por %p167, %p168
    %p170 = scmp.ne.s32.totalorder %s156, %s157
    %p171 = scmp.eq.s32.totalorder %s18, 1
    %p172 = por %p170, %p171
    %p174 = scmp.ne.s32.totalorder %s157, %s173
    %p175 = scmp.eq.s32.totalorder %s18, 0
    %p176 = por %p174, %p175
    %p177 = scmp.le.s32.totalorder 1, %s12
    %p178 = scmp.lt.s32.totalorder %s12, 3
    %p179 = pnand %p177, %p178
    %p180 = pneg %p179
    // Predicated region
    $region9: #{torchplus_forward.1} parent=5 // pred_check
      _
    $region10: #{torchplus_forward.1} parent=5 // pred_check_branch
      %182 = sbr.rel (%p179) target = $region12
    $region11: #{torchplus_forward.1} parent=5 // pred_region
      %s183 = ssub.s32 %s12, 1
      // Predicated region
      $region13: #{torchplus_forward.1} parent=11 // pred_check
        %p184 = pneg %p59
      $region14: #{torchplus_forward.1} parent=11 // pred_check_branch
        %186 = sbr.rel (%p184) target = $region16
      $region15: #{torchplus_forward.1} parent=11 // pred_region
        _
      $region16: #{torchplus_forward.1} parent=11 // pred_fallthru
        _
      // Predicated region
      $region17: #{torchplus_forward.1} parent=11 // pred_check
        %p187 = pneg %p80
      $region18: #{torchplus_forward.1} parent=11 // pred_check_branch
        %189 = sbr.rel (%p187) target = $region20
      $region19: #{torchplus_forward.1} parent=11 // pred_region
        _
      $region20: #{torchplus_forward.1} parent=11 // pred_fallthru
        _
      // Predicated region
      $region21: #{torchplus_forward.1} parent=11 // pred_check
        %p190 = pneg %p101
      $region22: #{torchplus_forward.1} parent=11 // pred_check_branch
        %192 = sbr.rel (%p190) target = $region24
      $region23: #{torchplus_forward.1} parent=11 // pred_region
        _
      $region24: #{torchplus_forward.1} parent=11 // pred_fallthru
        _
      // Predicated region
      $region25: #{torchplus_forward.1} parent=11 // pred_check
        %p193 = pneg %p122
      $region26: #{torchplus_forward.1} parent=11 // pred_check_branch
        %195 = sbr.rel (%p193) target = $region28
      $region27: #{torchplus_forward.1} parent=11 // pred_region
        _
      $region28: #{torchplus_forward.1} parent=11 // pred_fallthru
        _
      // Predicated region
      $region29: #{torchplus_forward.1} parent=11 // pred_check
        %p196 = pneg %p143
      $region30: #{torchplus_forward.1} parent=11 // pred_check_branch
        %198 = sbr.rel (%p196) target = $region32
      $region31: #{torchplus_forward.1} parent=11 // pred_region
        _
      $region32: #{torchplus_forward.1} parent=11 // pred_fallthru
        _
    $region12: #{torchplus_forward.1} parent=5 // pred_fallthru
      _
    %p199 = scmp.lt.s32.totalorder %s12, 2
    // Predicated region
    $region33: #{torchplus_forward.1} parent=5 // pred_check
      %p200 = pneg %p199
    $region34: #{torchplus_forward.1} parent=5 // pred_check_branch
      %202 = sbr.rel (%p200) target = $region36
    $region35: #{torchplus_forward.1} parent=5 // pred_region
      // Predicated region
      $region37: #{torchplus_forward.1} parent=35 // pred_check
        %p203 = pneg %p32
      $region38: #{torchplus_forward.1} parent=35 // pred_check_branch
        %205 = sbr.rel (%p203) target = $region40
      $region39: #{torchplus_forward.1} parent=35 // pred_region
        %s206 = smul.u32 56, %s12
        %p207 = scmp.lt.s32.totalorder %s206, 111
        %s208 = scalar_select %p207, %s206, 111
        %s209 = smul.addr %s208, 8
        %s210 = scalar_lea.vmem %s0, %s209
        %s211 = smul.u32 56, %s12
      $region40: #{torchplus_forward.1} parent=35 // pred_fallthru
        _
    $region36: #{torchplus_forward.1} parent=5 // pred_fallthru
      _
    %p212 = scmp.le.s32.totalorder 1, %s12
    %p213 = scmp.lt.s32.totalorder %s12, 3
    %p214 = pnand %p212, %p213
    %p215 = pneg %p214
    // Predicated region
    $region41: #{torchplus_forward.1} parent=5 // pred_check
      _
    $region42: #{torchplus_forward.1} parent=5 // pred_check_branch
      %217 = sbr.rel (%p214) target = $region44
    $region43: #{torchplus_forward.1} parent=5 // pred_region
      %s218 = ssub.s32 %s12, 1
      %s219 = smul.u32 56, %s17
      %p220 = scmp.lt.s32.totalorder %s219, 111
      %s221 = scalar_select %p220, %s219, 111
      %s222 = smul.addr %s221, 8
      %s223 = scalar_lea.vmem %s0, %s222
      %p224 = pneg %p38
      %p225 = pneg %p35
      %p226 = pneg %p59
      %p227 = pneg %p56
      %p228 = pneg %p80
      %p229 = pneg %p77
      %p230 = pneg %p101
      %p231 = pneg %p98
      %p232 = pneg %p122
      %p233 = pneg %p119
      %p234 = pneg %p143
      %p235 = pneg %p140
      %p236 = pneg %p169
      %p237 = pneg %p166
      %s238 = smul.u32 2, %s17
      %p239 = scmp.lt.s32.totalorder %s238, 3
      %s240 = scalar_select %p239, %s238, 3
      %s241 = smul.addr %s240, 8
      %s242 = scalar_lea.vmem %s6, %s241
      %s243 = smul.u32 56, %s17
      %p244 = scmp.lt.s32.totalorder %s243, 111
      %s245 = scalar_select %p244, %s243, 111
      %s246 = smul.addr %s245, 8
      %s247 = scalar_lea.vmem %s0, %s246
      %s248 = smul.u32 56, %s17
      %s249 = smul.u32 2, %s17
      %p250 = scmp.lt.s32.totalorder %s249, 3
      %s251 = scalar_select %p250, %s249, 3
      %s252 = smul.addr %s251, 8
      %s253 = scalar_lea.vmem %s6, %s252
      %s254 = smul.u32 2, %s17
      %v255 = vld [vmem:[%s247] sm:$0xff]
      %v256 = vld [vmem:[%s247 + $0x8] sm:$0xff]
      %v257 = vld [vmem:[%s247 + $0x10] sm:$0xff]
      %v258 = vld [vmem:[%s247 + $0x18] sm:$0xff]
      %v259 = vld [vmem:[%s247 + $0x20] sm:$0xff]
      %v260 = vld [vmem:[%s247 + $0x28] sm:$0xff]
      %v261 = vld [vmem:[%s247 + $0x30] sm:$0xff]
      %v262 = vld [vmem:[%s247 + $0x38] sm:$0xff]
      %v263 = vld [vmem:[%s247 + $0x40] sm:$0xff]
      %v264 = vld [vmem:[%s247 + $0x48] sm:$0xff]
      %v265 = vld [vmem:[%s247 + $0x50] sm:$0xff]
      %v266 = vld [vmem:[%s247 + $0x58] sm:$0xff]
      %v267 = vld [vmem:[%s247 + $0x60] sm:$0xff]
      %v268 = vld [vmem:[%s247 + $0x68] sm:$0xff]
      %v269 = vld [vmem:[%s247 + $0x70] sm:$0xff]
      %v270 = vld [vmem:[%s247 + $0x78] sm:$0xff]
      %v271 = vld [vmem:[%s247 + $0x80] sm:$0xff]
      %v272 = vld [vmem:[%s247 + $0x88] sm:$0xff]
      %v273 = vld [vmem:[%s247 + $0x90] sm:$0xff]
      %v274 = vld [vmem:[%s247 + $0x98] sm:$0xff]
      %v275 = vld [vmem:[%s247 + $0xa0] sm:$0xff]
      %v276 = vld [vmem:[%s247 + $0xa8] sm:$0xff]
      %v277 = vld [vmem:[%s247 + $0xb0] sm:$0xff]
      %v278 = vld [vmem:[%s247 + $0xb8] sm:$0xff]
      %v279 = vld [vmem:[%s247 + $0xc0] sm:$0xff]
      %v280 = vld [vmem:[%s247 + $0xc8] sm:$0xff]
      %v281 = vld [vmem:[%s247 + $0xd0] sm:$0xff]
      %v282 = vld [vmem:[%s247 + $0xd8] sm:$0xff]
      %v283 = vld [vmem:[%s247 + $0xe0] sm:$0xff]
      %v284 = vld [vmem:[%s247 + $0xe8] sm:$0xff]
      %v285 = vld [vmem:[%s247 + $0xf0] sm:$0xff]
      %v286 = vld [vmem:[%s247 + $0xf8] sm:$0xff]
      %v287 = vld [vmem:[%s247 + $0x100] sm:$0xff]
      %v288 = vld [vmem:[%s247 + $0x108] sm:$0xff]
      %v289 = vld [vmem:[%s247 + $0x110] sm:$0xff]
      %v290 = vld [vmem:[%s247 + $0x118] sm:$0xff]
      %v291 = vld [vmem:[%s247 + $0x120] sm:$0xff]
      %v292 = vld [vmem:[%s247 + $0x128] sm:$0xff]
      %v293 = vld [vmem:[%s247 + $0x130] sm:$0xff]
      %v294 = vld [vmem:[%s247 + $0x138] sm:$0xff]
      %v295 = vld [vmem:[%s247 + $0x140] sm:$0xff]
      %v296 = vld [vmem:[%s247 + $0x148] sm:$0xff]
      %v297 = vld [vmem:[%s247 + $0x150] sm:$0xff]
      %v298 = vld [vmem:[%s247 + $0x158] sm:$0xff]
      %v299 = vld [vmem:[%s247 + $0x160] sm:$0xff]
      %v300 = vld [vmem:[%s247 + $0x168] sm:$0xff]
      %v301 = vld [vmem:[%s247 + $0x170] sm:$0xff]
      %v302 = vld [vmem:[%s247 + $0x178] sm:$0xff]
      %v303 = vld [vmem:[%s247 + $0x180] sm:$0xff]
      %v304 = vld [vmem:[%s247 + $0x188] sm:$0xff]
      %v305 = vld [vmem:[%s247 + $0x190] sm:$0xff]
      %v306 = vld [vmem:[%s247 + $0x198] sm:$0xff]
      %v307 = vld [vmem:[%s247 + $0x1a0] sm:$0xff]
      %v308 = vld [vmem:[%s247 + $0x1a8] sm:$0xff]
      %v309 = vld [vmem:[%s247 + $0x1b0] sm:$0xff]
      %v310 = vld [vmem:[%s247 + $0x1b8] sm:$0xff]
      %v311 = vld [vmem:[%s1] sm:$0xff]
      %v312 = vld [vmem:[%s1 + $0x8] sm:$0xff]
      %v313 = vld [vmem:[%s1 + $0x10] sm:$0xff]
      %v314 = vld [vmem:[%s1 + $0x18] sm:$0xff]
      %v315 = vld [vmem:[%s1 + $0x20] sm:$0xff]
      %v316 = vld [vmem:[%s1 + $0x28] sm:$0xff]
      %v317 = vld [vmem:[%s1 + $0x30] sm:$0xf]
      %v318 = vld [vmem:[%s1 + $0x38] sm:$0xf]
      %s319 = scalar_lea.vmem %s1, 64
      %v320 = vld [vmem:[%s319] sm:$0xff]
      %v321 = vld [vmem:[%s319 + $0x8] sm:$0xff]
      %v322 = vld [vmem:[%s319 + $0x10] sm:$0xff]
      %v323 = vld [vmem:[%s319 + $0x18] sm:$0xff]
      %v324 = vld [vmem:[%s319 + $0x20] sm:$0xff]
      %v325 = vld [vmem:[%s319 + $0x28] sm:$0xff]
      %v326 = vld [vmem:[%s319 + $0x30] sm:$0xf]
      %v327 = vld [vmem:[%s319 + $0x38] sm:$0xf]
      %vm328 = vcmask 228352
      %v330 = vsel %vm328, %v257, 0
      %v333 = vsel %vm328, %v258, 0
      %v336 = vsel %vm328, %v259, 0
      %v339 = vsel %vm328, %v260, 0
      %v342 = vsel %vm328, %v261, 0
      %v345 = vsel %vm328, %v262, 0
      %v348 = vsel %vm328, %v263, 0
      %v351 = vsel %vm328, %v264, 0
      %v354 = vsel %vm328, %v265, 0
      %v357 = vsel %vm328, %v266, 0
      %v360 = vsel %vm328, %v267, 0
      %v363 = vsel %vm328, %v268, 0
      %v366 = vsel %vm328, %v269, 0
      %v369 = vsel %vm328, %v270, 0
      %v372 = vsel %vm328, %v271, 0
      %v375 = vsel %vm328, %v272, 0
      %v378 = vsel %vm328, %v273, 0
      %v381 = vsel %vm328, %v274, 0
      %v384 = vsel %vm328, %v275, 0
      %v387 = vsel %vm328, %v276, 0
      %v390 = vsel %vm328, %v277, 0
      %v393 = vsel %vm328, %v278, 0
      %v396 = vsel %vm328, %v279, 0
      %v399 = vsel %vm328, %v280, 0
      %v402 = vsel %vm328, %v281, 0
      %v405 = vsel %vm328, %v282, 0
      %v408 = vsel %vm328, %v283, 0
      %v411 = vsel %vm328, %v284, 0
      %v414 = vsel %vm328, %v285, 0
      %v417 = vsel %vm328, %v286, 0
      %v420 = vsel %vm328, %v287, 0
      %v423 = vsel %vm328, %v288, 0
      %v426 = vsel %vm328, %v289, 0
      %v429 = vsel %vm328, %v290, 0
      %v432 = vsel %vm328, %v291, 0
      %v435 = vsel %vm328, %v292, 0
      %v438 = vsel %vm328, %v293, 0
      %v441 = vsel %vm328, %v294, 0
      %v444 = vsel %vm328, %v295, 0
      %v447 = vsel %vm328, %v296, 0
      %v450 = vsel %vm328, %v297, 0
      %v453 = vsel %vm328, %v298, 0
      %v456 = vsel %vm328, %v299, 0
      %v459 = vsel %vm328, %v300, 0
      %v462 = vsel %vm328, %v301, 0
      %v465 = vsel %vm328, %v302, 0
      %v468 = vsel %vm328, %v303, 0
      %v471 = vsel %vm328, %v304, 0
      %vm473 = vcmask 1043456
      %v475 = vsel %vm473, %v326, 0
      %v478 = vsel %vm473, %v327, 0
      %480 = vmatprep.subr.mxu0 0.0
      %481 = vmatpush1.msra.mxu0 0.0
      %482 = vmatprep.subr.mxu0 0.0
      %483 = vmatpush1.msra.mxu0 0.0
      %484 = vmatprep.subr.mxu0 0.0
      %485 = vmatpush1.msra.mxu0 0.0
      %486 = vmatprep.subr.mxu0 0.0
      %487 = vmatpush1.msra.mxu0 0.0
      %488 = vmatprep.subr.mxu0 0.0
      %489 = vmatpush1.msra.mxu0 0.0
      %490 = vmatprep.subr.mxu0 0.0
      %491 = vmatpush1.msra.mxu0 0.0
      %492 = vmatprep.subr.mxu0 0.0
      %493 = vmatpush1.msra.mxu0 0.0
      %494 = vmatprep.subr.mxu0 0.0
      %495 = vmatpush1.msra.mxu0 0.0
      %496 = vmatprep.subr.mxu0 0.0
      %497 = vmatpush1.msra.mxu0 0.0
      %498 = vmatprep.subr.mxu0 0.0
      %499 = vmatpush1.msra.mxu0 0.0
      %500 = vmatprep.subr.mxu0 0.0
      %501 = vmatpush1.msra.mxu0 0.0
      %502 = vmatprep.subr.mxu0 0.0
      %503 = vmatpush1.msra.mxu0 0.0
      %504 = vmatprep.subr.mxu0 %v478
      %505 = vmatpush1.msra.mxu0 %v475
      %506 = vmatprep.subr.mxu0 %v325
      %507 = vmatpush1.msra.mxu0 %v324
      %508 = vmatprep.subr.mxu0 %v323
      %509 = vmatpush1.msra.mxu0 %v322
      %510 = vmatprep.subr.mxu0 %v321
      %511 = vmatpush1.msra.mxu0 %v320
      %512 = vmatprep.subr.mxu0 0.0
      %513 = vmatpush2.msra.mxu0 0.0
      %514 = vmatprep.subr.mxu0 0.0
      %515 = vmatpush2.msra.mxu0 0.0
      %516 = vmatprep.subr.mxu0 0.0
      %517 = vmatpush2.msra.mxu0 0.0
      %518 = vmatprep.subr.mxu0 0.0
      %519 = vmatpush2.msra.mxu0 0.0
      %520 = vmatprep.subr.mxu0 0.0
      %521 = vmatpush2.msra.mxu0 0.0
      %522 = vmatprep.subr.mxu0 0.0
      %523 = vmatpush2.msra.mxu0 0.0
      %524 = vmatprep.subr.mxu0 0.0
      %525 = vmatpush2.msra.mxu0 0.0
      %526 = vmatprep.subr.mxu0 0.0
      %527 = vmatpush2.msra.mxu0 0.0
      %528 = vmatprep.subr.mxu0 0.0
      %529 = vmatpush2.msra.mxu0 0.0
      %530 = vmatprep.subr.mxu0 0.0
      %531 = vmatpush2.msra.mxu0 0.0
      %532 = vmatprep.subr.mxu0 0.0
      %533 = vmatpush2.msra.mxu0 0.0
      %534 = vmatprep.subr.mxu0 0.0
      %535 = vmatpush2.msra.mxu0 0.0
      %536 = vmatprep.subr.mxu0 0.0
      %537 = vmatpush2.msra.mxu0 0.0
      %538 = vmatprep.subr.mxu0 0.0
      %539 = vmatpush2.msra.mxu0 0.0
      %540 = vmatprep.subr.mxu0 0.0
      %541 = vmatpush2.msra.mxu0 0.0
      %542 = vmatprep.subr.mxu0 0.0
      %543 = vmatpush2.msra.mxu0 0.0
      %544 = vmatprep.mubr.f32.mxu0 0.0
      %545 = vmatmul.mubr.f32.gmra.mxu0 %v330
      %v546 = vpop.f32.mrf.mxu0
      %v547 = vadd.f32 0.0, %v546
      %v548 = vpop.f32.mrf.mxu0
      %v549 = vadd.f32 0.0, %v548
      %550 = vmatprep.mubr.f32.mxu0 0.0
      %551 = vmatmul.mubr.f32.gmra.mxu0 %v333
      %v552 = vpop.f32.mrf.mxu0
      %v553 = vadd.f32 0.0, %v552
      %v554 = vpop.f32.mrf.mxu0
      %v555 = vadd.f32 0.0, %v554
      %556 = vmatprep.mubr.f32.mxu0 0.0
      %557 = vmatmul.mubr.f32.gmra.mxu0 %v336
      %v558 = vpop.f32.mrf.mxu0
      %v559 = vadd.f32 0.0, %v558
      %v560 = vpop.f32.mrf.mxu0
      %v561 = vadd.f32 0.0, %v560
      %562 = vmatprep.mubr.f32.mxu0 0.0
      %563 = vmatmul.mubr.f32.gmra.mxu0 %v339
      %v564 = vpop.f32.mrf.mxu0
      %v565 = vadd.f32 0.0, %v564
      %v566 = vpop.f32.mrf.mxu0
      %v567 = vadd.f32 0.0, %v566
      %568 = vmatprep.mubr.f32.mxu0 0.0
      %569 = vmatmul.mubr.f32.gmra.mxu0 %v342
      %v570 = vpop.f32.mrf.mxu0
      %v571 = vadd.f32 0.0, %v570
      %v572 = vpop.f32.mrf.mxu0
      %v573 = vadd.f32 0.0, %v572
      %574 = vmatprep.mubr.f32.mxu0 0.0
      %575 = vmatmul.mubr.f32.gmra.mxu0 %v345
      %v576 = vpop.f32.mrf.mxu0
      %v577 = vadd.f32 0.0, %v576
      %v578 = vpop.f32.mrf.mxu0
      %v579 = vadd.f32 0.0, %v578
      %580 = vmatprep.mubr.f32.mxu0 0.0
      %581 = vmatmul.mubr.f32.gmra.mxu0 %v348
      %v582 = vpop.f32.mrf.mxu0
      %v583 = vadd.f32 0.0, %v582
      %v584 = vpop.f32.mrf.mxu0
      %v585 = vadd.f32 0.0, %v584
      %586 = vmatprep.mubr.f32.mxu0 0.0
      %587 = vmatmul.mubr.f32.gmra.mxu0 %v351
      %v588 = vpop.f32.mrf.mxu0
      %v589 = vadd.f32 0.0, %v588
      %v590 = vpop.f32.mrf.mxu0
      %v591 = vadd.f32 0.0, %v590
      %592 = vmatprep.mubr.f32.mxu0 0.0
      %593 = vmatmul.mubr.f32.gmra.mxu0 %v354
      %v594 = vpop.f32.mrf.mxu0
      %v595 = vadd.f32 0.0, %v594
      %v596 = vpop.f32.mrf.mxu0
      %v597 = vadd.f32 0.0, %v596
      %598 = vmatprep.mubr.f32.mxu0 0.0
      %599 = vmatmul.mubr.f32.gmra.mxu0 %v357
      %v600 = vpop.f32.mrf.mxu0
      %v601 = vadd.f32 0.0, %v600
      %v602 = vpop.f32.mrf.mxu0
      %v603 = vadd.f32 0.0, %v602
      %604 = vmatprep.mubr.f32.mxu0 0.0
      %605 = vmatmul.mubr.f32.gmra.mxu0 %v360
      %v606 = vpop.f32.mrf.mxu0
      %v607 = vadd.f32 0.0, %v606
      %v608 = vpop.f32.mrf.mxu0
      %v609 = vadd.f32 0.0, %v608
      %610 = vmatprep.mubr.f32.mxu0 0.0
      %611 = vmatmul.mubr.f32.gmra.mxu0 %v363
      %v612 = vpop.f32.mrf.mxu0
      %v613 = vadd.f32 0.0, %v612
      %v614 = vpop.f32.mrf.mxu0
      %v615 = vadd.f32 0.0, %v614
      %616 = vmatprep.mubr.f32.mxu0 0.0
      %617 = vmatmul.mubr.f32.gmra.mxu0 %v366
      %v618 = vpop.f32.mrf.mxu0
      %v619 = vadd.f32 0.0, %v618
      %v620 = vpop.f32.mrf.mxu0
      %v621 = vadd.f32 0.0, %v620
      %622 = vmatprep.mubr.f32.mxu0 0.0
      %623 = vmatmul.mubr.f32.gmra.mxu0 %v369
      %v624 = vpop.f32.mrf.mxu0
      %v625 = vadd.f32 0.0, %v624
      %v626 = vpop.f32.mrf.mxu0
      %v627 = vadd.f32 0.0, %v626
      %628 = vmatprep.mubr.f32.mxu0 0.0
      %629 = vmatmul.mubr.f32.gmra.mxu0 %v372
      %v630 = vpop.f32.mrf.mxu0
      %v631 = vadd.f32 0.0, %v630
      %v632 = vpop.f32.mrf.mxu0
      %v633 = vadd.f32 0.0, %v632
      %634 = vmatprep.mubr.f32.mxu0 0.0
      %635 = vmatmul.mubr.f32.gmra.mxu0 %v375
      %v636 = vpop.f32.mrf.mxu0
      %v637 = vadd.f32 0.0, %v636
      %v638 = vpop.f32.mrf.mxu0
      %v639 = vadd.f32 0.0, %v638
      %640 = vmatprep.mubr.f32.mxu0 0.0
      %641 = vmatmul.mubr.f32.gmra.mxu0 %v378
      %v642 = vpop.f32.mrf.mxu0
      %v643 = vadd.f32 0.0, %v642
      %v644 = vpop.f32.mrf.mxu0
      %v645 = vadd.f32 0.0, %v644
      %646 = vmatprep.mubr.f32.mxu0 0.0
      %647 = vmatmul.mubr.f32.gmra.mxu0 %v381
      %v648 = vpop.f32.mrf.mxu0
      %v649 = vadd.f32 0.0, %v648
      %v650 = vpop.f32.mrf.mxu0
      %v651 = vadd.f32 0.0, %v650
      %652 = vmatprep.mubr.f32.mxu0 0.0
      %653 = vmatmul.mubr.f32.gmra.mxu0 %v384
      %v654 = vpop.f32.mrf.mxu0
      %v655 = vadd.f32 0.0, %v654
      %v656 = vpop.f32.mrf.mxu0
      %v657 = vadd.f32 0.0, %v656
      %658 = vmatprep.mubr.f32.mxu0 0.0
      %659 = vmatmul.mubr.f32.gmra.mxu0 %v387
      %v660 = vpop.f32.mrf.mxu0
      %v661 = vadd.f32 0.0, %v660
      %v662 = vpop.f32.mrf.mxu0
      %v663 = vadd.f32 0.0, %v662
      %664 = vmatprep.mubr.f32.mxu0 0.0
      %665 = vmatmul.mubr.f32.gmra.mxu0 %v390
      %v666 = vpop.f32.mrf.mxu0
      %v667 = vadd.f32 0.0, %v666
      %v668 = vpop.f32.mrf.mxu0
      %v669 = vadd.f32 0.0, %v668
      %670 = vmatprep.mubr.f32.mxu0 0.0
      %671 = vmatmul.mubr.f32.gmra.mxu0 %v393
      %v672 = vpop.f32.mrf.mxu0
      %v673 = vadd.f32 0.0, %v672
      %v674 = vpop.f32.mrf.mxu0
      %v675 = vadd.f32 0.0, %v674
      %676 = vmatprep.mubr.f32.mxu0 0.0
      %677 = vmatmul.mubr.f32.gmra.mxu0 %v396
      %v678 = vpop.f32.mrf.mxu0
      %v679 = vadd.f32 0.0, %v678
      %v680 = vpop.f32.mrf.mxu0
      %v681 = vadd.f32 0.0, %v680
      %682 = vmatprep.mubr.f32.mxu0 0.0
      %683 = vmatmul.mubr.f32.gmra.mxu0 %v399
      %v684 = vpop.f32.mrf.mxu0
      %v685 = vadd.f32 0.0, %v684
      %v686 = vpop.f32.mrf.mxu0
      %v687 = vadd.f32 0.0, %v686
      %688 = vmatprep.mubr.f32.mxu0 0.0
      %689 = vmatmul.mubr.f32.gmra.mxu0 %v402
      %v690 = vpop.f32.mrf.mxu0
      %v691 = vadd.f32 0.0, %v690
      %v692 = vpop.f32.mrf.mxu0
      %v693 = vadd.f32 0.0, %v692
      %694 = vmatprep.mubr.f32.mxu0 0.0
      %695 = vmatmul.mubr.f32.gmra.mxu0 %v405
      %v696 = vpop.f32.mrf.mxu0
      %v697 = vadd.f32 0.0, %v696
      %v698 = vpop.f32.mrf.mxu0
      %v699 = vadd.f32 0.0, %v698
      %700 = vmatprep.mubr.f32.mxu0 0.0
      %701 = vmatmul.mubr.f32.gmra.mxu0 %v408
      %v702 = vpop.f32.mrf.mxu0
      %v703 = vadd.f32 0.0, %v702
      %v704 = vpop.f32.mrf.mxu0
      %v705 = vadd.f32 0.0, %v704
      %706 = vmatprep.mubr.f32.mxu0 0.0
      %707 = vmatmul.mubr.f32.gmra.mxu0 %v411
      %v708 = vpop.f32.mrf.mxu0
      %v709 = vadd.f32 0.0, %v708
      %v710 = vpop.f32.mrf.mxu0
      %v711 = vadd.f32 0.0, %v710
      %712 = vmatprep.mubr.f32.mxu0 0.0
      %713 = vmatmul.mubr.f32.gmra.mxu0 %v414
      %v714 = vpop.f32.mrf.mxu0
      %v715 = vadd.f32 0.0, %v714
      %v716 = vpop.f32.mrf.mxu0
      %v717 = vadd.f32 0.0, %v716
      %718 = vmatprep.mubr.f32.mxu0 0.0
      %719 = vmatmul.mubr.f32.gmra.mxu0 %v417
      %v720 = vpop.f32.mrf.mxu0
      %v721 = vadd.f32 0.0, %v720
      %v722 = vpop.f32.mrf.mxu0
      %v723 = vadd.f32 0.0, %v722
      %724 = vmatprep.mubr.f32.mxu0 0.0
      %725 = vmatmul.mubr.f32.gmra.mxu0 %v420
      %v726 = vpop.f32.mrf.mxu0
      %v727 = vadd.f32 0.0, %v726
      %v728 = vpop.f32.mrf.mxu0
      %v729 = vadd.f32 0.0, %v728
      %730 = vmatprep.mubr.f32.mxu0 0.0
      %731 = vmatmul.mubr.f32.gmra.mxu0 %v423
      %v732 = vpop.f32.mrf.mxu0
      %v733 = vadd.f32 0.0, %v732
      %v734 = vpop.f32.mrf.mxu0
      %v735 = vadd.f32 0.0, %v734
      %736 = vmatprep.mubr.f32.mxu0 0.0
      %737 = vmatmul.mubr.f32.gmra.mxu0 %v426
      %v738 = vpop.f32.mrf.mxu0
      %v739 = vadd.f32 0.0, %v738
      %v740 = vpop.f32.mrf.mxu0
      %v741 = vadd.f32 0.0, %v740
      %742 = vmatprep.mubr.f32.mxu0 0.0
      %743 = vmatmul.mubr.f32.gmra.mxu0 %v429
      %v744 = vpop.f32.mrf.mxu0
      %v745 = vadd.f32 0.0, %v744
      %v746 = vpop.f32.mrf.mxu0
      %v747 = vadd.f32 0.0, %v746
      %748 = vmatprep.mubr.f32.mxu0 0.0
      %749 = vmatmul.mubr.f32.gmra.mxu0 %v432
      %v750 = vpop.f32.mrf.mxu0
      %v751 = vadd.f32 0.0, %v750
      %v752 = vpop.f32.mrf.mxu0
      %v753 = vadd.f32 0.0, %v752
      %754 = vmatprep.mubr.f32.mxu0 0.0
      %755 = vmatmul.mubr.f32.gmra.mxu0 %v435
      %v756 = vpop.f32.mrf.mxu0
      %v757 = vadd.f32 0.0, %v756
      %v758 = vpop.f32.mrf.mxu0
      %v759 = vadd.f32 0.0, %v758
      %760 = vmatprep.mubr.f32.mxu0 0.0
      %761 = vmatmul.mubr.f32.gmra.mxu0 %v438
      %v762 = vpop.f32.mrf.mxu0
      %v763 = vadd.f32 0.0, %v762
      %v764 = vpop.f32.mrf.mxu0
      %v765 = vadd.f32 0.0, %v764
      %766 = vmatprep.mubr.f32.mxu0 0.0
      %767 = vmatmul.mubr.f32.gmra.mxu0 %v441
      %v768 = vpop.f32.mrf.mxu0
      %v769 = vadd.f32 0.0, %v768
      %v770 = vpop.f32.mrf.mxu0
      %v771 = vadd.f32 0.0, %v770
      %772 = vmatprep.mubr.f32.mxu0 0.0
      %773 = vmatmul.mubr.f32.gmra.mxu0 %v444
      %v774 = vpop.f32.mrf.mxu0
      %v775 = vadd.f32 0.0, %v774
      %v776 = vpop.f32.mrf.mxu0
      %v777 = vadd.f32 0.0, %v776
      %778 = vmatprep.mubr.f32.mxu0 0.0
      %779 = vmatmul.mubr.f32.gmra.mxu0 %v447
      %v780 = vpop.f32.mrf.mxu0
      %v781 = vadd.f32 0.0, %v780
      %v782 = vpop.f32.mrf.mxu0
      %v783 = vadd.f32 0.0, %v782
      %784 = vmatprep.mubr.f32.mxu0 0.0
      %785 = vmatmul.mubr.f32.gmra.mxu0 %v450
      %v786 = vpop.f32.mrf.mxu0
      %v787 = vadd.f32 0.0, %v786
      %v788 = vpop.f32.mrf.mxu0
      %v789 = vadd.f32 0.0, %v788
      %790 = vmatprep.mubr.f32.mxu0 0.0
      %791 = vmatmul.mubr.f32.gmra.mxu0 %v453
      %v792 = vpop.f32.mrf.mxu0
      %v793 = vadd.f32 0.0, %v792
      %v794 = vpop.f32.mrf.mxu0
      %v795 = vadd.f32 0.0, %v794
      %796 = vmatprep.mubr.f32.mxu0 0.0
      %797 = vmatmul.mubr.f32.gmra.mxu0 %v456
      %v798 = vpop.f32.mrf.mxu0
      %v799 = vadd.f32 0.0, %v798
      %v800 = vpop.f32.mrf.mxu0
      %v801 = vadd.f32 0.0, %v800
      %802 = vmatprep.mubr.f32.mxu0 0.0
      %803 = vmatmul.mubr.f32.gmra.mxu0 %v459
      %v804 = vpop.f32.mrf.mxu0
      %v805 = vadd.f32 0.0, %v804
      %v806 = vpop.f32.mrf.mxu0
      %v807 = vadd.f32 0.0, %v806
      %808 = vmatprep.mubr.f32.mxu0 0.0
      %809 = vmatmul.mubr.f32.gmra.mxu0 %v462
      %v810 = vpop.f32.mrf.mxu0
      %v811 = vadd.f32 0.0, %v810
      %v812 = vpop.f32.mrf.mxu0
      %v813 = vadd.f32 0.0, %v812
      %814 = vmatprep.mubr.f32.mxu0 0.0
      %815 = vmatmul.mubr.f32.gmra.mxu0 %v465
      %v816 = vpop.f32.mrf.mxu0
      %v817 = vadd.f32 0.0, %v816
      %v818 = vpop.f32.mrf.mxu0
      %v819 = vadd.f32 0.0, %v818
      %820 = vmatprep.mubr.f32.mxu0 0.0
      %821 = vmatmul.mubr.f32.gmra.mxu0 %v468
      %v822 = vpop.f32.mrf.mxu0
      %v823 = vadd.f32 0.0, %v822
      %v824 = vpop.f32.mrf.mxu0
      %v825 = vadd.f32 0.0, %v824
      %826 = vmatprep.mubr.f32.mxu0 0.0
      %827 = vmatmul.mubr.f32.gmra.mxu0 %v471
      %v828 = vpop.f32.mrf.mxu0
      %v829 = vadd.f32 0.0, %v828
      %v830 = vpop.f32.mrf.mxu0
      %v831 = vadd.f32 0.0, %v830
      %832 = vdwg.mxu0
      %v834 = vsel %vm328, %v255, 0
      %v837 = vsel %vm328, %v256, 0
      %v840 = vsel %vm473, %v317, 0
      %v843 = vsel %vm473, %v318, 0
      %845 = vmatprep.subr.mxu0 0.0
      %846 = vmatpush1.msra.mxu0 0.0
      %847 = vmatprep.subr.mxu0 0.0
      %848 = vmatpush1.msra.mxu0 0.0
      %849 = vmatprep.subr.mxu0 0.0
      %850 = vmatpush1.msra.mxu0 0.0
      %851 = vmatprep.subr.mxu0 0.0
      %852 = vmatpush1.msra.mxu0 0.0
      %853 = vmatprep.subr.mxu0 0.0
      %854 = vmatpush1.msra.mxu0 0.0
      %855 = vmatprep.subr.mxu0 0.0
      %856 = vmatpush1.msra.mxu0 0.0
      %857 = vmatprep.subr.mxu0 0.0
      %858 = vmatpush1.msra.mxu0 0.0
      %859 = vmatprep.subr.mxu0 0.0
      %860 = vmatpush1.msra.mxu0 0.0
      %861 = vmatprep.subr.mxu0 0.0
      %862 = vmatpush1.msra.mxu0 0.0
      %863 = vmatprep.subr.mxu0 0.0
      %864 = vmatpush1.msra.mxu0 0.0
      %865 = vmatprep.subr.mxu0 0.0
      %866 = vmatpush1.msra.mxu0 0.0
      %867 = vmatprep.subr.mxu0 0.0
      %868 = vmatpush1.msra.mxu0 0.0
      %869 = vmatprep.subr.mxu0 %v843
      %870 = vmatpush1.msra.mxu0 %v840
      %871 = vmatprep.subr.mxu0 %v316
      %872 = vmatpush1.msra.mxu0 %v315
      %873 = vmatprep.subr.mxu0 %v314
      %874 = vmatpush1.msra.mxu0 %v313
      %875 = vmatprep.subr.mxu0 %v312
      %876 = vmatpush1.msra.mxu0 %v311
      %877 = vmatprep.subr.mxu0 0.0
      %878 = vmatpush2.msra.mxu0 0.0
      %879 = vmatprep.subr.mxu0 0.0
      %880 = vmatpush2.msra.mxu0 0.0
      %881 = vmatprep.subr.mxu0 0.0
      %882 = vmatpush2.msra.mxu0 0.0
      %883 = vmatprep.subr.mxu0 0.0
      %884 = vmatpush2.msra.mxu0 0.0
      %885 = vmatprep.subr.mxu0 0.0
      %886 = vmatpush2.msra.mxu0 0.0
      %887 = vmatprep.subr.mxu0 0.0
      %888 = vmatpush2.msra.mxu0 0.0
      %889 = vmatprep.subr.mxu0 0.0
      %890 = vmatpush2.msra.mxu0 0.0
      %891 = vmatprep.subr.mxu0 0.0
      %892 = vmatpush2.msra.mxu0 0.0
      %893 = vmatprep.subr.mxu0 0.0
      %894 = vmatpush2.msra.mxu0 0.0
      %895 = vmatprep.subr.mxu0 0.0
      %896 = vmatpush2.msra.mxu0 0.0
      %897 = vmatprep.subr.mxu0 0.0
      %898 = vmatpush2.msra.mxu0 0.0
      %899 = vmatprep.subr.mxu0 0.0
      %900 = vmatpush2.msra.mxu0 0.0
      %901 = vmatprep.subr.mxu0 0.0
      %902 = vmatpush2.msra.mxu0 0.0
      %903 = vmatprep.subr.mxu0 0.0
      %904 = vmatpush2.msra.mxu0 0.0
      %905 = vmatprep.subr.mxu0 0.0
      %906 = vmatpush2.msra.mxu0 0.0
      %907 = vmatprep.subr.mxu0 0.0
      %908 = vmatpush2.msra.mxu0 0.0
      %909 = vmatprep.mubr.f32.mxu0 0.0
      %910 = vmatmul.mubr.f32.gmra.mxu0 %v834
      %v911 = vpop.f32.mrf.mxu0
      %v912 = vadd.f32 %v547, %v911
      %v913 = vpop.f32.mrf.mxu0
      %v914 = vadd.f32 %v549, %v913
      %915 = vmatprep.mubr.f32.mxu0 0.0
      %916 = vmatmul.mubr.f32.gmra.mxu0 %v837
      %v917 = vpop.f32.mrf.mxu0
      %v918 = vadd.f32 %v553, %v917
      %v919 = vpop.f32.mrf.mxu0
      %v920 = vadd.f32 %v555, %v919
      %921 = vmatprep.mubr.f32.mxu0 0.0
      %922 = vmatmul.mubr.f32.gmra.mxu0 %v330
      %v923 = vpop.f32.mrf.mxu0
      %v924 = vadd.f32 %v559, %v923
      %v925 = vpop.f32.mrf.mxu0
      %v926 = vadd.f32 %v561, %v925
      %927 = vmatprep.mubr.f32.mxu0 0.0
      %928 = vmatmul.mubr.f32.gmra.mxu0 %v333
      %v929 = vpop.f32.mrf.mxu0
      %v930 = vadd.f32 %v565, %v929
      %v931 = vpop.f32.mrf.mxu0
      %v932 = vadd.f32 %v567, %v931
      %933 = vmatprep.mubr.f32.mxu0 0.0
      %934 = vmatmul.mubr.f32.gmra.mxu0 %v336
      %v935 = vpop.f32.mrf.mxu0
      %v936 = vadd.f32 %v571, %v935
      %v937 = vpop.f32.mrf.mxu0
      %v938 = vadd.f32 %v573, %v937
      %939 = vmatprep.mubr.f32.mxu0 0.0
      %940 = vmatmul.mubr.f32.gmra.mxu0 %v339
      %v941 = vpop.f32.mrf.mxu0
      %v942 = vadd.f32 %v577, %v941
      %v943 = vpop.f32.mrf.mxu0
      %v944 = vadd.f32 %v579, %v943
      %945 = vmatprep.mubr.f32.mxu0 0.0
      %946 = vmatmul.mubr.f32.gmra.mxu0 %v342
      %v947 = vpop.f32.mrf.mxu0
      %v948 = vadd.f32 %v583, %v947
      %v949 = vpop.f32.mrf.mxu0
      %v950 = vadd.f32 %v585, %v949
      %951 = vmatprep.mubr.f32.mxu0 0.0
      %952 = vmatmul.mubr.f32.gmra.mxu0 %v345
      %v953 = vpop.f32.mrf.mxu0
      %v954 = vadd.f32 %v589, %v953
      %v955 = vpop.f32.mrf.mxu0
      %v956 = vadd.f32 %v591, %v955
      %957 = vmatprep.mubr.f32.mxu0 0.0
      %958 = vmatmul.mubr.f32.gmra.mxu0 %v348
      %v959 = vpop.f32.mrf.mxu0
      %v960 = vadd.f32 %v595, %v959
      %v961 = vpop.f32.mrf.mxu0
      %v962 = vadd.f32 %v597, %v961
      %963 = vmatprep.mubr.f32.mxu0 0.0
      %964 = vmatmul.mubr.f32.gmra.mxu0 %v351
      %v965 = vpop.f32.mrf.mxu0
      %v966 = vadd.f32 %v601, %v965
      %v967 = vpop.f32.mrf.mxu0
      %v968 = vadd.f32 %v603, %v967
      %969 = vmatprep.mubr.f32.mxu0 0.0
      %970 = vmatmul.mubr.f32.gmra.mxu0 %v354
      %v971 = vpop.f32.mrf.mxu0
      %v972 = vadd.f32 %v607, %v971
      %v973 = vpop.f32.mrf.mxu0
      %v974 = vadd.f32 %v609, %v973
      %975 = vmatprep.mubr.f32.mxu0 0.0
      %976 = vmatmul.mubr.f32.gmra.mxu0 %v357
      %v977 = vpop.f32.mrf.mxu0
      %v978 = vadd.f32 %v613, %v977
      %v979 = vpop.f32.mrf.mxu0
      %v980 = vadd.f32 %v615, %v979
      %981 = vmatprep.mubr.f32.mxu0 0.0
      %982 = vmatmul.mubr.f32.gmra.mxu0 %v360
      %v983 = vpop.f32.mrf.mxu0
      %v984 = vadd.f32 %v619, %v983
      %v985 = vpop.f32.mrf.mxu0
      %v986 = vadd.f32 %v621, %v985
      %987 = vmatprep.mubr.f32.mxu0 0.0
      %988 = vmatmul.mubr.f32.gmra.mxu0 %v363
      %v989 = vpop.f32.mrf.mxu0
      %v990 = vadd.f32 %v625, %v989
      %v991 = vpop.f32.mrf.mxu0
      %v992 = vadd.f32 %v627, %v991
      %993 = vmatprep.mubr.f32.mxu0 0.0
      %994 = vmatmul.mubr.f32.gmra.mxu0 %v366
      %v995 = vpop.f32.mrf.mxu0
      %v996 = vadd.f32 %v631, %v995
      %v997 = vpop.f32.mrf.mxu0
      %v998 = vadd.f32 %v633, %v997
      %999 = vmatprep.mubr.f32.mxu0 0.0
      %1000 = vmatmul.mubr.f32.gmra.mxu0 %v369
      %v1001 = vpop.f32.mrf.mxu0
      %v1002 = vadd.f32 %v637, %v1001
      %v1003 = vpop.f32.mrf.mxu0
      %v1004 = vadd.f32 %v639, %v1003
      %1005 = vmatprep.mubr.f32.mxu0 0.0
      %1006 = vmatmul.mubr.f32.gmra.mxu0 %v372
      %v1007 = vpop.f32.mrf.mxu0
      %v1008 = vadd.f32 %v643, %v1007
      %v1009 = vpop.f32.mrf.mxu0
      %v1010 = vadd.f32 %v645, %v1009
      %1011 = vmatprep.mubr.f32.mxu0 0.0
      %1012 = vmatmul.mubr.f32.gmra.mxu0 %v375
      %v1013 = vpop.f32.mrf.mxu0
      %v1014 = vadd.f32 %v649, %v1013
      %v1015 = vpop.f32.mrf.mxu0
      %v1016 = vadd.f32 %v651, %v1015
      %1017 = vmatprep.mubr.f32.mxu0 0.0
      %1018 = vmatmul.mubr.f32.gmra.mxu0 %v378
      %v1019 = vpop.f32.mrf.mxu0
      %v1020 = vadd.f32 %v655, %v1019
      %v1021 = vpop.f32.mrf.mxu0
      %v1022 = vadd.f32 %v657, %v1021
      %1023 = vmatprep.mubr.f32.mxu0 0.0
      %1024 = vmatmul.mubr.f32.gmra.mxu0 %v381
      %v1025 = vpop.f32.mrf.mxu0
      %v1026 = vadd.f32 %v661, %v1025
      %v1027 = vpop.f32.mrf.mxu0
      %v1028 = vadd.f32 %v663, %v1027
      %1029 = vmatprep.mubr.f32.mxu0 0.0
      %1030 = vmatmul.mubr.f32.gmra.mxu0 %v384
      %v1031 = vpop.f32.mrf.mxu0
      %v1032 = vadd.f32 %v667, %v1031
      %v1033 = vpop.f32.mrf.mxu0
      %v1034 = vadd.f32 %v669, %v1033
      %1035 = vmatprep.mubr.f32.mxu0 0.0
      %1036 = vmatmul.mubr.f32.gmra.mxu0 %v387
      %v1037 = vpop.f32.mrf.mxu0
      %v1038 = vadd.f32 %v673, %v1037
      %v1039 = vpop.f32.mrf.mxu0
      %v1040 = vadd.f32 %v675, %v1039
      %1041 = vmatprep.mubr.f32.mxu0 0.0
      %1042 = vmatmul.mubr.f32.gmra.mxu0 %v390
      %v1043 = vpop.f32.mrf.mxu0
      %v1044 = vadd.f32 %v679, %v1043
      %v1045 = vpop.f32.mrf.mxu0
      %v1046 = vadd.f32 %v681, %v1045
      %1047 = vmatprep.mubr.f32.mxu0 0.0
      %1048 = vmatmul.mubr.f32.gmra.mxu0 %v393
      %v1049 = vpop.f32.mrf.mxu0
      %v1050 = vadd.f32 %v685, %v1049
      %v1051 = vpop.f32.mrf.mxu0
      %v1052 = vadd.f32 %v687, %v1051
      %1053 = vmatprep.mubr.f32.mxu0 0.0
      %1054 = vmatmul.mubr.f32.gmra.mxu0 %v396
      %v1055 = vpop.f32.mrf.mxu0
      %v1056 = vadd.f32 %v691, %v1055
      %v1057 = vpop.f32.mrf.mxu0
      %v1058 = vadd.f32 %v693, %v1057
      %1059 = vmatprep.mubr.f32.mxu0 0.0
      %1060 = vmatmul.mubr.f32.gmra.mxu0 %v399
      %v1061 = vpop.f32.mrf.mxu0
      %v1062 = vadd.f32 %v697, %v1061
      %v1063 = vpop.f32.mrf.mxu0
      %v1064 = vadd.f32 %v699, %v1063
      %1065 = vmatprep.mubr.f32.mxu0 0.0
      %1066 = vmatmul.mubr.f32.gmra.mxu0 %v402
      %v1067 = vpop.f32.mrf.mxu0
      %v1068 = vadd.f32 %v703, %v1067
      %v1069 = vpop.f32.mrf.mxu0
      %v1070 = vadd.f32 %v705, %v1069
      %1071 = vmatprep.mubr.f32.mxu0 0.0
      %1072 = vmatmul.mubr.f32.gmra.mxu0 %v405
      %v1073 = vpop.f32.mrf.mxu0
      %v1074 = vadd.f32 %v709, %v1073
      %v1075 = vpop.f32.mrf.mxu0
      %v1076 = vadd.f32 %v711, %v1075
      %1077 = vmatprep.mubr.f32.mxu0 0.0
      %1078 = vmatmul.mubr.f32.gmra.mxu0 %v408
      %v1079 = vpop.f32.mrf.mxu0
      %v1080 = vadd.f32 %v715, %v1079
      %v1081 = vpop.f32.mrf.mxu0
      %v1082 = vadd.f32 %v717, %v1081
      %1083 = vmatprep.mubr.f32.mxu0 0.0
      %1084 = vmatmul.mubr.f32.gmra.mxu0 %v411
      %v1085 = vpop.f32.mrf.mxu0
      %v1086 = vadd.f32 %v721, %v1085
      %v1087 = vpop.f32.mrf.mxu0
      %v1088 = vadd.f32 %v723, %v1087
      %1089 = vmatprep.mubr.f32.mxu0 0.0
      %1090 = vmatmul.mubr.f32.gmra.mxu0 %v414
      %v1091 = vpop.f32.mrf.mxu0
      %v1092 = vadd.f32 %v727, %v1091
      %v1093 = vpop.f32.mrf.mxu0
      %v1094 = vadd.f32 %v729, %v1093
      %1095 = vmatprep.mubr.f32.mxu0 0.0
      %1096 = vmatmul.mubr.f32.gmra.mxu0 %v417
      %v1097 = vpop.f32.mrf.mxu0
      %v1098 = vadd.f32 %v733, %v1097
      %v1099 = vpop.f32.mrf.mxu0
      %v1100 = vadd.f32 %v735, %v1099
      %1101 = vmatprep.mubr.f32.mxu0 0.0
      %1102 = vmatmul.mubr.f32.gmra.mxu0 %v420
      %v1103 = vpop.f32.mrf.mxu0
      %v1104 = vadd.f32 %v739, %v1103
      %v1105 = vpop.f32.mrf.mxu0
      %v1106 = vadd.f32 %v741, %v1105
      %1107 = vmatprep.mubr.f32.mxu0 0.0
      %1108 = vmatmul.mubr.f32.gmra.mxu0 %v423
      %v1109 = vpop.f32.mrf.mxu0
      %v1110 = vadd.f32 %v745, %v1109
      %v1111 = vpop.f32.mrf.mxu0
      %v1112 = vadd.f32 %v747, %v1111
      %1113 = vmatprep.mubr.f32.mxu0 0.0
      %1114 = vmatmul.mubr.f32.gmra.mxu0 %v426
      %v1115 = vpop.f32.mrf.mxu0
      %v1116 = vadd.f32 %v751, %v1115
      %v1117 = vpop.f32.mrf.mxu0
      %v1118 = vadd.f32 %v753, %v1117
      %1119 = vmatprep.mubr.f32.mxu0 0.0
      %1120 = vmatmul.mubr.f32.gmra.mxu0 %v429
      %v1121 = vpop.f32.mrf.mxu0
      %v1122 = vadd.f32 %v757, %v1121
      %v1123 = vpop.f32.mrf.mxu0
      %v1124 = vadd.f32 %v759, %v1123
      %1125 = vmatprep.mubr.f32.mxu0 0.0
      %1126 = vmatmul.mubr.f32.gmra.mxu0 %v432
      %v1127 = vpop.f32.mrf.mxu0
      %v1128 = vadd.f32 %v763, %v1127
      %v1129 = vpop.f32.mrf.mxu0
      %v1130 = vadd.f32 %v765, %v1129
      %1131 = vmatprep.mubr.f32.mxu0 0.0
      %1132 = vmatmul.mubr.f32.gmra.mxu0 %v435
      %v1133 = vpop.f32.mrf.mxu0
      %v1134 = vadd.f32 %v769, %v1133
      %v1135 = vpop.f32.mrf.mxu0
      %v1136 = vadd.f32 %v771, %v1135
      %1137 = vmatprep.mubr.f32.mxu0 0.0
      %1138 = vmatmul.mubr.f32.gmra.mxu0 %v438
      %v1139 = vpop.f32.mrf.mxu0
      %v1140 = vadd.f32 %v775, %v1139
      %v1141 = vpop.f32.mrf.mxu0
      %v1142 = vadd.f32 %v777, %v1141
      %1143 = vmatprep.mubr.f32.mxu0 0.0
      %1144 = vmatmul.mubr.f32.gmra.mxu0 %v441
      %v1145 = vpop.f32.mrf.mxu0
      %v1146 = vadd.f32 %v781, %v1145
      %v1147 = vpop.f32.mrf.mxu0
      %v1148 = vadd.f32 %v783, %v1147
      %1149 = vmatprep.mubr.f32.mxu0 0.0
      %1150 = vmatmul.mubr.f32.gmra.mxu0 %v444
      %v1151 = vpop.f32.mrf.mxu0
      %v1152 = vadd.f32 %v787, %v1151
      %v1153 = vpop.f32.mrf.mxu0
      %v1154 = vadd.f32 %v789, %v1153
      %1155 = vmatprep.mubr.f32.mxu0 0.0
      %1156 = vmatmul.mubr.f32.gmra.mxu0 %v447
      %v1157 = vpop.f32.mrf.mxu0
      %v1158 = vadd.f32 %v793, %v1157
      %v1159 = vpop.f32.mrf.mxu0
      %v1160 = vadd.f32 %v795, %v1159
      %1161 = vmatprep.mubr.f32.mxu0 0.0
      %1162 = vmatmul.mubr.f32.gmra.mxu0 %v450
      %v1163 = vpop.f32.mrf.mxu0
      %v1164 = vadd.f32 %v799, %v1163
      %v1165 = vpop.f32.mrf.mxu0
      %v1166 = vadd.f32 %v801, %v1165
      %1167 = vmatprep.mubr.f32.mxu0 0.0
      %1168 = vmatmul.mubr.f32.gmra.mxu0 %v453
      %v1169 = vpop.f32.mrf.mxu0
      %v1170 = vadd.f32 %v805, %v1169
      %v1171 = vpop.f32.mrf.mxu0
      %v1172 = vadd.f32 %v807, %v1171
      %1173 = vmatprep.mubr.f32.mxu0 0.0
      %1174 = vmatmul.mubr.f32.gmra.mxu0 %v456
      %v1175 = vpop.f32.mrf.mxu0
      %v1176 = vadd.f32 %v811, %v1175
      %v1177 = vpop.f32.mrf.mxu0
      %v1178 = vadd.f32 %v813, %v1177
      %1179 = vmatprep.mubr.f32.mxu0 0.0
      %1180 = vmatmul.mubr.f32.gmra.mxu0 %v459
      %v1181 = vpop.f32.mrf.mxu0
      %v1182 = vadd.f32 %v817, %v1181
      %v1183 = vpop.f32.mrf.mxu0
      %v1184 = vadd.f32 %v819, %v1183
      %1185 = vmatprep.mubr.f32.mxu0 0.0
      %1186 = vmatmul.mubr.f32.gmra.mxu0 %v462
      %v1187 = vpop.f32.mrf.mxu0
      %v1188 = vadd.f32 %v823, %v1187
      %v1189 = vpop.f32.mrf.mxu0
      %v1190 = vadd.f32 %v825, %v1189
      %1191 = vmatprep.mubr.f32.mxu0 0.0
      %1192 = vmatmul.mubr.f32.gmra.mxu0 %v465
      %v1193 = vpop.f32.mrf.mxu0
      %v1194 = vadd.f32 %v829, %v1193
      %v1195 = vpop.f32.mrf.mxu0
      %v1196 = vadd.f32 %v831, %v1195
      %1197 = vdwg.mxu0
      %s1198 = scalar_lea.vmem %s1, 128
      %v1199 = vld [vmem:[%s1198] sm:$0xff]
      %v1200 = vld [vmem:[%s1198 + $0x8] sm:$0xff]
      %v1201 = vld [vmem:[%s1198 + $0x10] sm:$0xff]
      %v1202 = vld [vmem:[%s1198 + $0x18] sm:$0xff]
      %v1203 = vld [vmem:[%s1198 + $0x20] sm:$0xff]
      %v1204 = vld [vmem:[%s1198 + $0x28] sm:$0xff]
      %v1205 = vld [vmem:[%s1198 + $0x30] sm:$0xf]
      %v1206 = vld [vmem:[%s1198 + $0x38] sm:$0xf]
      %v1208 = vsel %vm328, %v305, 0
      %v1211 = vsel %vm328, %v306, 0
      %v1214 = vsel %vm473, %v1205, 0
      %v1217 = vsel %vm473, %v1206, 0
      %1219 = vmatprep.subr.mxu0 0.0
      %1220 = vmatpush1.msra.mxu0 0.0
      %1221 = vmatprep.subr.mxu0 0.0
      %1222 = vmatpush1.msra.mxu0 0.0
      %1223 = vmatprep.subr.mxu0 0.0
      %1224 = vmatpush1.msra.mxu0 0.0
      %1225 = vmatprep.subr.mxu0 0.0
      %1226 = vmatpush1.msra.mxu0 0.0
      %1227 = vmatprep.subr.mxu0 0.0
      %1228 = vmatpush1.msra.mxu0 0.0
      %1229 = vmatprep.subr.mxu0 0.0
      %1230 = vmatpush1.msra.mxu0 0.0
      %1231 = vmatprep.subr.mxu0 0.0
      %1232 = vmatpush1.msra.mxu0 0.0
      %1233 = vmatprep.subr.mxu0 0.0
      %1234 = vmatpush1.msra.mxu0 0.0
      %1235 = vmatprep.subr.mxu0 0.0
      %1236 = vmatpush1.msra.mxu0 0.0
      %1237 = vmatprep.subr.mxu0 0.0
      %1238 = vmatpush1.msra.mxu0 0.0
      %1239 = vmatprep.subr.mxu0 0.0
      %1240 = vmatpush1.msra.mxu0 0.0
      %1241 = vmatprep.subr.mxu0 0.0
      %1242 = vmatpush1.msra.mxu0 0.0
      %1243 = vmatprep.subr.mxu0 %v1217
      %1244 = vmatpush1.msra.mxu0 %v1214
      %1245 = vmatprep.subr.mxu0 %v1204
      %1246 = vmatpush1.msra.mxu0 %v1203
      %1247 = vmatprep.subr.mxu0 %v1202
      %1248 = vmatpush1.msra.mxu0 %v1201
      %1249 = vmatprep.subr.mxu0 %v1200
      %1250 = vmatpush1.msra.mxu0 %v1199
      %1251 = vmatprep.subr.mxu0 0.0
      %1252 = vmatpush2.msra.mxu0 0.0
      %1253 = vmatprep.subr.mxu0 0.0
      %1254 = vmatpush2.msra.mxu0 0.0
      %1255 = vmatprep.subr.mxu0 0.0
      %1256 = vmatpush2.msra.mxu0 0.0
      %1257 = vmatprep.subr.mxu0 0.0
      %1258 = vmatpush2.msra.mxu0 0.0
      %1259 = vmatprep.subr.mxu0 0.0
      %1260 = vmatpush2.msra.mxu0 0.0
      %1261 = vmatprep.subr.mxu0 0.0
      %1262 = vmatpush2.msra.mxu0 0.0
      %1263 = vmatprep.subr.mxu0 0.0
      %1264 = vmatpush2.msra.mxu0 0.0
      %1265 = vmatprep.subr.mxu0 0.0
      %1266 = vmatpush2.msra.mxu0 0.0
      %1267 = vmatprep.subr.mxu0 0.0
      %1268 = vmatpush2.msra.mxu0 0.0
      %1269 = vmatprep.subr.mxu0 0.0
      %1270 = vmatpush2.msra.mxu0 0.0
      %1271 = vmatprep.subr.mxu0 0.0
      %1272 = vmatpush2.msra.mxu0 0.0
      %1273 = vmatprep.subr.mxu0 0.0
      %1274 = vmatpush2.msra.mxu0 0.0
      %1275 = vmatprep.subr.mxu0 0.0
      %1276 = vmatpush2.msra.mxu0 0.0
      %1277 = vmatprep.subr.mxu0 0.0
      %1278 = vmatpush2.msra.mxu0 0.0
      %1279 = vmatprep.subr.mxu0 0.0
      %1280 = vmatpush2.msra.mxu0 0.0
      %1281 = vmatprep.subr.mxu0 0.0
      %1282 = vmatpush2.msra.mxu0 0.0
      %1283 = vmatprep.mubr.f32.mxu0 0.0
      %1284 = vmatmul.mubr.f32.gmra.mxu0 %v336
      %v1285 = vpop.f32.mrf.mxu0
      %v1286 = vadd.f32 0.0, %v1285
      %v1287 = vpop.f32.mrf.mxu0
      %v1288 = vadd.f32 0.0, %v1287
      %1289 = vmatprep.mubr.f32.mxu0 0.0
      %1290 = vmatmul.mubr.f32.gmra.mxu0 %v339
      %v1291 = vpop.f32.mrf.mxu0
      %v1292 = vadd.f32 0.0, %v1291
      %v1293 = vpop.f32.mrf.mxu0
      %v1294 = vadd.f32 0.0, %v1293
      %1295 = vmatprep.mubr.f32.mxu0 0.0
      %1296 = vmatmul.mubr.f32.gmra.mxu0 %v342
      %v1297 = vpop.f32.mrf.mxu0
      %v1298 = vadd.f32 0.0, %v1297
      %v1299 = vpop.f32.mrf.mxu0
      %v1300 = vadd.f32 0.0, %v1299
      %1301 = vmatprep.mubr.f32.mxu0 0.0
      %1302 = vmatmul.mubr.f32.gmra.mxu0 %v345
      %v1303 = vpop.f32.mrf.mxu0
      %v1304 = vadd.f32 0.0, %v1303
      %v1305 = vpop.f32.mrf.mxu0
      %v1306 = vadd.f32 0.0, %v1305
      %1307 = vmatprep.mubr.f32.mxu0 0.0
      %1308 = vmatmul.mubr.f32.gmra.mxu0 %v348
      %v1309 = vpop.f32.mrf.mxu0
      %v1310 = vadd.f32 0.0, %v1309
      %v1311 = vpop.f32.mrf.mxu0
      %v1312 = vadd.f32 0.0, %v1311
      %1313 = vmatprep.mubr.f32.mxu0 0.0
      %1314 = vmatmul.mubr.f32.gmra.mxu0 %v351
      %v1315 = vpop.f32.mrf.mxu0
      %v1316 = vadd.f32 0.0, %v1315
      %v1317 = vpop.f32.mrf.mxu0
      %v1318 = vadd.f32 0.0, %v1317
      %1319 = vmatprep.mubr.f32.mxu0 0.0
      %1320 = vmatmul.mubr.f32.gmra.mxu0 %v354
      %v1321 = vpop.f32.mrf.mxu0
      %v1322 = vadd.f32 0.0, %v1321
      %v1323 = vpop.f32.mrf.mxu0
      %v1324 = vadd.f32 0.0, %v1323
      %1325 = vmatprep.mubr.f32.mxu0 0.0
      %1326 = vmatmul.mubr.f32.gmra.mxu0 %v357
      %v1327 = vpop.f32.mrf.mxu0
      %v1328 = vadd.f32 0.0, %v1327
      %v1329 = vpop.f32.mrf.mxu0
      %v1330 = vadd.f32 0.0, %v1329
      %1331 = vmatprep.mubr.f32.mxu0 0.0
      %1332 = vmatmul.mubr.f32.gmra.mxu0 %v360
      %v1333 = vpop.f32.mrf.mxu0
      %v1334 = vadd.f32 0.0, %v1333
      %v1335 = vpop.f32.mrf.mxu0
      %v1336 = vadd.f32 0.0, %v1335
      %1337 = vmatprep.mubr.f32.mxu0 0.0
      %1338 = vmatmul.mubr.f32.gmra.mxu0 %v363
      %v1339 = vpop.f32.mrf.mxu0
      %v1340 = vadd.f32 0.0, %v1339
      %v1341 = vpop.f32.mrf.mxu0
      %v1342 = vadd.f32 0.0, %v1341
      %1343 = vmatprep.mubr.f32.mxu0 0.0
      %1344 = vmatmul.mubr.f32.gmra.mxu0 %v366
      %v1345 = vpop.f32.mrf.mxu0
      %v1346 = vadd.f32 0.0, %v1345
      %v1347 = vpop.f32.mrf.mxu0
      %v1348 = vadd.f32 0.0, %v1347
      %1349 = vmatprep.mubr.f32.mxu0 0.0
      %1350 = vmatmul.mubr.f32.gmra.mxu0 %v369
      %v1351 = vpop.f32.mrf.mxu0
      %v1352 = vadd.f32 0.0, %v1351
      %v1353 = vpop.f32.mrf.mxu0
      %v1354 = vadd.f32 0.0, %v1353
      %1355 = vmatprep.mubr.f32.mxu0 0.0
      %1356 = vmatmul.mubr.f32.gmra.mxu0 %v372
      %v1357 = vpop.f32.mrf.mxu0
      %v1358 = vadd.f32 0.0, %v1357
      %v1359 = vpop.f32.mrf.mxu0
      %v1360 = vadd.f32 0.0, %v1359
      %1361 = vmatprep.mubr.f32.mxu0 0.0
      %1362 = vmatmul.mubr.f32.gmra.mxu0 %v375
      %v1363 = vpop.f32.mrf.mxu0
      %v1364 = vadd.f32 0.0, %v1363
      %v1365 = vpop.f32.mrf.mxu0
      %v1366 = vadd.f32 0.0, %v1365
      %1367 = vmatprep.mubr.f32.mxu0 0.0
      %1368 = vmatmul.mubr.f32.gmra.mxu0 %v378
      %v1369 = vpop.f32.mrf.mxu0
      %v1370 = vadd.f32 0.0, %v1369
      %v1371 = vpop.f32.mrf.mxu0
      %v1372 = vadd.f32 0.0, %v1371
      %1373 = vmatprep.mubr.f32.mxu0 0.0
      %1374 = vmatmul.mubr.f32.gmra.mxu0 %v381
      %v1375 = vpop.f32.mrf.mxu0
      %v1376 = vadd.f32 0.0, %v1375
      %v1377 = vpop.f32.mrf.mxu0
      %v1378 = vadd.f32 0.0, %v1377
      %1379 = vmatprep.mubr.f32.mxu0 0.0
      %1380 = vmatmul.mubr.f32.gmra.mxu0 %v384
      %v1381 = vpop.f32.mrf.mxu0
      %v1382 = vadd.f32 0.0, %v1381
      %v1383 = vpop.f32.mrf.mxu0
      %v1384 = vadd.f32 0.0, %v1383
      %1385 = vmatprep.mubr.f32.mxu0 0.0
      %1386 = vmatmul.mubr.f32.gmra.mxu0 %v387
      %v1387 = vpop.f32.mrf.mxu0
      %v1388 = vadd.f32 0.0, %v1387
      %v1389 = vpop.f32.mrf.mxu0
      %v1390 = vadd.f32 0.0, %v1389
      %1391 = vmatprep.mubr.f32.mxu0 0.0
      %1392 = vmatmul.mubr.f32.gmra.mxu0 %v390
      %v1393 = vpop.f32.mrf.mxu0
      %v1394 = vadd.f32 0.0, %v1393
      %v1395 = vpop.f32.mrf.mxu0
      %v1396 = vadd.f32 0.0, %v1395
      %1397 = vmatprep.mubr.f32.mxu0 0.0
      %1398 = vmatmul.mubr.f32.gmra.mxu0 %v393
      %v1399 = vpop.f32.mrf.mxu0
      %v1400 = vadd.f32 0.0, %v1399
      %v1401 = vpop.f32.mrf.mxu0
      %v1402 = vadd.f32 0.0, %v1401
      %1403 = vmatprep.mubr.f32.mxu0 0.0
      %1404 = vmatmul.mubr.f32.gmra.mxu0 %v396
      %v1405 = vpop.f32.mrf.mxu0
      %v1406 = vadd.f32 0.0, %v1405
      %v1407 = vpop.f32.mrf.mxu0
      %v1408 = vadd.f32 0.0, %v1407
      %1409 = vmatprep.mubr.f32.mxu0 0.0
      %1410 = vmatmul.mubr.f32.gmra.mxu0 %v399
      %v1411 = vpop.f32.mrf.mxu0
      %v1412 = vadd.f32 0.0, %v1411
      %v1413 = vpop.f32.mrf.mxu0
      %v1414 = vadd.f32 0.0, %v1413
      %1415 = vmatprep.mubr.f32.mxu0 0.0
      %1416 = vmatmul.mubr.f32.gmra.mxu0 %v402
      %v1417 = vpop.f32.mrf.mxu0
      %v1418 = vadd.f32 0.0, %v1417
      %v1419 = vpop.f32.mrf.mxu0
      %v1420 = vadd.f32 0.0, %v1419
      %1421 = vmatprep.mubr.f32.mxu0 0.0
      %1422 = vmatmul.mubr.f32.gmra.mxu0 %v405
      %v1423 = vpop.f32.mrf.mxu0
      %v1424 = vadd.f32 0.0, %v1423
      %v1425 = vpop.f32.mrf.mxu0
      %v1426 = vadd.f32 0.0, %v1425
      %1427 = vmatprep.mubr.f32.mxu0 0.0
      %1428 = vmatmul.mubr.f32.gmra.mxu0 %v408
      %v1429 = vpop.f32.mrf.mxu0
      %v1430 = vadd.f32 0.0, %v1429
      %v1431 = vpop.f32.mrf.mxu0
      %v1432 = vadd.f32 0.0, %v1431
      %1433 = vmatprep.mubr.f32.mxu0 0.0
      %1434 = vmatmul.mubr.f32.gmra.mxu0 %v411
      %v1435 = vpop.f32.mrf.mxu0
      %v1436 = vadd.f32 0.0, %v1435
      %v1437 = vpop.f32.mrf.mxu0
      %v1438 = vadd.f32 0.0, %v1437
      %1439 = vmatprep.mubr.f32.mxu0 0.0
      %1440 = vmatmul.mubr.f32.gmra.mxu0 %v414
      %v1441 = vpop.f32.mrf.mxu0
      %v1442 = vadd.f32 0.0, %v1441
      %v1443 = vpop.f32.mrf.mxu0
      %v1444 = vadd.f32 0.0, %v1443
      %1445 = vmatprep.mubr.f32.mxu0 0.0
      %1446 = vmatmul.mubr.f32.gmra.mxu0 %v417
      %v1447 = vpop.f32.mrf.mxu0
      %v1448 = vadd.f32 0.0, %v1447
      %v1449 = vpop.f32.mrf.mxu0
      %v1450 = vadd.f32 0.0, %v1449
      %1451 = vmatprep.mubr.f32.mxu0 0.0
      %1452 = vmatmul.mubr.f32.gmra.mxu0 %v420
      %v1453 = vpop.f32.mrf.mxu0
      %v1454 = vadd.f32 0.0, %v1453
      %v1455 = vpop.f32.mrf.mxu0
      %v1456 = vadd.f32 0.0, %v1455
      %1457 = vmatprep.mubr.f32.mxu0 0.0
      %1458 = vmatmul.mubr.f32.gmra.mxu0 %v423
      %v1459 = vpop.f32.mrf.mxu0
      %v1460 = vadd.f32 0.0, %v1459
      %v1461 = vpop.f32.mrf.mxu0
      %v1462 = vadd.f32 0.0, %v1461
      %1463 = vmatprep.mubr.f32.mxu0 0.0
      %1464 = vmatmul.mubr.f32.gmra.mxu0 %v426
      %v1465 = vpop.f32.mrf.mxu0
      %v1466 = vadd.f32 0.0, %v1465
      %v1467 = vpop.f32.mrf.mxu0
      %v1468 = vadd.f32 0.0, %v1467
      %1469 = vmatprep.mubr.f32.mxu0 0.0
      %1470 = vmatmul.mubr.f32.gmra.mxu0 %v429
      %v1471 = vpop.f32.mrf.mxu0
      %v1472 = vadd.f32 0.0, %v1471
      %v1473 = vpop.f32.mrf.mxu0
      %v1474 = vadd.f32 0.0, %v1473
      %1475 = vmatprep.mubr.f32.mxu0 0.0
      %1476 = vmatmul.mubr.f32.gmra.mxu0 %v432
      %v1477 = vpop.f32.mrf.mxu0
      %v1478 = vadd.f32 0.0, %v1477
      %v1479 = vpop.f32.mrf.mxu0
      %v1480 = vadd.f32 0.0, %v1479
      %1481 = vmatprep.mubr.f32.mxu0 0.0
      %1482 = vmatmul.mubr.f32.gmra.mxu0 %v435
      %v1483 = vpop.f32.mrf.mxu0
      %v1484 = vadd.f32 0.0, %v1483
      %v1485 = vpop.f32.mrf.mxu0
      %v1486 = vadd.f32 0.0, %v1485
      %1487 = vmatprep.mubr.f32.mxu0 0.0
      %1488 = vmatmul.mubr.f32.gmra.mxu0 %v438
      %v1489 = vpop.f32.mrf.mxu0
      %v1490 = vadd.f32 0.0, %v1489
      %v1491 = vpop.f32.mrf.mxu0
      %v1492 = vadd.f32 0.0, %v1491
      %1493 = vmatprep.mubr.f32.mxu0 0.0
      %1494 = vmatmul.mubr.f32.gmra.mxu0 %v441
      %v1495 = vpop.f32.mrf.mxu0
      %v1496 = vadd.f32 0.0, %v1495
      %v1497 = vpop.f32.mrf.mxu0
      %v1498 = vadd.f32 0.0, %v1497
      %1499 = vmatprep.mubr.f32.mxu0 0.0
      %1500 = vmatmul.mubr.f32.gmra.mxu0 %v444
      %v1501 = vpop.f32.mrf.mxu0
      %v1502 = vadd.f32 0.0, %v1501
      %v1503 = vpop.f32.mrf.mxu0
      %v1504 = vadd.f32 0.0, %v1503
      %1505 = vmatprep.mubr.f32.mxu0 0.0
      %1506 = vmatmul.mubr.f32.gmra.mxu0 %v447
      %v1507 = vpop.f32.mrf.mxu0
      %v1508 = vadd.f32 0.0, %v1507
      %v1509 = vpop.f32.mrf.mxu0
      %v1510 = vadd.f32 0.0, %v1509
      %1511 = vmatprep.mubr.f32.mxu0 0.0
      %1512 = vmatmul.mubr.f32.gmra.mxu0 %v450
      %v1513 = vpop.f32.mrf.mxu0
      %v1514 = vadd.f32 0.0, %v1513
      %v1515 = vpop.f32.mrf.mxu0
      %v1516 = vadd.f32 0.0, %v1515
      %1517 = vmatprep.mubr.f32.mxu0 0.0
      %1518 = vmatmul.mubr.f32.gmra.mxu0 %v453
      %v1519 = vpop.f32.mrf.mxu0
      %v1520 = vadd.f32 0.0, %v1519
      %v1521 = vpop.f32.mrf.mxu0
      %v1522 = vadd.f32 0.0, %v1521
      %1523 = vmatprep.mubr.f32.mxu0 0.0
      %1524 = vmatmul.mubr.f32.gmra.mxu0 %v456
      %v1525 = vpop.f32.mrf.mxu0
      %v1526 = vadd.f32 0.0, %v1525
      %v1527 = vpop.f32.mrf.mxu0
      %v1528 = vadd.f32 0.0, %v1527
      %1529 = vmatprep.mubr.f32.mxu0 0.0
      %1530 = vmatmul.mubr.f32.gmra.mxu0 %v459
      %v1531 = vpop.f32.mrf.mxu0
      %v1532 = vadd.f32 0.0, %v1531
      %v1533 = vpop.f32.mrf.mxu0
      %v1534 = vadd.f32 0.0, %v1533
      %1535 = vmatprep.mubr.f32.mxu0 0.0
      %1536 = vmatmul.mubr.f32.gmra.mxu0 %v462
      %v1537 = vpop.f32.mrf.mxu0
      %v1538 = vadd.f32 0.0, %v1537
      %v1539 = vpop.f32.mrf.mxu0
      %v1540 = vadd.f32 0.0, %v1539
      %1541 = vmatprep.mubr.f32.mxu0 0.0
      %1542 = vmatmul.mubr.f32.gmra.mxu0 %v465
      %v1543 = vpop.f32.mrf.mxu0
      %v1544 = vadd.f32 0.0, %v1543
      %v1545 = vpop.f32.mrf.mxu0
      %v1546 = vadd.f32 0.0, %v1545
      %1547 = vmatprep.mubr.f32.mxu0 0.0
      %1548 = vmatmul.mubr.f32.gmra.mxu0 %v468
      %v1549 = vpop.f32.mrf.mxu0
      %v1550 = vadd.f32 0.0, %v1549
      %v1551 = vpop.f32.mrf.mxu0
      %v1552 = vadd.f32 0.0, %v1551
      %1553 = vmatprep.mubr.f32.mxu0 0.0
      %1554 = vmatmul.mubr.f32.gmra.mxu0 %v471
      %v1555 = vpop.f32.mrf.mxu0
      %v1556 = vadd.f32 0.0, %v1555
      %v1557 = vpop.f32.mrf.mxu0
      %v1558 = vadd.f32 0.0, %v1557
      %1559 = vmatprep.mubr.f32.mxu0 0.0
      %1560 = vmatmul.mubr.f32.gmra.mxu0 %v1208
      %v1561 = vpop.f32.mrf.mxu0
      %v1562 = vadd.f32 0.0, %v1561
      %v1563 = vpop.f32.mrf.mxu0
      %v1564 = vadd.f32 0.0, %v1563
      %1565 = vmatprep.mubr.f32.mxu0 0.0
      %1566 = vmatmul.mubr.f32.gmra.mxu0 %v1211
      %v1567 = vpop.f32.mrf.mxu0
      %v1568 = vadd.f32 0.0, %v1567
      %v1569 = vpop.f32.mrf.mxu0
      %v1570 = vadd.f32 0.0, %v1569
      %1571 = vdwg.mxu0
      %v1572 = vadd.f32 %v912, %v1286
      %v1573 = vadd.f32 %v914, %v1288
      %v1574 = vadd.f32 %v918, %v1292
      %v1575 = vadd.f32 %v920, %v1294
      %v1576 = vadd.f32 %v924, %v1298
      %v1577 = vadd.f32 %v926, %v1300
      %v1578 = vadd.f32 %v930, %v1304
      %v1579 = vadd.f32 %v932, %v1306
      %v1580 = vadd.f32 %v936, %v1310
      %v1581 = vadd.f32 %v938, %v1312
      %v1582 = vadd.f32 %v942, %v1316
      %v1583 = vadd.f32 %v944, %v1318
      %v1584 = vadd.f32 %v948, %v1322
      %v1585 = vadd.f32 %v950, %v1324
      %v1586 = vadd.f32 %v954, %v1328
      %v1587 = vadd.f32 %v956, %v1330
      %v1588 = vadd.f32 %v960, %v1334
      %v1589 = vadd.f32 %v962, %v1336
      %v1590 = vadd.f32 %v966, %v1340
      %v1591 = vadd.f32 %v968, %v1342
      %v1592 = vadd.f32 %v972, %v1346
      %v1593 = vadd.f32 %v974, %v1348
      %v1594 = vadd.f32 %v978, %v1352
      %v1595 = vadd.f32 %v980, %v1354
      %v1596 = vadd.f32 %v984, %v1358
      %v1597 = vadd.f32 %v986, %v1360
      %v1598 = vadd.f32 %v990, %v1364
      %v1599 = vadd.f32 %v992, %v1366
      %v1600 = vadd.f32 %v996, %v1370
      %v1601 = vadd.f32 %v998, %v1372
      %v1602 = vadd.f32 %v1002, %v1376
      %v1603 = vadd.f32 %v1004, %v1378
      %v1604 = vadd.f32 %v1008, %v1382
      %v1605 = vadd.f32 %v1010, %v1384
      %v1606 = vadd.f32 %v1014, %v1388
      %v1607 = vadd.f32 %v1016, %v1390
      %v1608 = vadd.f32 %v1020, %v1394
      %v1609 = vadd.f32 %v1022, %v1396
      %v1610 = vadd.f32 %v1026, %v1400
      %v1611 = vadd.f32 %v1028, %v1402
      %v1612 = vadd.f32 %v1032, %v1406
      %v1613 = vadd.f32 %v1034, %v1408
      %v1614 = vadd.f32 %v1038, %v1412
      %v1615 = vadd.f32 %v1040, %v1414
      %v1616 = vadd.f32 %v1044, %v1418
      %v1617 = vadd.f32 %v1046, %v1420
      %v1618 = vadd.f32 %v1050, %v1424
      %v1619 = vadd.f32 %v1052, %v1426
      %v1620 = vadd.f32 %v1056, %v1430
      %v1621 = vadd.f32 %v1058, %v1432
      %v1622 = vadd.f32 %v1062, %v1436
      %v1623 = vadd.f32 %v1064, %v1438
      %v1624 = vadd.f32 %v1068, %v1442
      %v1625 = vadd.f32 %v1070, %v1444
      %v1626 = vadd.f32 %v1074, %v1448
      %v1627 = vadd.f32 %v1076, %v1450
      %v1628 = vadd.f32 %v1080, %v1454
      %v1629 = vadd.f32 %v1082, %v1456
      %v1630 = vadd.f32 %v1086, %v1460
      %v1631 = vadd.f32 %v1088, %v1462
      %v1632 = vadd.f32 %v1092, %v1466
      %v1633 = vadd.f32 %v1094, %v1468
      %v1634 = vadd.f32 %v1098, %v1472
      %v1635 = vadd.f32 %v1100, %v1474
      %v1636 = vadd.f32 %v1104, %v1478
      %v1637 = vadd.f32 %v1106, %v1480
      %v1638 = vadd.f32 %v1110, %v1484
      %v1639 = vadd.f32 %v1112, %v1486
      %v1640 = vadd.f32 %v1116, %v1490
      %v1641 = vadd.f32 %v1118, %v1492
      %v1642 = vadd.f32 %v1122, %v1496
      %v1643 = vadd.f32 %v1124, %v1498
      %v1644 = vadd.f32 %v1128, %v1502
      %v1645 = vadd.f32 %v1130, %v1504
      %v1646 = vadd.f32 %v1134, %v1508
      %v1647 = vadd.f32 %v1136, %v1510
      %v1648 = vadd.f32 %v1140, %v1514
      %v1649 = vadd.f32 %v1142, %v1516
      %v1650 = vadd.f32 %v1146, %v1520
      %v1651 = vadd.f32 %v1148, %v1522
      %v1652 = vadd.f32 %v1152, %v1526
      %v1653 = vadd.f32 %v1154, %v1528
      %v1654 = vadd.f32 %v1158, %v1532
      %v1655 = vadd.f32 %v1160, %v1534
      %v1656 = vadd.f32 %v1164, %v1538
      %v1657 = vadd.f32 %v1166, %v1540
      %v1658 = vadd.f32 %v1170, %v1544
      %v1659 = vadd.f32 %v1172, %v1546
      %v1660 = vadd.f32 %v1176, %v1550
      %v1661 = vadd.f32 %v1178, %v1552
      %v1662 = vadd.f32 %v1182, %v1556
      %v1663 = vadd.f32 %v1184, %v1558
      %v1664 = vadd.f32 %v1188, %v1562
      %v1665 = vadd.f32 %v1190, %v1564
      %v1666 = vadd.f32 %v1194, %v1568
      %v1667 = vadd.f32 %v1196, %v1570
      %s1668 = scalar_lea.vmem %s1, 192
      %v1669 = vld [vmem:[%s1668] sm:$0xff]
      %v1670 = vld [vmem:[%s1668 + $0x8] sm:$0xff]
      %v1671 = vld [vmem:[%s1668 + $0x10] sm:$0xff]
      %v1672 = vld [vmem:[%s1668 + $0x18] sm:$0xff]
      %v1673 = vld [vmem:[%s1668 + $0x20] sm:$0xff]
      %v1674 = vld [vmem:[%s1668 + $0x28] sm:$0xff]
      %v1675 = vld [vmem:[%s1668 + $0x30] sm:$0xf]
      %v1676 = vld [vmem:[%s1668 + $0x38] sm:$0xf]
      %v1678 = vsel %vm328, %v307, 0
      %v1681 = vsel %vm328, %v308, 0
      %v1684 = vsel %vm473, %v1675, 0
      %v1687 = vsel %vm473, %v1676, 0
      %1689 = vmatprep.subr.mxu0 0.0
      %1690 = vmatpush1.msra.mxu0 0.0
      %1691 = vmatprep.subr.mxu0 0.0
      %1692 = vmatpush1.msra.mxu0 0.0
      %1693 = vmatprep.subr.mxu0 0.0
      %1694 = vmatpush1.msra.mxu0 0.0
      %1695 = vmatprep.subr.mxu0 0.0
      %1696 = vmatpush1.msra.mxu0 0.0
      %1697 = vmatprep.subr.mxu0 0.0
      %1698 = vmatpush1.msra.mxu0 0.0
      %1699 = vmatprep.subr.mxu0 0.0
      %1700 = vmatpush1.msra.mxu0 0.0
      %1701 = vmatprep.subr.mxu0 0.0
      %1702 = vmatpush1.msra.mxu0 0.0
      %1703 = vmatprep.subr.mxu0 0.0
      %1704 = vmatpush1.msra.mxu0 0.0
      %1705 = vmatprep.subr.mxu0 0.0
      %1706 = vmatpush1.msra.mxu0 0.0
      %1707 = vmatprep.subr.mxu0 0.0
      %1708 = vmatpush1.msra.mxu0 0.0
      %1709 = vmatprep.subr.mxu0 0.0
      %1710 = vmatpush1.msra.mxu0 0.0
      %1711 = vmatprep.subr.mxu0 0.0
      %1712 = vmatpush1.msra.mxu0 0.0
      %1713 = vmatprep.subr.mxu0 %v1687
      %1714 = vmatpush1.msra.mxu0 %v1684
      %1715 = vmatprep.subr.mxu0 %v1674
      %1716 = vmatpush1.msra.mxu0 %v1673
      %1717 = vmatprep.subr.mxu0 %v1672
      %1718 = vmatpush1.msra.mxu0 %v1671
      %1719 = vmatprep.subr.mxu0 %v1670
      %1720 = vmatpush1.msra.mxu0 %v1669
      %1721 = vmatprep.subr.mxu0 0.0
      %1722 = vmatpush2.msra.mxu0 0.0
      %1723 = vmatprep.subr.mxu0 0.0
      %1724 = vmatpush2.msra.mxu0 0.0
      %1725 = vmatprep.subr.mxu0 0.0
      %1726 = vmatpush2.msra.mxu0 0.0
      %1727 = vmatprep.subr.mxu0 0.0
      %1728 = vmatpush2.msra.mxu0 0.0
      %1729 = vmatprep.subr.mxu0 0.0
      %1730 = vmatpush2.msra.mxu0 0.0
      %1731 = vmatprep.subr.mxu0 0.0
      %1732 = vmatpush2.msra.mxu0 0.0
      %1733 = vmatprep.subr.mxu0 0.0
      %1734 = vmatpush2.msra.mxu0 0.0
      %1735 = vmatprep.subr.mxu0 0.0
      %1736 = vmatpush2.msra.mxu0 0.0
      %1737 = vmatprep.subr.mxu0 0.0
      %1738 = vmatpush2.msra.mxu0 0.0
      %1739 = vmatprep.subr.mxu0 0.0
      %1740 = vmatpush2.msra.mxu0 0.0
      %1741 = vmatprep.subr.mxu0 0.0
      %1742 = vmatpush2.msra.mxu0 0.0
      %1743 = vmatprep.subr.mxu0 0.0
      %1744 = vmatpush2.msra.mxu0 0.0
      %1745 = vmatprep.subr.mxu0 0.0
      %1746 = vmatpush2.msra.mxu0 0.0
      %1747 = vmatprep.subr.mxu0 0.0
      %1748 = vmatpush2.msra.mxu0 0.0
      %1749 = vmatprep.subr.mxu0 0.0
      %1750 = vmatpush2.msra.mxu0 0.0
      %1751 = vmatprep.subr.mxu0 0.0
      %1752 = vmatpush2.msra.mxu0 0.0
      %1753 = vmatprep.mubr.f32.mxu0 0.0
      %1754 = vmatmul.mubr.f32.gmra.mxu0 %v342
      %v1755 = vpop.f32.mrf.mxu0
      %v1756 = vadd.f32 0.0, %v1755
      %v1757 = vpop.f32.mrf.mxu0
      %v1758 = vadd.f32 0.0, %v1757
      %1759 = vmatprep.mubr.f32.mxu0 0.0
      %1760 = vmatmul.mubr.f32.gmra.mxu0 %v345
      %v1761 = vpop.f32.mrf.mxu0
      %v1762 = vadd.f32 0.0, %v1761
      %v1763 = vpop.f32.mrf.mxu0
      %v1764 = vadd.f32 0.0, %v1763
      %1765 = vmatprep.mubr.f32.mxu0 0.0
      %1766 = vmatmul.mubr.f32.gmra.mxu0 %v348
      %v1767 = vpop.f32.mrf.mxu0
      %v1768 = vadd.f32 0.0, %v1767
      %v1769 = vpop.f32.mrf.mxu0
      %v1770 = vadd.f32 0.0, %v1769
      %1771 = vmatprep.mubr.f32.mxu0 0.0
      %1772 = vmatmul.mubr.f32.gmra.mxu0 %v351
      %v1773 = vpop.f32.mrf.mxu0
      %v1774 = vadd.f32 0.0, %v1773
      %v1775 = vpop.f32.mrf.mxu0
      %v1776 = vadd.f32 0.0, %v1775
      %1777 = vmatprep.mubr.f32.mxu0 0.0
      %1778 = vmatmul.mubr.f32.gmra.mxu0 %v354
      %v1779 = vpop.f32.mrf.mxu0
      %v1780 = vadd.f32 0.0, %v1779
      %v1781 = vpop.f32.mrf.mxu0
      %v1782 = vadd.f32 0.0, %v1781
      %1783 = vmatprep.mubr.f32.mxu0 0.0
      %1784 = vmatmul.mubr.f32.gmra.mxu0 %v357
      %v1785 = vpop.f32.mrf.mxu0
      %v1786 = vadd.f32 0.0, %v1785
      %v1787 = vpop.f32.mrf.mxu0
      %v1788 = vadd.f32 0.0, %v1787
      %1789 = vmatprep.mubr.f32.mxu0 0.0
      %1790 = vmatmul.mubr.f32.gmra.mxu0 %v360
      %v1791 = vpop.f32.mrf.mxu0
      %v1792 = vadd.f32 0.0, %v1791
      %v1793 = vpop.f32.mrf.mxu0
      %v1794 = vadd.f32 0.0, %v1793
      %1795 = vmatprep.mubr.f32.mxu0 0.0
      %1796 = vmatmul.mubr.f32.gmra.mxu0 %v363
      %v1797 = vpop.f32.mrf.mxu0
      %v1798 = vadd.f32 0.0, %v1797
      %v1799 = vpop.f32.mrf.mxu0
      %v1800 = vadd.f32 0.0, %v1799
      %1801 = vmatprep.mubr.f32.mxu0 0.0
      %1802 = vmatmul.mubr.f32.gmra.mxu0 %v366
      %v1803 = vpop.f32.mrf.mxu0
      %v1804 = vadd.f32 0.0, %v1803
      %v1805 = vpop.f32.mrf.mxu0
      %v1806 = vadd.f32 0.0, %v1805
      %1807 = vmatprep.mubr.f32.mxu0 0.0
      %1808 = vmatmul.mubr.f32.gmra.mxu0 %v369
      %v1809 = vpop.f32.mrf.mxu0
      %v1810 = vadd.f32 0.0, %v1809
      %v1811 = vpop.f32.mrf.mxu0
      %v1812 = vadd.f32 0.0, %v1811
      %1813 = vmatprep.mubr.f32.mxu0 0.0
      %1814 = vmatmul.mubr.f32.gmra.mxu0 %v372
      %v1815 = vpop.f32.mrf.mxu0
      %v1816 = vadd.f32 0.0, %v1815
      %v1817 = vpop.f32.mrf.mxu0
      %v1818 = vadd.f32 0.0, %v1817
      %1819 = vmatprep.mubr.f32.mxu0 0.0
      %1820 = vmatmul.mubr.f32.gmra.mxu0 %v375
      %v1821 = vpop.f32.mrf.mxu0
      %v1822 = vadd.f32 0.0, %v1821
      %v1823 = vpop.f32.mrf.mxu0
      %v1824 = vadd.f32 0.0, %v1823
      %1825 = vmatprep.mubr.f32.mxu0 0.0
      %1826 = vmatmul.mubr.f32.gmra.mxu0 %v378
      %v1827 = vpop.f32.mrf.mxu0
      %v1828 = vadd.f32 0.0, %v1827
      %v1829 = vpop.f32.mrf.mxu0
      %v1830 = vadd.f32 0.0, %v1829
      %1831 = vmatprep.mubr.f32.mxu0 0.0
      %1832 = vmatmul.mubr.f32.gmra.mxu0 %v381
      %v1833 = vpop.f32.mrf.mxu0
      %v1834 = vadd.f32 0.0, %v1833
      %v1835 = vpop.f32.mrf.mxu0
      %v1836 = vadd.f32 0.0, %v1835
      %1837 = vmatprep.mubr.f32.mxu0 0.0
      %1838 = vmatmul.mubr.f32.gmra.mxu0 %v384
      %v1839 = vpop.f32.mrf.mxu0
      %v1840 = vadd.f32 0.0, %v1839
      %v1841 = vpop.f32.mrf.mxu0
      %v1842 = vadd.f32 0.0, %v1841
      %1843 = vmatprep.mubr.f32.mxu0 0.0
      %1844 = vmatmul.mubr.f32.gmra.mxu0 %v387
      %v1845 = vpop.f32.mrf.mxu0
      %v1846 = vadd.f32 0.0, %v1845
      %v1847 = vpop.f32.mrf.mxu0
      %v1848 = vadd.f32 0.0, %v1847
      %1849 = vmatprep.mubr.f32.mxu0 0.0
      %1850 = vmatmul.mubr.f32.gmra.mxu0 %v390
      %v1851 = vpop.f32.mrf.mxu0
      %v1852 = vadd.f32 0.0, %v1851
      %v1853 = vpop.f32.mrf.mxu0
      %v1854 = vadd.f32 0.0, %v1853
      %1855 = vmatprep.mubr.f32.mxu0 0.0
      %1856 = vmatmul.mubr.f32.gmra.mxu0 %v393
      %v1857 = vpop.f32.mrf.mxu0
      %v1858 = vadd.f32 0.0, %v1857
      %v1859 = vpop.f32.mrf.mxu0
      %v1860 = vadd.f32 0.0, %v1859
      %1861 = vmatprep.mubr.f32.mxu0 0.0
      %1862 = vmatmul.mubr.f32.gmra.mxu0 %v396
      %v1863 = vpop.f32.mrf.mxu0
      %v1864 = vadd.f32 0.0, %v1863
      %v1865 = vpop.f32.mrf.mxu0
      %v1866 = vadd.f32 0.0, %v1865
      %1867 = vmatprep.mubr.f32.mxu0 0.0
      %1868 = vmatmul.mubr.f32.gmra.mxu0 %v399
      %v1869 = vpop.f32.mrf.mxu0
      %v1870 = vadd.f32 0.0, %v1869
      %v1871 = vpop.f32.mrf.mxu0
      %v1872 = vadd.f32 0.0, %v1871
      %1873 = vmatprep.mubr.f32.mxu0 0.0
      %1874 = vmatmul.mubr.f32.gmra.mxu0 %v402
      %v1875 = vpop.f32.mrf.mxu0
      %v1876 = vadd.f32 0.0, %v1875
      %v1877 = vpop.f32.mrf.mxu0
      %v1878 = vadd.f32 0.0, %v1877
      %1879 = vmatprep.mubr.f32.mxu0 0.0
      %1880 = vmatmul.mubr.f32.gmra.mxu0 %v405
      %v1881 = vpop.f32.mrf.mxu0
      %v1882 = vadd.f32 0.0, %v1881
      %v1883 = vpop.f32.mrf.mxu0
      %v1884 = vadd.f32 0.0, %v1883
      %1885 = vmatprep.mubr.f32.mxu0 0.0
      %1886 = vmatmul.mubr.f32.gmra.mxu0 %v408
      %v1887 = vpop.f32.mrf.mxu0
      %v1888 = vadd.f32 0.0, %v1887
      %v1889 = vpop.f32.mrf.mxu0
      %v1890 = vadd.f32 0.0, %v1889
      %1891 = vmatprep.mubr.f32.mxu0 0.0
      %1892 = vmatmul.mubr.f32.gmra.mxu0 %v411
      %v1893 = vpop.f32.mrf.mxu0
      %v1894 = vadd.f32 0.0, %v1893
      %v1895 = vpop.f32.mrf.mxu0
      %v1896 = vadd.f32 0.0, %v1895
      %1897 = vmatprep.mubr.f32.mxu0 0.0
      %1898 = vmatmul.mubr.f32.gmra.mxu0 %v414
      %v1899 = vpop.f32.mrf.mxu0
      %v1900 = vadd.f32 0.0, %v1899
      %v1901 = vpop.f32.mrf.mxu0
      %v1902 = vadd.f32 0.0, %v1901
      %1903 = vmatprep.mubr.f32.mxu0 0.0
      %1904 = vmatmul.mubr.f32.gmra.mxu0 %v417
      %v1905 = vpop.f32.mrf.mxu0
      %v1906 = vadd.f32 0.0, %v1905
      %v1907 = vpop.f32.mrf.mxu0
      %v1908 = vadd.f32 0.0, %v1907
      %1909 = vmatprep.mubr.f32.mxu0 0.0
      %1910 = vmatmul.mubr.f32.gmra.mxu0 %v420
      %v1911 = vpop.f32.mrf.mxu0
      %v1912 = vadd.f32 0.0, %v1911
      %v1913 = vpop.f32.mrf.mxu0
      %v1914 = vadd.f32 0.0, %v1913
      %1915 = vmatprep.mubr.f32.mxu0 0.0
      %1916 = vmatmul.mubr.f32.gmra.mxu0 %v423
      %v1917 = vpop.f32.mrf.mxu0
      %v1918 = vadd.f32 0.0, %v1917
      %v1919 = vpop.f32.mrf.mxu0
      %v1920 = vadd.f32 0.0, %v1919
      %1921 = vmatprep.mubr.f32.mxu0 0.0
      %1922 = vmatmul.mubr.f32.gmra.mxu0 %v426
      %v1923 = vpop.f32.mrf.mxu0
      %v1924 = vadd.f32 0.0, %v1923
      %v1925 = vpop.f32.mrf.mxu0
      %v1926 = vadd.f32 0.0, %v1925
      %1927 = vmatprep.mubr.f32.mxu0 0.0
      %1928 = vmatmul.mubr.f32.gmra.mxu0 %v429
      %v1929 = vpop.f32.mrf.mxu0
      %v1930 = vadd.f32 0.0, %v1929
      %v1931 = vpop.f32.mrf.mxu0
      %v1932 = vadd.f32 0.0, %v1931
      %1933 = vmatprep.mubr.f32.mxu0 0.0
      %1934 = vmatmul.mubr.f32.gmra.mxu0 %v432
      %v1935 = vpop.f32.mrf.mxu0
      %v1936 = vadd.f32 0.0, %v1935
      %v1937 = vpop.f32.mrf.mxu0
      %v1938 = vadd.f32 0.0, %v1937
      %1939 = vmatprep.mubr.f32.mxu0 0.0
      %1940 = vmatmul.mubr.f32.gmra.mxu0 %v435
      %v1941 = vpop.f32.mrf.mxu0
      %v1942 = vadd.f32 0.0, %v1941
      %v1943 = vpop.f32.mrf.mxu0
      %v1944 = vadd.f32 0.0, %v1943
      %1945 = vmatprep.mubr.f32.mxu0 0.0
      %1946 = vmatmul.mubr.f32.gmra.mxu0 %v438
      %v1947 = vpop.f32.mrf.mxu0
      %v1948 = vadd.f32 0.0, %v1947
      %v1949 = vpop.f32.mrf.mxu0
      %v1950 = vadd.f32 0.0, %v1949
      %1951 = vmatprep.mubr.f32.mxu0 0.0
      %1952 = vmatmul.mubr.f32.gmra.mxu0 %v441
      %v1953 = vpop.f32.mrf.mxu0
      %v1954 = vadd.f32 0.0, %v1953
      %v1955 = vpop.f32.mrf.mxu0
      %v1956 = vadd.f32 0.0, %v1955
      %1957 = vmatprep.mubr.f32.mxu0 0.0
      %1958 = vmatmul.mubr.f32.gmra.mxu0 %v444
      %v1959 = vpop.f32.mrf.mxu0
      %v1960 = vadd.f32 0.0, %v1959
      %v1961 = vpop.f32.mrf.mxu0
      %v1962 = vadd.f32 0.0, %v1961
      %1963 = vmatprep.mubr.f32.mxu0 0.0
      %1964 = vmatmul.mubr.f32.gmra.mxu0 %v447
      %v1965 = vpop.f32.mrf.mxu0
      %v1966 = vadd.f32 0.0, %v1965
      %v1967 = vpop.f32.mrf.mxu0
      %v1968 = vadd.f32 0.0, %v1967
      %1969 = vmatprep.mubr.f32.mxu0 0.0
      %1970 = vmatmul.mubr.f32.gmra.mxu0 %v450
      %v1971 = vpop.f32.mrf.mxu0
      %v1972 = vadd.f32 0.0, %v1971
      %v1973 = vpop.f32.mrf.mxu0
      %v1974 = vadd.f32 0.0, %v1973
      %1975 = vmatprep.mubr.f32.mxu0 0.0
      %1976 = vmatmul.mubr.f32.gmra.mxu0 %v453
      %v1977 = vpop.f32.mrf.mxu0
      %v1978 = vadd.f32 0.0, %v1977
      %v1979 = vpop.f32.mrf.mxu0
      %v1980 = vadd.f32 0.0, %v1979
      %1981 = vmatprep.mubr.f32.mxu0 0.0
      %1982 = vmatmul.mubr.f32.gmra.mxu0 %v456
      %v1983 = vpop.f32.mrf.mxu0
      %v1984 = vadd.f32 0.0, %v1983
      %v1985 = vpop.f32.mrf.mxu0
      %v1986 = vadd.f32 0.0, %v1985
      %1987 = vmatprep.mubr.f32.mxu0 0.0
      %1988 = vmatmul.mubr.f32.gmra.mxu0 %v459
      %v1989 = vpop.f32.mrf.mxu0
      %v1990 = vadd.f32 0.0, %v1989
      %v1991 = vpop.f32.mrf.mxu0
      %v1992 = vadd.f32 0.0, %v1991
      %1993 = vmatprep.mubr.f32.mxu0 0.0
      %1994 = vmatmul.mubr.f32.gmra.mxu0 %v462
      %v1995 = vpop.f32.mrf.mxu0
      %v1996 = vadd.f32 0.0, %v1995
      %v1997 = vpop.f32.mrf.mxu0
      %v1998 = vadd.f32 0.0, %v1997
      %1999 = vmatprep.mubr.f32.mxu0 0.0
      %2000 = vmatmul.mubr.f32.gmra.mxu0 %v465
      %v2001 = vpop.f32.mrf.mxu0
      %v2002 = vadd.f32 0.0, %v2001
      %v2003 = vpop.f32.mrf.mxu0
      %v2004 = vadd.f32 0.0, %v2003
      %2005 = vmatprep.mubr.f32.mxu0 0.0
      %2006 = vmatmul.mubr.f32.gmra.mxu0 %v468
      %v2007 = vpop.f32.mrf.mxu0
      %v2008 = vadd.f32 0.0, %v2007
      %v2009 = vpop.f32.mrf.mxu0
      %v2010 = vadd.f32 0.0, %v2009
      %2011 = vmatprep.mubr.f32.mxu0 0.0
      %2012 = vmatmul.mubr.f32.gmra.mxu0 %v471
      %v2013 = vpop.f32.mrf.mxu0
      %v2014 = vadd.f32 0.0, %v2013
      %v2015 = vpop.f32.mrf.mxu0
      %v2016 = vadd.f32 0.0, %v2015
      %2017 = vmatprep.mubr.f32.mxu0 0.0
      %2018 = vmatmul.mubr.f32.gmra.mxu0 %v1208
      %v2019 = vpop.f32.mrf.mxu0
      %v2020 = vadd.f32 0.0, %v2019
      %v2021 = vpop.f32.mrf.mxu0
      %v2022 = vadd.f32 0.0, %v2021
      %2023 = vmatprep.mubr.f32.mxu0 0.0
      %2024 = vmatmul.mubr.f32.gmra.mxu0 %v1211
      %v2025 = vpop.f32.mrf.mxu0
      %v2026 = vadd.f32 0.0, %v2025
      %v2027 = vpop.f32.mrf.mxu0
      %v2028 = vadd.f32 0.0, %v2027
      %2029 = vmatprep.mubr.f32.mxu0 0.0
      %2030 = vmatmul.mubr.f32.gmra.mxu0 %v1678
      %v2031 = vpop.f32.mrf.mxu0
      %v2032 = vadd.f32 0.0, %v2031
      %v2033 = vpop.f32.mrf.mxu0
      %v2034 = vadd.f32 0.0, %v2033
      %2035 = vmatprep.mubr.f32.mxu0 0.0
      %2036 = vmatmul.mubr.f32.gmra.mxu0 %v1681
      %v2037 = vpop.f32.mrf.mxu0
      %v2038 = vadd.f32 0.0, %v2037
      %v2039 = vpop.f32.mrf.mxu0
      %v2040 = vadd.f32 0.0, %v2039
      %2041 = vdwg.mxu0
      %v2042 = vadd.f32 %v1572, %v1756
      %v2043 = vadd.f32 %v1573, %v1758
      %v2044 = vadd.f32 %v1574, %v1762
      %v2045 = vadd.f32 %v1575, %v1764
      %v2046 = vadd.f32 %v1576, %v1768
      %v2047 = vadd.f32 %v1577, %v1770
      %v2048 = vadd.f32 %v1578, %v1774
      %v2049 = vadd.f32 %v1579, %v1776
      %v2050 = vadd.f32 %v1580, %v1780
      %v2051 = vadd.f32 %v1581, %v1782
      %v2052 = vadd.f32 %v1582, %v1786
      %v2053 = vadd.f32 %v1583, %v1788
      %v2054 = vadd.f32 %v1584, %v1792
      %v2055 = vadd.f32 %v1585, %v1794
      %v2056 = vadd.f32 %v1586, %v1798
      %v2057 = vadd.f32 %v1587, %v1800
      %v2058 = vadd.f32 %v1588, %v1804
      %v2059 = vadd.f32 %v1589, %v1806
      %v2060 = vadd.f32 %v1590, %v1810
      %v2061 = vadd.f32 %v1591, %v1812
      %v2062 = vadd.f32 %v1592, %v1816
      %v2063 = vadd.f32 %v1593, %v1818
      %v2064 = vadd.f32 %v1594, %v1822
      %v2065 = vadd.f32 %v1595, %v1824
      %v2066 = vadd.f32 %v1596, %v1828
      %v2067 = vadd.f32 %v1597, %v1830
      %v2068 = vadd.f32 %v1598, %v1834
      %v2069 = vadd.f32 %v1599, %v1836
      %v2070 = vadd.f32 %v1600, %v1840
      %v2071 = vadd.f32 %v1601, %v1842
      %v2072 = vadd.f32 %v1602, %v1846
      %v2073 = vadd.f32 %v1603, %v1848
      %v2074 = vadd.f32 %v1604, %v1852
      %v2075 = vadd.f32 %v1605, %v1854
      %v2076 = vadd.f32 %v1606, %v1858
      %v2077 = vadd.f32 %v1607, %v1860
      %v2078 = vadd.f32 %v1608, %v1864
      %v2079 = vadd.f32 %v1609, %v1866
      %v2080 = vadd.f32 %v1610, %v1870
      %v2081 = vadd.f32 %v1611, %v1872
      %v2082 = vadd.f32 %v1612, %v1876
      %v2083 = vadd.f32 %v1613, %v1878
      %v2084 = vadd.f32 %v1614, %v1882
      %v2085 = vadd.f32 %v1615, %v1884
      %v2086 = vadd.f32 %v1616, %v1888
      %v2087 = vadd.f32 %v1617, %v1890
      %v2088 = vadd.f32 %v1618, %v1894
      %v2089 = vadd.f32 %v1619, %v1896
      %v2090 = vadd.f32 %v1620, %v1900
      %v2091 = vadd.f32 %v1621, %v1902
      %v2092 = vadd.f32 %v1622, %v1906
      %v2093 = vadd.f32 %v1623, %v1908
      %v2094 = vadd.f32 %v1624, %v1912
      %v2095 = vadd.f32 %v1625, %v1914
      %v2096 = vadd.f32 %v1626, %v1918
      %v2097 = vadd.f32 %v1627, %v1920
      %v2098 = vadd.f32 %v1628, %v1924
      %v2099 = vadd.f32 %v1629, %v1926
      %v2100 = vadd.f32 %v1630, %v1930
      %v2101 = vadd.f32 %v1631, %v1932
      %v2102 = vadd.f32 %v1632, %v1936
      %v2103 = vadd.f32 %v1633, %v1938
      %v2104 = vadd.f32 %v1634, %v1942
      %v2105 = vadd.f32 %v1635, %v1944
      %v2106 = vadd.f32 %v1636, %v1948
      %v2107 = vadd.f32 %v1637, %v1950
      %v2108 = vadd.f32 %v1638, %v1954
      %v2109 = vadd.f32 %v1639, %v1956
      %v2110 = vadd.f32 %v1640, %v1960
      %v2111 = vadd.f32 %v1641, %v1962
      %v2112 = vadd.f32 %v1642, %v1966
      %v2113 = vadd.f32 %v1643, %v1968
      %v2114 = vadd.f32 %v1644, %v1972
      %v2115 = vadd.f32 %v1645, %v1974
      %v2116 = vadd.f32 %v1646, %v1978
      %v2117 = vadd.f32 %v1647, %v1980
      %v2118 = vadd.f32 %v1648, %v1984
      %v2119 = vadd.f32 %v1649, %v1986
      %v2120 = vadd.f32 %v1650, %v1990
      %v2121 = vadd.f32 %v1651, %v1992
      %v2122 = vadd.f32 %v1652, %v1996
      %v2123 = vadd.f32 %v1653, %v1998
      %v2124 = vadd.f32 %v1654, %v2002
      %v2125 = vadd.f32 %v1655, %v2004
      %v2126 = vadd.f32 %v1656, %v2008
      %v2127 = vadd.f32 %v1657, %v2010
      %v2128 = vadd.f32 %v1658, %v2014
      %v2129 = vadd.f32 %v1659, %v2016
      %v2130 = vadd.f32 %v1660, %v2020
      %v2131 = vadd.f32 %v1661, %v2022
      %v2132 = vadd.f32 %v1662, %v2026
      %v2133 = vadd.f32 %v1663, %v2028
      %v2134 = vadd.f32 %v1664, %v2032
      %v2135 = vadd.f32 %v1665, %v2034
      %v2136 = vadd.f32 %v1666, %v2038
      %v2137 = vadd.f32 %v1667, %v2040
      %s2138 = scalar_lea.vmem %s1, 256
      %v2139 = vld [vmem:[%s2138] sm:$0xff]
      %v2140 = vld [vmem:[%s2138 + $0x8] sm:$0xff]
      %v2141 = vld [vmem:[%s2138 + $0x10] sm:$0xff]
      %v2142 = vld [vmem:[%s2138 + $0x18] sm:$0xff]
      %v2143 = vld [vmem:[%s2138 + $0x20] sm:$0xff]
      %v2144 = vld [vmem:[%s2138 + $0x28] sm:$0xff]
      %v2145 = vld [vmem:[%s2138 + $0x30] sm:$0xf]
      %v2146 = vld [vmem:[%s2138 + $0x38] sm:$0xf]
      %v2148 = vsel %vm328, %v309, 0
      %v2151 = vsel %vm328, %v310, 0
      %v2154 = vsel %vm473, %v2145, 0
      %v2157 = vsel %vm473, %v2146, 0
      %2159 = vmatprep.subr.mxu0 0.0
      %2160 = vmatpush1.msra.mxu0 0.0
      %2161 = vmatprep.subr.mxu0 0.0
      %2162 = vmatpush1.msra.mxu0 0.0
      %2163 = vmatprep.subr.mxu0 0.0
      %2164 = vmatpush1.msra.mxu0 0.0
      %2165 = vmatprep.subr.mxu0 0.0
      %2166 = vmatpush1.msra.mxu0 0.0
      %2167 = vmatprep.subr.mxu0 0.0
      %2168 = vmatpush1.msra.mxu0 0.0
      %2169 = vmatprep.subr.mxu0 0.0
      %2170 = vmatpush1.msra.mxu0 0.0
      %2171 = vmatprep.subr.mxu0 0.0
      %2172 = vmatpush1.msra.mxu0 0.0
      %2173 = vmatprep.subr.mxu0 0.0
      %2174 = vmatpush1.msra.mxu0 0.0
      %2175 = vmatprep.subr.mxu0 0.0
      %2176 = vmatpush1.msra.mxu0 0.0
      %2177 = vmatprep.subr.mxu0 0.0
      %2178 = vmatpush1.msra.mxu0 0.0
      %2179 = vmatprep.subr.mxu0 0.0
      %2180 = vmatpush1.msra.mxu0 0.0
      %2181 = vmatprep.subr.mxu0 0.0
      %2182 = vmatpush1.msra.mxu0 0.0
      %2183 = vmatprep.subr.mxu0 %v2157
      %2184 = vmatpush1.msra.mxu0 %v2154
      %2185 = vmatprep.subr.mxu0 %v2144
      %2186 = vmatpush1.msra.mxu0 %v2143
      %2187 = vmatprep.subr.mxu0 %v2142
      %2188 = vmatpush1.msra.mxu0 %v2141
      %2189 = vmatprep.subr.mxu0 %v2140
      %2190 = vmatpush1.msra.mxu0 %v2139
      %2191 = vmatprep.subr.mxu0 0.0
      %2192 = vmatpush2.msra.mxu0 0.0
      %2193 = vmatprep.subr.mxu0 0.0
      %2194 = vmatpush2.msra.mxu0 0.0
      %2195 = vmatprep.subr.mxu0 0.0
      %2196 = vmatpush2.msra.mxu0 0.0
      %2197 = vmatprep.subr.mxu0 0.0
      %2198 = vmatpush2.msra.mxu0 0.0
      %2199 = vmatprep.subr.mxu0 0.0
      %2200 = vmatpush2.msra.mxu0 0.0
      %2201 = vmatprep.subr.mxu0 0.0
      %2202 = vmatpush2.msra.mxu0 0.0
      %2203 = vmatprep.subr.mxu0 0.0
      %2204 = vmatpush2.msra.mxu0 0.0
      %2205 = vmatprep.subr.mxu0 0.0
      %2206 = vmatpush2.msra.mxu0 0.0
      %2207 = vmatprep.subr.mxu0 0.0
      %2208 = vmatpush2.msra.mxu0 0.0
      %2209 = vmatprep.subr.mxu0 0.0
      %2210 = vmatpush2.msra.mxu0 0.0
      %2211 = vmatprep.subr.mxu0 0.0
      %2212 = vmatpush2.msra.mxu0 0.0
      %2213 = vmatprep.subr.mxu0 0.0
      %2214 = vmatpush2.msra.mxu0 0.0
      %2215 = vmatprep.subr.mxu0 0.0
      %2216 = vmatpush2.msra.mxu0 0.0
      %2217 = vmatprep.subr.mxu0 0.0
      %2218 = vmatpush2.msra.mxu0 0.0
      %2219 = vmatprep.subr.mxu0 0.0
      %2220 = vmatpush2.msra.mxu0 0.0
      %2221 = vmatprep.subr.mxu0 0.0
      %2222 = vmatpush2.msra.mxu0 0.0
      %2223 = vmatprep.mubr.f32.mxu0 0.0
      %2224 = vmatmul.mubr.f32.gmra.mxu0 %v348
      %v2225 = vpop.f32.mrf.mxu0
      %v2226 = vadd.f32 0.0, %v2225
      %v2227 = vpop.f32.mrf.mxu0
      %v2228 = vadd.f32 0.0, %v2227
      %2229 = vmatprep.mubr.f32.mxu0 0.0
      %2230 = vmatmul.mubr.f32.gmra.mxu0 %v351
      %v2231 = vpop.f32.mrf.mxu0
      %v2232 = vadd.f32 0.0, %v2231
      %v2233 = vpop.f32.mrf.mxu0
      %v2234 = vadd.f32 0.0, %v2233
      %2235 = vmatprep.mubr.f32.mxu0 0.0
      %2236 = vmatmul.mubr.f32.gmra.mxu0 %v354
      %v2237 = vpop.f32.mrf.mxu0
      %v2238 = vadd.f32 0.0, %v2237
      %v2239 = vpop.f32.mrf.mxu0
      %v2240 = vadd.f32 0.0, %v2239
      %2241 = vmatprep.mubr.f32.mxu0 0.0
      %2242 = vmatmul.mubr.f32.gmra.mxu0 %v357
      %v2243 = vpop.f32.mrf.mxu0
      %v2244 = vadd.f32 0.0, %v2243
      %v2245 = vpop.f32.mrf.mxu0
      %v2246 = vadd.f32 0.0, %v2245
      %2247 = vmatprep.mubr.f32.mxu0 0.0
      %2248 = vmatmul.mubr.f32.gmra.mxu0 %v360
      %v2249 = vpop.f32.mrf.mxu0
      %v2250 = vadd.f32 0.0, %v2249
      %v2251 = vpop.f32.mrf.mxu0
      %v2252 = vadd.f32 0.0, %v2251
      %2253 = vmatprep.mubr.f32.mxu0 0.0
      %2254 = vmatmul.mubr.f32.gmra.mxu0 %v363
      %v2255 = vpop.f32.mrf.mxu0
      %v2256 = vadd.f32 0.0, %v2255
      %v2257 = vpop.f32.mrf.mxu0
      %v2258 = vadd.f32 0.0, %v2257
      %2259 = vmatprep.mubr.f32.mxu0 0.0
      %2260 = vmatmul.mubr.f32.gmra.mxu0 %v366
      %v2261 = vpop.f32.mrf.mxu0
      %v2262 = vadd.f32 0.0, %v2261
      %v2263 = vpop.f32.mrf.mxu0
      %v2264 = vadd.f32 0.0, %v2263
      %2265 = vmatprep.mubr.f32.mxu0 0.0
      %2266 = vmatmul.mubr.f32.gmra.mxu0 %v369
      %v2267 = vpop.f32.mrf.mxu0
      %v2268 = vadd.f32 0.0, %v2267
      %v2269 = vpop.f32.mrf.mxu0
      %v2270 = vadd.f32 0.0, %v2269
      %2271 = vmatprep.mubr.f32.mxu0 0.0
      %2272 = vmatmul.mubr.f32.gmra.mxu0 %v372
      %v2273 = vpop.f32.mrf.mxu0
      %v2274 = vadd.f32 0.0, %v2273
      %v2275 = vpop.f32.mrf.mxu0
      %v2276 = vadd.f32 0.0, %v2275
      %2277 = vmatprep.mubr.f32.mxu0 0.0
      %2278 = vmatmul.mubr.f32.gmra.mxu0 %v375
      %v2279 = vpop.f32.mrf.mxu0
      %v2280 = vadd.f32 0.0, %v2279
      %v2281 = vpop.f32.mrf.mxu0
      %v2282 = vadd.f32 0.0, %v2281
      %2283 = vmatprep.mubr.f32.mxu0 0.0
      %2284 = vmatmul.mubr.f32.gmra.mxu0 %v378
      %v2285 = vpop.f32.mrf.mxu0
      %v2286 = vadd.f32 0.0, %v2285
      %v2287 = vpop.f32.mrf.mxu0
      %v2288 = vadd.f32 0.0, %v2287
      %2289 = vmatprep.mubr.f32.mxu0 0.0
      %2290 = vmatmul.mubr.f32.gmra.mxu0 %v381
      %v2291 = vpop.f32.mrf.mxu0
      %v2292 = vadd.f32 0.0, %v2291
      %v2293 = vpop.f32.mrf.mxu0
      %v2294 = vadd.f32 0.0, %v2293
      %2295 = vmatprep.mubr.f32.mxu0 0.0
      %2296 = vmatmul.mubr.f32.gmra.mxu0 %v384
      %v2297 = vpop.f32.mrf.mxu0
      %v2298 = vadd.f32 0.0, %v2297
      %v2299 = vpop.f32.mrf.mxu0
      %v2300 = vadd.f32 0.0, %v2299
      %2301 = vmatprep.mubr.f32.mxu0 0.0
      %2302 = vmatmul.mubr.f32.gmra.mxu0 %v387
      %v2303 = vpop.f32.mrf.mxu0
      %v2304 = vadd.f32 0.0, %v2303
      %v2305 = vpop.f32.mrf.mxu0
      %v2306 = vadd.f32 0.0, %v2305
      %2307 = vmatprep.mubr.f32.mxu0 0.0
      %2308 = vmatmul.mubr.f32.gmra.mxu0 %v390
      %v2309 = vpop.f32.mrf.mxu0
      %v2310 = vadd.f32 0.0, %v2309
      %v2311 = vpop.f32.mrf.mxu0
      %v2312 = vadd.f32 0.0, %v2311
      %2313 = vmatprep.mubr.f32.mxu0 0.0
      %2314 = vmatmul.mubr.f32.gmra.mxu0 %v393
      %v2315 = vpop.f32.mrf.mxu0
      %v2316 = vadd.f32 0.0, %v2315
      %v2317 = vpop.f32.mrf.mxu0
      %v2318 = vadd.f32 0.0, %v2317
      %2319 = vmatprep.mubr.f32.mxu0 0.0
      %2320 = vmatmul.mubr.f32.gmra.mxu0 %v396
      %v2321 = vpop.f32.mrf.mxu0
      %v2322 = vadd.f32 0.0, %v2321
      %v2323 = vpop.f32.mrf.mxu0
      %v2324 = vadd.f32 0.0, %v2323
      %2325 = vmatprep.mubr.f32.mxu0 0.0
      %2326 = vmatmul.mubr.f32.gmra.mxu0 %v399
      %v2327 = vpop.f32.mrf.mxu0
      %v2328 = vadd.f32 0.0, %v2327
      %v2329 = vpop.f32.mrf.mxu0
      %v2330 = vadd.f32 0.0, %v2329
      %2331 = vmatprep.mubr.f32.mxu0 0.0
      %2332 = vmatmul.mubr.f32.gmra.mxu0 %v402
      %v2333 = vpop.f32.mrf.mxu0
      %v2334 = vadd.f32 0.0, %v2333
      %v2335 = vpop.f32.mrf.mxu0
      %v2336 = vadd.f32 0.0, %v2335
      %2337 = vmatprep.mubr.f32.mxu0 0.0
      %2338 = vmatmul.mubr.f32.gmra.mxu0 %v405
      %v2339 = vpop.f32.mrf.mxu0
      %v2340 = vadd.f32 0.0, %v2339
      %v2341 = vpop.f32.mrf.mxu0
      %v2342 = vadd.f32 0.0, %v2341
      %2343 = vmatprep.mubr.f32.mxu0 0.0
      %2344 = vmatmul.mubr.f32.gmra.mxu0 %v408
      %v2345 = vpop.f32.mrf.mxu0
      %v2346 = vadd.f32 0.0, %v2345
      %v2347 = vpop.f32.mrf.mxu0
      %v2348 = vadd.f32 0.0, %v2347
      %2349 = vmatprep.mubr.f32.mxu0 0.0
      %2350 = vmatmul.mubr.f32.gmra.mxu0 %v411
      %v2351 = vpop.f32.mrf.mxu0
      %v2352 = vadd.f32 0.0, %v2351
      %v2353 = vpop.f32.mrf.mxu0
      %v2354 = vadd.f32 0.0, %v2353
      %2355 = vmatprep.mubr.f32.mxu0 0.0
      %2356 = vmatmul.mubr.f32.gmra.mxu0 %v414
      %v2357 = vpop.f32.mrf.mxu0
      %v2358 = vadd.f32 0.0, %v2357
      %v2359 = vpop.f32.mrf.mxu0
      %v2360 = vadd.f32 0.0, %v2359
      %2361 = vmatprep.mubr.f32.mxu0 0.0
      %2362 = vmatmul.mubr.f32.gmra.mxu0 %v417
      %v2363 = vpop.f32.mrf.mxu0
      %v2364 = vadd.f32 0.0, %v2363
      %v2365 = vpop.f32.mrf.mxu0
      %v2366 = vadd.f32 0.0, %v2365
      %2367 = vmatprep.mubr.f32.mxu0 0.0
      %2368 = vmatmul.mubr.f32.gmra.mxu0 %v420
      %v2369 = vpop.f32.mrf.mxu0
      %v2370 = vadd.f32 0.0, %v2369
      %v2371 = vpop.f32.mrf.mxu0
      %v2372 = vadd.f32 0.0, %v2371
      %2373 = vmatprep.mubr.f32.mxu0 0.0
      %2374 = vmatmul.mubr.f32.gmra.mxu0 %v423
      %v2375 = vpop.f32.mrf.mxu0
      %v2376 = vadd.f32 0.0, %v2375
      %v2377 = vpop.f32.mrf.mxu0
      %v2378 = vadd.f32 0.0, %v2377
      %2379 = vmatprep.mubr.f32.mxu0 0.0
      %2380 = vmatmul.mubr.f32.gmra.mxu0 %v426
      %v2381 = vpop.f32.mrf.mxu0
      %v2382 = vadd.f32 0.0, %v2381
      %v2383 = vpop.f32.mrf.mxu0
      %v2384 = vadd.f32 0.0, %v2383
      %2385 = vmatprep.mubr.f32.mxu0 0.0
      %2386 = vmatmul.mubr.f32.gmra.mxu0 %v429
      %v2387 = vpop.f32.mrf.mxu0
      %v2388 = vadd.f32 0.0, %v2387
      %v2389 = vpop.f32.mrf.mxu0
      %v2390 = vadd.f32 0.0, %v2389
      %2391 = vmatprep.mubr.f32.mxu0 0.0
      %2392 = vmatmul.mubr.f32.gmra.mxu0 %v432
      %v2393 = vpop.f32.mrf.mxu0
      %v2394 = vadd.f32 0.0, %v2393
      %v2395 = vpop.f32.mrf.mxu0
      %v2396 = vadd.f32 0.0, %v2395
      %2397 = vmatprep.mubr.f32.mxu0 0.0
      %2398 = vmatmul.mubr.f32.gmra.mxu0 %v435
      %v2399 = vpop.f32.mrf.mxu0
      %v2400 = vadd.f32 0.0, %v2399
      %v2401 = vpop.f32.mrf.mxu0
      %v2402 = vadd.f32 0.0, %v2401
      %2403 = vmatprep.mubr.f32.mxu0 0.0
      %2404 = vmatmul.mubr.f32.gmra.mxu0 %v438
      %v2405 = vpop.f32.mrf.mxu0
      %v2406 = vadd.f32 0.0, %v2405
      %v2407 = vpop.f32.mrf.mxu0
      %v2408 = vadd.f32 0.0, %v2407
      %2409 = vmatprep.mubr.f32.mxu0 0.0
      %2410 = vmatmul.mubr.f32.gmra.mxu0 %v441
      %v2411 = vpop.f32.mrf.mxu0
      %v2412 = vadd.f32 0.0, %v2411
      %v2413 = vpop.f32.mrf.mxu0
      %v2414 = vadd.f32 0.0, %v2413
      %2415 = vmatprep.mubr.f32.mxu0 0.0
      %2416 = vmatmul.mubr.f32.gmra.mxu0 %v444
      %v2417 = vpop.f32.mrf.mxu0
      %v2418 = vadd.f32 0.0, %v2417
      %v2419 = vpop.f32.mrf.mxu0
      %v2420 = vadd.f32 0.0, %v2419
      %2421 = vmatprep.mubr.f32.mxu0 0.0
      %2422 = vmatmul.mubr.f32.gmra.mxu0 %v447
      %v2423 = vpop.f32.mrf.mxu0
      %v2424 = vadd.f32 0.0, %v2423
      %v2425 = vpop.f32.mrf.mxu0
      %v2426 = vadd.f32 0.0, %v2425
      %2427 = vmatprep.mubr.f32.mxu0 0.0
      %2428 = vmatmul.mubr.f32.gmra.mxu0 %v450
      %v2429 = vpop.f32.mrf.mxu0
      %v2430 = vadd.f32 0.0, %v2429
      %v2431 = vpop.f32.mrf.mxu0
      %v2432 = vadd.f32 0.0, %v2431
      %2433 = vmatprep.mubr.f32.mxu0 0.0
      %2434 = vmatmul.mubr.f32.gmra.mxu0 %v453
      %v2435 = vpop.f32.mrf.mxu0
      %v2436 = vadd.f32 0.0, %v2435
      %v2437 = vpop.f32.mrf.mxu0
      %v2438 = vadd.f32 0.0, %v2437
      %2439 = vmatprep.mubr.f32.mxu0 0.0
      %2440 = vmatmul.mubr.f32.gmra.mxu0 %v456
      %v2441 = vpop.f32.mrf.mxu0
      %v2442 = vadd.f32 0.0, %v2441
      %v2443 = vpop.f32.mrf.mxu0
      %v2444 = vadd.f32 0.0, %v2443
      %2445 = vmatprep.mubr.f32.mxu0 0.0
      %2446 = vmatmul.mubr.f32.gmra.mxu0 %v459
      %v2447 = vpop.f32.mrf.mxu0
      %v2448 = vadd.f32 0.0, %v2447
      %v2449 = vpop.f32.mrf.mxu0
      %v2450 = vadd.f32 0.0, %v2449
      %2451 = vmatprep.mubr.f32.mxu0 0.0
      %2452 = vmatmul.mubr.f32.gmra.mxu0 %v462
      %v2453 = vpop.f32.mrf.mxu0
      %v2454 = vadd.f32 0.0, %v2453
      %v2455 = vpop.f32.mrf.mxu0
      %v2456 = vadd.f32 0.0, %v2455
      %2457 = vmatprep.mubr.f32.mxu0 0.0
      %2458 = vmatmul.mubr.f32.gmra.mxu0 %v465
      %v2459 = vpop.f32.mrf.mxu0
      %v2460 = vadd.f32 0.0, %v2459
      %v2461 = vpop.f32.mrf.mxu0
      %v2462 = vadd.f32 0.0, %v2461
      %2463 = vmatprep.mubr.f32.mxu0 0.0
      %2464 = vmatmul.mubr.f32.gmra.mxu0 %v468
      %v2465 = vpop.f32.mrf.mxu0
      %v2466 = vadd.f32 0.0, %v2465
      %v2467 = vpop.f32.mrf.mxu0
      %v2468 = vadd.f32 0.0, %v2467
      %2469 = vmatprep.mubr.f32.mxu0 0.0
      %2470 = vmatmul.mubr.f32.gmra.mxu0 %v471
      %v2471 = vpop.f32.mrf.mxu0
      %v2472 = vadd.f32 0.0, %v2471
      %v2473 = vpop.f32.mrf.mxu0
      %v2474 = vadd.f32 0.0, %v2473
      %2475 = vmatprep.mubr.f32.mxu0 0.0
      %2476 = vmatmul.mubr.f32.gmra.mxu0 %v1208
      %v2477 = vpop.f32.mrf.mxu0
      %v2478 = vadd.f32 0.0, %v2477
      %v2479 = vpop.f32.mrf.mxu0
      %v2480 = vadd.f32 0.0, %v2479
      %2481 = vmatprep.mubr.f32.mxu0 0.0
      %2482 = vmatmul.mubr.f32.gmra.mxu0 %v1211
      %v2483 = vpop.f32.mrf.mxu0
      %v2484 = vadd.f32 0.0, %v2483
      %v2485 = vpop.f32.mrf.mxu0
      %v2486 = vadd.f32 0.0, %v2485
      %2487 = vmatprep.mubr.f32.mxu0 0.0
      %2488 = vmatmul.mubr.f32.gmra.mxu0 %v1678
      %v2489 = vpop.f32.mrf.mxu0
      %v2490 = vadd.f32 0.0, %v2489
      %v2491 = vpop.f32.mrf.mxu0
      %v2492 = vadd.f32 0.0, %v2491
      %2493 = vmatprep.mubr.f32.mxu0 0.0
      %2494 = vmatmul.mubr.f32.gmra.mxu0 %v1681
      %v2495 = vpop.f32.mrf.mxu0
      %v2496 = vadd.f32 0.0, %v2495
      %v2497 = vpop.f32.mrf.mxu0
      %v2498 = vadd.f32 0.0, %v2497
      %2499 = vmatprep.mubr.f32.mxu0 0.0
      %2500 = vmatmul.mubr.f32.gmra.mxu0 %v2148
      %v2501 = vpop.f32.mrf.mxu0
      %v2502 = vadd.f32 0.0, %v2501
      %v2503 = vpop.f32.mrf.mxu0
      %v2504 = vadd.f32 0.0, %v2503
      %2505 = vmatprep.mubr.f32.mxu0 0.0
      %2506 = vmatmul.mubr.f32.gmra.mxu0 %v2151
      %v2507 = vpop.f32.mrf.mxu0
      %v2508 = vadd.f32 0.0, %v2507
      %v2509 = vpop.f32.mrf.mxu0
      %v2510 = vadd.f32 0.0, %v2509
      %2511 = vdwg.mxu0
      %v2512 = vadd.f32 %v2042, %v2226
      %v2513 = vadd.f32 %v2043, %v2228
      %v2514 = vadd.f32 %v2044, %v2232
      %v2515 = vadd.f32 %v2045, %v2234
      %v2516 = vadd.f32 %v2046, %v2238
      %v2517 = vadd.f32 %v2047, %v2240
      %v2518 = vadd.f32 %v2048, %v2244
      %v2519 = vadd.f32 %v2049, %v2246
      %v2520 = vadd.f32 %v2050, %v2250
      %v2521 = vadd.f32 %v2051, %v2252
      %v2522 = vadd.f32 %v2052, %v2256
      %v2523 = vadd.f32 %v2053, %v2258
      %v2524 = vadd.f32 %v2054, %v2262
      %v2525 = vadd.f32 %v2055, %v2264
      %v2526 = vadd.f32 %v2056, %v2268
      %v2527 = vadd.f32 %v2057, %v2270
      %v2528 = vadd.f32 %v2058, %v2274
      %v2529 = vadd.f32 %v2059, %v2276
      %v2530 = vadd.f32 %v2060, %v2280
      %v2531 = vadd.f32 %v2061, %v2282
      %v2532 = vadd.f32 %v2062, %v2286
      %v2533 = vadd.f32 %v2063, %v2288
      %v2534 = vadd.f32 %v2064, %v2292
      %v2535 = vadd.f32 %v2065, %v2294
      %v2536 = vadd.f32 %v2066, %v2298
      %v2537 = vadd.f32 %v2067, %v2300
      %v2538 = vadd.f32 %v2068, %v2304
      %v2539 = vadd.f32 %v2069, %v2306
      %v2540 = vadd.f32 %v2070, %v2310
      %v2541 = vadd.f32 %v2071, %v2312
      %v2542 = vadd.f32 %v2072, %v2316
      %v2543 = vadd.f32 %v2073, %v2318
      %v2544 = vadd.f32 %v2074, %v2322
      %v2545 = vadd.f32 %v2075, %v2324
      %v2546 = vadd.f32 %v2076, %v2328
      %v2547 = vadd.f32 %v2077, %v2330
      %v2548 = vadd.f32 %v2078, %v2334
      %v2549 = vadd.f32 %v2079, %v2336
      %v2550 = vadd.f32 %v2080, %v2340
      %v2551 = vadd.f32 %v2081, %v2342
      %v2552 = vadd.f32 %v2082, %v2346
      %v2553 = vadd.f32 %v2083, %v2348
      %v2554 = vadd.f32 %v2084, %v2352
      %v2555 = vadd.f32 %v2085, %v2354
      %v2556 = vadd.f32 %v2086, %v2358
      %v2557 = vadd.f32 %v2087, %v2360
      %v2558 = vadd.f32 %v2088, %v2364
      %v2559 = vadd.f32 %v2089, %v2366
      %v2560 = vadd.f32 %v2090, %v2370
      %v2561 = vadd.f32 %v2091, %v2372
      %v2562 = vadd.f32 %v2092, %v2376
      %v2563 = vadd.f32 %v2093, %v2378
      %v2564 = vadd.f32 %v2094, %v2382
      %v2565 = vadd.f32 %v2095, %v2384
      %v2566 = vadd.f32 %v2096, %v2388
      %v2567 = vadd.f32 %v2097, %v2390
      %v2568 = vadd.f32 %v2098, %v2394
      %v2569 = vadd.f32 %v2099, %v2396
      %v2570 = vadd.f32 %v2100, %v2400
      %v2571 = vadd.f32 %v2101, %v2402
      %v2572 = vadd.f32 %v2102, %v2406
      %v2573 = vadd.f32 %v2103, %v2408
      %v2574 = vadd.f32 %v2104, %v2412
      %v2575 = vadd.f32 %v2105, %v2414
      %v2576 = vadd.f32 %v2106, %v2418
      %v2577 = vadd.f32 %v2107, %v2420
      %v2578 = vadd.f32 %v2108, %v2424
      %v2579 = vadd.f32 %v2109, %v2426
      %v2580 = vadd.f32 %v2110, %v2430
      %v2581 = vadd.f32 %v2111, %v2432
      %v2582 = vadd.f32 %v2112, %v2436
      %v2583 = vadd.f32 %v2113, %v2438
      %v2584 = vadd.f32 %v2114, %v2442
      %v2585 = vadd.f32 %v2115, %v2444
      %v2586 = vadd.f32 %v2116, %v2448
      %v2587 = vadd.f32 %v2117, %v2450
      %v2588 = vadd.f32 %v2118, %v2454
      %v2589 = vadd.f32 %v2119, %v2456
      %v2590 = vadd.f32 %v2120, %v2460
      %v2591 = vadd.f32 %v2121, %v2462
      %v2592 = vadd.f32 %v2122, %v2466
      %v2593 = vadd.f32 %v2123, %v2468
      %v2594 = vadd.f32 %v2124, %v2472
      %v2595 = vadd.f32 %v2125, %v2474
      %v2596 = vadd.f32 %v2126, %v2478
      %v2597 = vadd.f32 %v2127, %v2480
      %v2598 = vadd.f32 %v2128, %v2484
      %v2599 = vadd.f32 %v2129, %v2486
      %v2600 = vadd.f32 %v2130, %v2490
      %v2601 = vadd.f32 %v2131, %v2492
      %v2602 = vadd.f32 %v2132, %v2496
      %v2603 = vadd.f32 %v2133, %v2498
      %v2604 = vadd.f32 %v2134, %v2502
      %v2605 = vadd.f32 %v2135, %v2504
      %v2606 = vadd.f32 %v2136, %v2508
      %v2607 = vadd.f32 %v2137, %v2510
      %v2608 = vmax.f32 %v2512, %v2513
      %v2609 = vmax.f32 %v2514, %v2515
      %v2610 = vmax.f32 %v2516, %v2517
      %v2611 = vmax.f32 %v2518, %v2519
      %v2612 = vmax.f32 %v2520, %v2521
      %v2613 = vmax.f32 %v2522, %v2523
      %v2614 = vmax.f32 %v2524, %v2525
      %v2615 = vmax.f32 %v2526, %v2527
      %v2616 = vmax.f32 %v2528, %v2529
      %v2617 = vmax.f32 %v2530, %v2531
      %v2618 = vmax.f32 %v2532, %v2533
      %v2619 = vmax.f32 %v2534, %v2535
      %v2620 = vmax.f32 %v2536, %v2537
      %v2621 = vmax.f32 %v2538, %v2539
      %v2622 = vmax.f32 %v2540, %v2541
      %v2623 = vmax.f32 %v2542, %v2543
      %v2624 = vmax.f32 %v2544, %v2545
      %v2625 = vmax.f32 %v2546, %v2547
      %v2626 = vmax.f32 %v2548, %v2549
      %v2627 = vmax.f32 %v2550, %v2551
      %v2628 = vmax.f32 %v2552, %v2553
      %v2629 = vmax.f32 %v2554, %v2555
      %v2630 = vmax.f32 %v2556, %v2557
      %v2631 = vmax.f32 %v2558, %v2559
      %v2632 = vmax.f32 %v2560, %v2561
      %v2633 = vmax.f32 %v2562, %v2563
      %v2634 = vmax.f32 %v2564, %v2565
      %v2635 = vmax.f32 %v2566, %v2567
      %v2636 = vmax.f32 %v2568, %v2569
      %v2637 = vmax.f32 %v2570, %v2571
      %v2638 = vmax.f32 %v2572, %v2573
      %v2639 = vmax.f32 %v2574, %v2575
      %v2640 = vmax.f32 %v2576, %v2577
      %v2641 = vmax.f32 %v2578, %v2579
      %v2642 = vmax.f32 %v2580, %v2581
      %v2643 = vmax.f32 %v2582, %v2583
      %v2644 = vmax.f32 %v2584, %v2585
      %v2645 = vmax.f32 %v2586, %v2587
      %v2646 = vmax.f32 %v2588, %v2589
      %v2647 = vmax.f32 %v2590, %v2591
      %v2648 = vmax.f32 %v2592, %v2593
      %v2649 = vmax.f32 %v2594, %v2595
      %v2650 = vmax.f32 %v2596, %v2597
      %v2651 = vmax.f32 %v2598, %v2599
      %v2652 = vmax.f32 %v2600, %v2601
      %v2653 = vmax.f32 %v2602, %v2603
      %v2654 = vmax.f32 %v2604, %v2605
      %v2655 = vmax.f32 %v2606, %v2607
      %v2656 = vmax.f32 %v2608, %v2610
      %v2657 = vmax.f32 %v2609, %v2611
      %v2658 = vmax.f32 %v2612, %v2614
      %v2659 = vmax.f32 %v2613, %v2615
      %v2660 = vmax.f32 %v2616, %v2618
      %v2661 = vmax.f32 %v2617, %v2619
      %v2662 = vmax.f32 %v2620, %v2622
      %v2663 = vmax.f32 %v2621, %v2623
      %v2664 = vmax.f32 %v2624, %v2626
      %v2665 = vmax.f32 %v2625, %v2627
      %v2666 = vmax.f32 %v2628, %v2630
      %v2667 = vmax.f32 %v2629, %v2631
      %v2668 = vmax.f32 %v2632, %v2634
      %v2669 = vmax.f32 %v2633, %v2635
      %v2670 = vmax.f32 %v2636, %v2638
      %v2671 = vmax.f32 %v2637, %v2639
      %v2672 = vmax.f32 %v2640, %v2642
      %v2673 = vmax.f32 %v2641, %v2643
      %v2674 = vmax.f32 %v2644, %v2646
      %v2675 = vmax.f32 %v2645, %v2647
      %v2676 = vmax.f32 %v2648, %v2650
      %v2677 = vmax.f32 %v2649, %v2651
      %v2678 = vmax.f32 %v2652, %v2654
      %v2679 = vmax.f32 %v2653, %v2655
      %v2680 = vld [vmem:[%s5] sm:$0x1]
      %v2681 = vlaneseq
      %v2682 = vshrl.u32 %v2681, 7
      %v2683 = vsub.s32 0, %v2682
      %v2684 = vrot.slane %v2680, %v2683
      %v2685 = vadd.f32 %v2656, %v2684
      %v2686 = vadd.f32 %v2657, %v2684
      %v2687 = vadd.f32 %v2658, %v2684
      %v2688 = vadd.f32 %v2659, %v2684
      %v2689 = vadd.f32 %v2660, %v2684
      %v2690 = vadd.f32 %v2661, %v2684
      %v2691 = vadd.f32 %v2662, %v2684
      %v2692 = vadd.f32 %v2663, %v2684
      %v2693 = vadd.f32 %v2664, %v2684
      %v2694 = vadd.f32 %v2665, %v2684
      %v2695 = vadd.f32 %v2666, %v2684
      %v2696 = vadd.f32 %v2667, %v2684
      %v2697 = vadd.f32 %v2668, %v2684
      %v2698 = vadd.f32 %v2669, %v2684
      %v2699 = vadd.f32 %v2670, %v2684
      %v2700 = vadd.f32 %v2671, %v2684
      %v2701 = vadd.f32 %v2672, %v2684
      %v2702 = vadd.f32 %v2673, %v2684
      %v2703 = vadd.f32 %v2674, %v2684
      %v2704 = vadd.f32 %v2675, %v2684
      %v2705 = vadd.f32 %v2676, %v2684
      %v2706 = vadd.f32 %v2677, %v2684
      %v2707 = vadd.f32 %v2678, %v2684
      %v2708 = vadd.f32 %v2679, %v2684
      %v2709 = vmax.f32 %v2685, 0.0
      %v2710 = vmax.f32 %v2686, 0.0
      %v2711 = vmax.f32 %v2687, 0.0
      %v2712 = vmax.f32 %v2688, 0.0
      %v2713 = vmax.f32 %v2689, 0.0
      %v2714 = vmax.f32 %v2690, 0.0
      %v2715 = vmax.f32 %v2691, 0.0
      %v2716 = vmax.f32 %v2692, 0.0
      %v2717 = vmax.f32 %v2693, 0.0
      %v2718 = vmax.f32 %v2694, 0.0
      %v2719 = vmax.f32 %v2695, 0.0
      %v2720 = vmax.f32 %v2696, 0.0
      %v2721 = vmax.f32 %v2697, 0.0
      %v2722 = vmax.f32 %v2698, 0.0
      %v2723 = vmax.f32 %v2699, 0.0
      %v2724 = vmax.f32 %v2700, 0.0
      %v2725 = vmax.f32 %v2701, 0.0
      %v2726 = vmax.f32 %v2702, 0.0
      %v2727 = vmax.f32 %v2703, 0.0
      %v2728 = vmax.f32 %v2704, 0.0
      %v2729 = vmax.f32 %v2705, 0.0
      %v2730 = vmax.f32 %v2706, 0.0
      %v2731 = vmax.f32 %v2707, 0.0
      %v2732 = vmax.f32 %v2708, 0.0
      %v2733 = vld [vmem:[%s2] sm:$0xff]
      %v2734 = vld [vmem:[%s2 + $0x8] sm:$0xff]
      %v2735 = vld [vmem:[%s2 + $0x10] sm:$0xff]
      %v2736 = vld [vmem:[%s2 + $0x18] sm:$0xff]
      %v2737 = vld [vmem:[%s2 + $0x20] sm:$0xff]
      %v2738 = vld [vmem:[%s2 + $0x28] sm:$0xff]
      %v2739 = vld [vmem:[%s2 + $0x30] sm:$0xff]
      %v2740 = vld [vmem:[%s2 + $0x38] sm:$0xff]
      %v2741 = vld [vmem:[%s2 + $0x40] sm:$0xff]
      %v2742 = vld [vmem:[%s2 + $0x48] sm:$0xff]
      %v2743 = vld [vmem:[%s2 + $0x50] sm:$0xff]
      %v2744 = vld [vmem:[%s2 + $0x58] sm:$0xff]
      %v2745 = vld [vmem:[%s2 + $0x60] sm:$0xff]
      %v2746 = vld [vmem:[%s2 + $0x68] sm:$0xff]
      %v2747 = vld [vmem:[%s2 + $0x70] sm:$0xff]
      %v2748 = vld [vmem:[%s2 + $0x78] sm:$0xff]
      %v2749 = vld [vmem:[%s2 + $0x80] sm:$0xff]
      %v2750 = vld [vmem:[%s2 + $0x88] sm:$0xff]
      %v2751 = vld [vmem:[%s2 + $0x90] sm:$0xff]
      %v2752 = vld [vmem:[%s2 + $0x98] sm:$0xff]
      %v2753 = vld [vmem:[%s2 + $0xa0] sm:$0xff]
      %v2754 = vld [vmem:[%s2 + $0xa8] sm:$0xff]
      %v2755 = vld [vmem:[%s2 + $0xb0] sm:$0xff]
      %v2756 = vld [vmem:[%s2 + $0xb8] sm:$0xff]
      %v2757 = vld [vmem:[%s2 + $0xc0] sm:$0xff]
      %v2758 = vld [vmem:[%s2 + $0xc8] sm:$0xff]
      %v2759 = vld [vmem:[%s2 + $0xd0] sm:$0xff]
      %v2760 = vld [vmem:[%s2 + $0xd8] sm:$0xff]
      %v2761 = vld [vmem:[%s2 + $0xe0] sm:$0xff]
      %v2762 = vld [vmem:[%s2 + $0xe8] sm:$0xff]
      %v2763 = vld [vmem:[%s2 + $0xf0] sm:$0xff]
      %v2764 = vld [vmem:[%s2 + $0xf8] sm:$0xff]
      %s2765 = scalar_lea.vmem %s2, 256
      %v2766 = vld [vmem:[%s2765] sm:$0xff]
      %v2767 = vld [vmem:[%s2765 + $0x8] sm:$0xff]
      %v2768 = vld [vmem:[%s2765 + $0x10] sm:$0xff]
      %v2769 = vld [vmem:[%s2765 + $0x18] sm:$0xff]
      %v2770 = vld [vmem:[%s2765 + $0x20] sm:$0xff]
      %v2771 = vld [vmem:[%s2765 + $0x28] sm:$0xff]
      %v2772 = vld [vmem:[%s2765 + $0x30] sm:$0xff]
      %v2773 = vld [vmem:[%s2765 + $0x38] sm:$0xff]
      %v2774 = vld [vmem:[%s2765 + $0x40] sm:$0xff]
      %v2775 = vld [vmem:[%s2765 + $0x48] sm:$0xff]
      %v2776 = vld [vmem:[%s2765 + $0x50] sm:$0xff]
      %v2777 = vld [vmem:[%s2765 + $0x58] sm:$0xff]
      %v2778 = vld [vmem:[%s2765 + $0x60] sm:$0xff]
      %v2779 = vld [vmem:[%s2765 + $0x68] sm:$0xff]
      %v2780 = vld [vmem:[%s2765 + $0x70] sm:$0xff]
      %v2781 = vld [vmem:[%s2765 + $0x78] sm:$0xff]
      %v2782 = vld [vmem:[%s2765 + $0x80] sm:$0xff]
      %v2783 = vld [vmem:[%s2765 + $0x88] sm:$0xff]
      %v2784 = vld [vmem:[%s2765 + $0x90] sm:$0xff]
      %v2785 = vld [vmem:[%s2765 + $0x98] sm:$0xff]
      %v2786 = vld [vmem:[%s2765 + $0xa0] sm:$0xff]
      %v2787 = vld [vmem:[%s2765 + $0xa8] sm:$0xff]
      %v2788 = vld [vmem:[%s2765 + $0xb0] sm:$0xff]
      %v2789 = vld [vmem:[%s2765 + $0xb8] sm:$0xff]
      %v2790 = vld [vmem:[%s2765 + $0xc0] sm:$0xff]
      %v2791 = vld [vmem:[%s2765 + $0xc8] sm:$0xff]
      %v2792 = vld [vmem:[%s2765 + $0xd0] sm:$0xff]
      %v2793 = vld [vmem:[%s2765 + $0xd8] sm:$0xff]
      %v2794 = vld [vmem:[%s2765 + $0xe0] sm:$0xff]
      %v2795 = vld [vmem:[%s2765 + $0xe8] sm:$0xff]
      %v2796 = vld [vmem:[%s2765 + $0xf0] sm:$0xff]
      %v2797 = vld [vmem:[%s2765 + $0xf8] sm:$0xff]
      %2798 = vmatprep.subr.mxu0 %v2797
      %2799 = vmatpush1.msra.mxu0 %v2796
      %2800 = vmatprep.subr.mxu0 %v2795
      %2801 = vmatpush1.msra.mxu0 %v2794
      %2802 = vmatprep.subr.mxu0 %v2793
      %2803 = vmatpush1.msra.mxu0 %v2792
      %2804 = vmatprep.subr.mxu0 %v2791
      %2805 = vmatpush1.msra.mxu0 %v2790
      %2806 = vmatprep.subr.mxu0 %v2789
      %2807 = vmatpush1.msra.mxu0 %v2788
      %2808 = vmatprep.subr.mxu0 %v2787
      %2809 = vmatpush1.msra.mxu0 %v2786
      %2810 = vmatprep.subr.mxu0 %v2785
      %2811 = vmatpush1.msra.mxu0 %v2784
      %2812 = vmatprep.subr.mxu0 %v2783
      %2813 = vmatpush1.msra.mxu0 %v2782
      %2814 = vmatprep.subr.mxu0 %v2781
      %2815 = vmatpush1.msra.mxu0 %v2780
      %2816 = vmatprep.subr.mxu0 %v2779
      %2817 = vmatpush1.msra.mxu0 %v2778
      %2818 = vmatprep.subr.mxu0 %v2777
      %2819 = vmatpush1.msra.mxu0 %v2776
      %2820 = vmatprep.subr.mxu0 %v2775
      %2821 = vmatpush1.msra.mxu0 %v2774
      %2822 = vmatprep.subr.mxu0 %v2773
      %2823 = vmatpush1.msra.mxu0 %v2772
      %2824 = vmatprep.subr.mxu0 %v2771
      %2825 = vmatpush1.msra.mxu0 %v2770
      %2826 = vmatprep.subr.mxu0 %v2769
      %2827 = vmatpush1.msra.mxu0 %v2768
      %2828 = vmatprep.subr.mxu0 %v2767
      %2829 = vmatpush1.msra.mxu0 %v2766
      %2830 = vmatprep.subr.mxu0 0.0
      %2831 = vmatpush2.msra.mxu0 0.0
      %2832 = vmatprep.subr.mxu0 0.0
      %2833 = vmatpush2.msra.mxu0 0.0
      %2834 = vmatprep.subr.mxu0 0.0
      %2835 = vmatpush2.msra.mxu0 0.0
      %2836 = vmatprep.subr.mxu0 0.0
      %2837 = vmatpush2.msra.mxu0 0.0
      %2838 = vmatprep.subr.mxu0 0.0
      %2839 = vmatpush2.msra.mxu0 0.0
      %2840 = vmatprep.subr.mxu0 0.0
      %2841 = vmatpush2.msra.mxu0 0.0
      %2842 = vmatprep.subr.mxu0 0.0
      %2843 = vmatpush2.msra.mxu0 0.0
      %2844 = vmatprep.subr.mxu0 0.0
      %2845 = vmatpush2.msra.mxu0 0.0
      %2846 = vmatprep.subr.mxu0 0.0
      %2847 = vmatpush2.msra.mxu0 0.0
      %2848 = vmatprep.subr.mxu0 0.0
      %2849 = vmatpush2.msra.mxu0 0.0
      %2850 = vmatprep.subr.mxu0 0.0
      %2851 = vmatpush2.msra.mxu0 0.0
      %2852 = vmatprep.subr.mxu0 0.0
      %2853 = vmatpush2.msra.mxu0 0.0
      %2854 = vmatprep.subr.mxu0 0.0
      %2855 = vmatpush2.msra.mxu0 0.0
      %2856 = vmatprep.subr.mxu0 0.0
      %2857 = vmatpush2.msra.mxu0 0.0
      %2858 = vmatprep.subr.mxu0 0.0
      %2859 = vmatpush2.msra.mxu0 0.0
      %2860 = vmatprep.subr.mxu0 0.0
      %2861 = vmatpush2.msra.mxu0 0.0
      %2862 = vmatprep.mubr.f32.mxu0 0.0
      %2863 = vmatmul.mubr.f32.gmra.mxu0 %v2711
      %v2864 = vpop.f32.mrf.mxu0
      %v2865 = vadd.f32 0.0, %v2864
      %v2866 = vpop.f32.mrf.mxu0
      %v2867 = vadd.f32 0.0, %v2866
      %2868 = vmatprep.mubr.f32.mxu0 0.0
      %2869 = vmatmul.mubr.f32.gmra.mxu0 %v2712
      %v2870 = vpop.f32.mrf.mxu0
      %v2871 = vadd.f32 0.0, %v2870
      %v2872 = vpop.f32.mrf.mxu0
      %v2873 = vadd.f32 0.0, %v2872
      %2874 = vmatprep.mubr.f32.mxu0 0.0
      %2875 = vmatmul.mubr.f32.gmra.mxu0 %v2713
      %v2876 = vpop.f32.mrf.mxu0
      %v2877 = vadd.f32 0.0, %v2876
      %v2878 = vpop.f32.mrf.mxu0
      %v2879 = vadd.f32 0.0, %v2878
      %2880 = vmatprep.mubr.f32.mxu0 0.0
      %2881 = vmatmul.mubr.f32.gmra.mxu0 %v2714
      %v2882 = vpop.f32.mrf.mxu0
      %v2883 = vadd.f32 0.0, %v2882
      %v2884 = vpop.f32.mrf.mxu0
      %v2885 = vadd.f32 0.0, %v2884
      %2886 = vmatprep.mubr.f32.mxu0 0.0
      %2887 = vmatmul.mubr.f32.gmra.mxu0 %v2715
      %v2888 = vpop.f32.mrf.mxu0
      %v2889 = vadd.f32 0.0, %v2888
      %v2890 = vpop.f32.mrf.mxu0
      %v2891 = vadd.f32 0.0, %v2890
      %2892 = vmatprep.mubr.f32.mxu0 0.0
      %2893 = vmatmul.mubr.f32.gmra.mxu0 %v2716
      %v2894 = vpop.f32.mrf.mxu0
      %v2895 = vadd.f32 0.0, %v2894
      %v2896 = vpop.f32.mrf.mxu0
      %v2897 = vadd.f32 0.0, %v2896
      %2898 = vmatprep.mubr.f32.mxu0 0.0
      %2899 = vmatmul.mubr.f32.gmra.mxu0 %v2717
      %v2900 = vpop.f32.mrf.mxu0
      %v2901 = vadd.f32 0.0, %v2900
      %v2902 = vpop.f32.mrf.mxu0
      %v2903 = vadd.f32 0.0, %v2902
      %2904 = vmatprep.mubr.f32.mxu0 0.0
      %2905 = vmatmul.mubr.f32.gmra.mxu0 %v2718
      %v2906 = vpop.f32.mrf.mxu0
      %v2907 = vadd.f32 0.0, %v2906
      %v2908 = vpop.f32.mrf.mxu0
      %v2909 = vadd.f32 0.0, %v2908
      %2910 = vmatprep.mubr.f32.mxu0 0.0
      %2911 = vmatmul.mubr.f32.gmra.mxu0 %v2719
      %v2912 = vpop.f32.mrf.mxu0
      %v2913 = vadd.f32 0.0, %v2912
      %v2914 = vpop.f32.mrf.mxu0
      %v2915 = vadd.f32 0.0, %v2914
      %2916 = vmatprep.mubr.f32.mxu0 0.0
      %2917 = vmatmul.mubr.f32.gmra.mxu0 %v2720
      %v2918 = vpop.f32.mrf.mxu0
      %v2919 = vadd.f32 0.0, %v2918
      %v2920 = vpop.f32.mrf.mxu0
      %v2921 = vadd.f32 0.0, %v2920
      %2922 = vmatprep.mubr.f32.mxu0 0.0
      %2923 = vmatmul.mubr.f32.gmra.mxu0 %v2721
      %v2924 = vpop.f32.mrf.mxu0
      %v2925 = vadd.f32 0.0, %v2924
      %v2926 = vpop.f32.mrf.mxu0
      %v2927 = vadd.f32 0.0, %v2926
      %2928 = vmatprep.mubr.f32.mxu0 0.0
      %2929 = vmatmul.mubr.f32.gmra.mxu0 %v2722
      %v2930 = vpop.f32.mrf.mxu0
      %v2931 = vadd.f32 0.0, %v2930
      %v2932 = vpop.f32.mrf.mxu0
      %v2933 = vadd.f32 0.0, %v2932
      %2934 = vmatprep.mubr.f32.mxu0 0.0
      %2935 = vmatmul.mubr.f32.gmra.mxu0 %v2723
      %v2936 = vpop.f32.mrf.mxu0
      %v2937 = vadd.f32 0.0, %v2936
      %v2938 = vpop.f32.mrf.mxu0
      %v2939 = vadd.f32 0.0, %v2938
      %2940 = vmatprep.mubr.f32.mxu0 0.0
      %2941 = vmatmul.mubr.f32.gmra.mxu0 %v2724
      %v2942 = vpop.f32.mrf.mxu0
      %v2943 = vadd.f32 0.0, %v2942
      %v2944 = vpop.f32.mrf.mxu0
      %v2945 = vadd.f32 0.0, %v2944
      %2946 = vmatprep.mubr.f32.mxu0 0.0
      %2947 = vmatmul.mubr.f32.gmra.mxu0 %v2725
      %v2948 = vpop.f32.mrf.mxu0
      %v2949 = vadd.f32 0.0, %v2948
      %v2950 = vpop.f32.mrf.mxu0
      %v2951 = vadd.f32 0.0, %v2950
      %2952 = vmatprep.mubr.f32.mxu0 0.0
      %2953 = vmatmul.mubr.f32.gmra.mxu0 %v2726
      %v2954 = vpop.f32.mrf.mxu0
      %v2955 = vadd.f32 0.0, %v2954
      %v2956 = vpop.f32.mrf.mxu0
      %v2957 = vadd.f32 0.0, %v2956
      %2958 = vdwg.mxu0
      %2959 = vmatprep.subr.mxu0 %v2764
      %2960 = vmatpush1.msra.mxu0 %v2763
      %2961 = vmatprep.subr.mxu0 %v2762
      %2962 = vmatpush1.msra.mxu0 %v2761
      %2963 = vmatprep.subr.mxu0 %v2760
      %2964 = vmatpush1.msra.mxu0 %v2759
      %2965 = vmatprep.subr.mxu0 %v2758
      %2966 = vmatpush1.msra.mxu0 %v2757
      %2967 = vmatprep.subr.mxu0 %v2756
      %2968 = vmatpush1.msra.mxu0 %v2755
      %2969 = vmatprep.subr.mxu0 %v2754
      %2970 = vmatpush1.msra.mxu0 %v2753
      %2971 = vmatprep.subr.mxu0 %v2752
      %2972 = vmatpush1.msra.mxu0 %v2751
      %2973 = vmatprep.subr.mxu0 %v2750
      %2974 = vmatpush1.msra.mxu0 %v2749
      %2975 = vmatprep.subr.mxu0 %v2748
      %2976 = vmatpush1.msra.mxu0 %v2747
      %2977 = vmatprep.subr.mxu0 %v2746
      %2978 = vmatpush1.msra.mxu0 %v2745
      %2979 = vmatprep.subr.mxu0 %v2744
      %2980 = vmatpush1.msra.mxu0 %v2743
      %2981 = vmatprep.subr.mxu0 %v2742
      %2982 = vmatpush1.msra.mxu0 %v2741
      %2983 = vmatprep.subr.mxu0 %v2740
      %2984 = vmatpush1.msra.mxu0 %v2739
      %2985 = vmatprep.subr.mxu0 %v2738
      %2986 = vmatpush1.msra.mxu0 %v2737
      %2987 = vmatprep.subr.mxu0 %v2736
      %2988 = vmatpush1.msra.mxu0 %v2735
      %2989 = vmatprep.subr.mxu0 %v2734
      %2990 = vmatpush1.msra.mxu0 %v2733
      %2991 = vmatprep.subr.mxu0 0.0
      %2992 = vmatpush2.msra.mxu0 0.0
      %2993 = vmatprep.subr.mxu0 0.0
      %2994 = vmatpush2.msra.mxu0 0.0
      %2995 = vmatprep.subr.mxu0 0.0
      %2996 = vmatpush2.msra.mxu0 0.0
      %2997 = vmatprep.subr.mxu0 0.0
      %2998 = vmatpush2.msra.mxu0 0.0
      %2999 = vmatprep.subr.mxu0 0.0
      %3000 = vmatpush2.msra.mxu0 0.0
      %3001 = vmatprep.subr.mxu0 0.0
      %3002 = vmatpush2.msra.mxu0 0.0
      %3003 = vmatprep.subr.mxu0 0.0
      %3004 = vmatpush2.msra.mxu0 0.0
      %3005 = vmatprep.subr.mxu0 0.0
      %3006 = vmatpush2.msra.mxu0 0.0
      %3007 = vmatprep.subr.mxu0 0.0
      %3008 = vmatpush2.msra.mxu0 0.0
      %3009 = vmatprep.subr.mxu0 0.0
      %3010 = vmatpush2.msra.mxu0 0.0
      %3011 = vmatprep.subr.mxu0 0.0
      %3012 = vmatpush2.msra.mxu0 0.0
      %3013 = vmatprep.subr.mxu0 0.0
      %3014 = vmatpush2.msra.mxu0 0.0
      %3015 = vmatprep.subr.mxu0 0.0
      %3016 = vmatpush2.msra.mxu0 0.0
      %3017 = vmatprep.subr.mxu0 0.0
      %3018 = vmatpush2.msra.mxu0 0.0
      %3019 = vmatprep.subr.mxu0 0.0
      %3020 = vmatpush2.msra.mxu0 0.0
      %3021 = vmatprep.subr.mxu0 0.0
      %3022 = vmatpush2.msra.mxu0 0.0
      %3023 = vmatprep.mubr.f32.mxu0 0.0
      %3024 = vmatmul.mubr.f32.gmra.mxu0 %v2709
      %v3025 = vpop.f32.mrf.mxu0
      %v3026 = vadd.f32 %v2865, %v3025
      %v3027 = vpop.f32.mrf.mxu0
      %v3028 = vadd.f32 %v2867, %v3027
      %3029 = vmatprep.mubr.f32.mxu0 0.0
      %3030 = vmatmul.mubr.f32.gmra.mxu0 %v2710
      %v3031 = vpop.f32.mrf.mxu0
      %v3032 = vadd.f32 %v2871, %v3031
      %v3033 = vpop.f32.mrf.mxu0
      %v3034 = vadd.f32 %v2873, %v3033
      %3035 = vmatprep.mubr.f32.mxu0 0.0
      %3036 = vmatmul.mubr.f32.gmra.mxu0 %v2711
      %v3037 = vpop.f32.mrf.mxu0
      %v3038 = vadd.f32 %v2877, %v3037
      %v3039 = vpop.f32.mrf.mxu0
      %v3040 = vadd.f32 %v2879, %v3039
      %3041 = vmatprep.mubr.f32.mxu0 0.0
      %3042 = vmatmul.mubr.f32.gmra.mxu0 %v2712
      %v3043 = vpop.f32.mrf.mxu0
      %v3044 = vadd.f32 %v2883, %v3043
      %v3045 = vpop.f32.mrf.mxu0
      %v3046 = vadd.f32 %v2885, %v3045
      %3047 = vmatprep.mubr.f32.mxu0 0.0
      %3048 = vmatmul.mubr.f32.gmra.mxu0 %v2713
      %v3049 = vpop.f32.mrf.mxu0
      %v3050 = vadd.f32 %v2889, %v3049
      %v3051 = vpop.f32.mrf.mxu0
      %v3052 = vadd.f32 %v2891, %v3051
      %3053 = vmatprep.mubr.f32.mxu0 0.0
      %3054 = vmatmul.mubr.f32.gmra.mxu0 %v2714
      %v3055 = vpop.f32.mrf.mxu0
      %v3056 = vadd.f32 %v2895, %v3055
      %v3057 = vpop.f32.mrf.mxu0
      %v3058 = vadd.f32 %v2897, %v3057
      %3059 = vmatprep.mubr.f32.mxu0 0.0
      %3060 = vmatmul.mubr.f32.gmra.mxu0 %v2715
      %v3061 = vpop.f32.mrf.mxu0
      %v3062 = vadd.f32 %v2901, %v3061
      %v3063 = vpop.f32.mrf.mxu0
      %v3064 = vadd.f32 %v2903, %v3063
      %3065 = vmatprep.mubr.f32.mxu0 0.0
      %3066 = vmatmul.mubr.f32.gmra.mxu0 %v2716
      %v3067 = vpop.f32.mrf.mxu0
      %v3068 = vadd.f32 %v2907, %v3067
      %v3069 = vpop.f32.mrf.mxu0
      %v3070 = vadd.f32 %v2909, %v3069
      %3071 = vmatprep.mubr.f32.mxu0 0.0
      %3072 = vmatmul.mubr.f32.gmra.mxu0 %v2717
      %v3073 = vpop.f32.mrf.mxu0
      %v3074 = vadd.f32 %v2913, %v3073
      %v3075 = vpop.f32.mrf.mxu0
      %v3076 = vadd.f32 %v2915, %v3075
      %3077 = vmatprep.mubr.f32.mxu0 0.0
      %3078 = vmatmul.mubr.f32.gmra.mxu0 %v2718
      %v3079 = vpop.f32.mrf.mxu0
      %v3080 = vadd.f32 %v2919, %v3079
      %v3081 = vpop.f32.mrf.mxu0
      %v3082 = vadd.f32 %v2921, %v3081
      %3083 = vmatprep.mubr.f32.mxu0 0.0
      %3084 = vmatmul.mubr.f32.gmra.mxu0 %v2719
      %v3085 = vpop.f32.mrf.mxu0
      %v3086 = vadd.f32 %v2925, %v3085
      %v3087 = vpop.f32.mrf.mxu0
      %v3088 = vadd.f32 %v2927, %v3087
      %3089 = vmatprep.mubr.f32.mxu0 0.0
      %3090 = vmatmul.mubr.f32.gmra.mxu0 %v2720
      %v3091 = vpop.f32.mrf.mxu0
      %v3092 = vadd.f32 %v2931, %v3091
      %v3093 = vpop.f32.mrf.mxu0
      %v3094 = vadd.f32 %v2933, %v3093
      %3095 = vmatprep.mubr.f32.mxu0 0.0
      %3096 = vmatmul.mubr.f32.gmra.mxu0 %v2721
      %v3097 = vpop.f32.mrf.mxu0
      %v3098 = vadd.f32 %v2937, %v3097
      %v3099 = vpop.f32.mrf.mxu0
      %v3100 = vadd.f32 %v2939, %v3099
      %3101 = vmatprep.mubr.f32.mxu0 0.0
      %3102 = vmatmul.mubr.f32.gmra.mxu0 %v2722
      %v3103 = vpop.f32.mrf.mxu0
      %v3104 = vadd.f32 %v2943, %v3103
      %v3105 = vpop.f32.mrf.mxu0
      %v3106 = vadd.f32 %v2945, %v3105
      %3107 = vmatprep.mubr.f32.mxu0 0.0
      %3108 = vmatmul.mubr.f32.gmra.mxu0 %v2723
      %v3109 = vpop.f32.mrf.mxu0
      %v3110 = vadd.f32 %v2949, %v3109
      %v3111 = vpop.f32.mrf.mxu0
      %v3112 = vadd.f32 %v2951, %v3111
      %3113 = vmatprep.mubr.f32.mxu0 0.0
      %3114 = vmatmul.mubr.f32.gmra.mxu0 %v2724
      %v3115 = vpop.f32.mrf.mxu0
      %v3116 = vadd.f32 %v2955, %v3115
      %v3117 = vpop.f32.mrf.mxu0
      %v3118 = vadd.f32 %v2957, %v3117
      %3119 = vdwg.mxu0
      %s3120 = scalar_lea.vmem %s2, 512
      %v3121 = vld [vmem:[%s3120] sm:$0xff]
      %v3122 = vld [vmem:[%s3120 + $0x8] sm:$0xff]
      %v3123 = vld [vmem:[%s3120 + $0x10] sm:$0xff]
      %v3124 = vld [vmem:[%s3120 + $0x18] sm:$0xff]
      %v3125 = vld [vmem:[%s3120 + $0x20] sm:$0xff]
      %v3126 = vld [vmem:[%s3120 + $0x28] sm:$0xff]
      %v3127 = vld [vmem:[%s3120 + $0x30] sm:$0xff]
      %v3128 = vld [vmem:[%s3120 + $0x38] sm:$0xff]
      %v3129 = vld [vmem:[%s3120 + $0x40] sm:$0xff]
      %v3130 = vld [vmem:[%s3120 + $0x48] sm:$0xff]
      %v3131 = vld [vmem:[%s3120 + $0x50] sm:$0xff]
      %v3132 = vld [vmem:[%s3120 + $0x58] sm:$0xff]
      %v3133 = vld [vmem:[%s3120 + $0x60] sm:$0xff]
      %v3134 = vld [vmem:[%s3120 + $0x68] sm:$0xff]
      %v3135 = vld [vmem:[%s3120 + $0x70] sm:$0xff]
      %v3136 = vld [vmem:[%s3120 + $0x78] sm:$0xff]
      %v3137 = vld [vmem:[%s3120 + $0x80] sm:$0xff]
      %v3138 = vld [vmem:[%s3120 + $0x88] sm:$0xff]
      %v3139 = vld [vmem:[%s3120 + $0x90] sm:$0xff]
      %v3140 = vld [vmem:[%s3120 + $0x98] sm:$0xff]
      %v3141 = vld [vmem:[%s3120 + $0xa0] sm:$0xff]
      %v3142 = vld [vmem:[%s3120 + $0xa8] sm:$0xff]
      %v3143 = vld [vmem:[%s3120 + $0xb0] sm:$0xff]
      %v3144 = vld [vmem:[%s3120 + $0xb8] sm:$0xff]
      %v3145 = vld [vmem:[%s3120 + $0xc0] sm:$0xff]
      %v3146 = vld [vmem:[%s3120 + $0xc8] sm:$0xff]
      %v3147 = vld [vmem:[%s3120 + $0xd0] sm:$0xff]
      %v3148 = vld [vmem:[%s3120 + $0xd8] sm:$0xff]
      %v3149 = vld [vmem:[%s3120 + $0xe0] sm:$0xff]
      %v3150 = vld [vmem:[%s3120 + $0xe8] sm:$0xff]
      %v3151 = vld [vmem:[%s3120 + $0xf0] sm:$0xff]
      %v3152 = vld [vmem:[%s3120 + $0xf8] sm:$0xff]
      %3153 = vmatprep.subr.mxu0 %v3152
      %3154 = vmatpush1.msra.mxu0 %v3151
      %3155 = vmatprep.subr.mxu0 %v3150
      %3156 = vmatpush1.msra.mxu0 %v3149
      %3157 = vmatprep.subr.mxu0 %v3148
      %3158 = vmatpush1.msra.mxu0 %v3147
      %3159 = vmatprep.subr.mxu0 %v3146
      %3160 = vmatpush1.msra.mxu0 %v3145
      %3161 = vmatprep.subr.mxu0 %v3144
      %3162 = vmatpush1.msra.mxu0 %v3143
      %3163 = vmatprep.subr.mxu0 %v3142
      %3164 = vmatpush1.msra.mxu0 %v3141
      %3165 = vmatprep.subr.mxu0 %v3140
      %3166 = vmatpush1.msra.mxu0 %v3139
      %3167 = vmatprep.subr.mxu0 %v3138
      %3168 = vmatpush1.msra.mxu0 %v3137
      %3169 = vmatprep.subr.mxu0 %v3136
      %3170 = vmatpush1.msra.mxu0 %v3135
      %3171 = vmatprep.subr.mxu0 %v3134
      %3172 = vmatpush1.msra.mxu0 %v3133
      %3173 = vmatprep.subr.mxu0 %v3132
      %3174 = vmatpush1.msra.mxu0 %v3131
      %3175 = vmatprep.subr.mxu0 %v3130
      %3176 = vmatpush1.msra.mxu0 %v3129
      %3177 = vmatprep.subr.mxu0 %v3128
      %3178 = vmatpush1.msra.mxu0 %v3127
      %3179 = vmatprep.subr.mxu0 %v3126
      %3180 = vmatpush1.msra.mxu0 %v3125
      %3181 = vmatprep.subr.mxu0 %v3124
      %3182 = vmatpush1.msra.mxu0 %v3123
      %3183 = vmatprep.subr.mxu0 %v3122
      %3184 = vmatpush1.msra.mxu0 %v3121
      %3185 = vmatprep.subr.mxu0 0.0
      %3186 = vmatpush2.msra.mxu0 0.0
      %3187 = vmatprep.subr.mxu0 0.0
      %3188 = vmatpush2.msra.mxu0 0.0
      %3189 = vmatprep.subr.mxu0 0.0
      %3190 = vmatpush2.msra.mxu0 0.0
      %3191 = vmatprep.subr.mxu0 0.0
      %3192 = vmatpush2.msra.mxu0 0.0
      %3193 = vmatprep.subr.mxu0 0.0
      %3194 = vmatpush2.msra.mxu0 0.0
      %3195 = vmatprep.subr.mxu0 0.0
      %3196 = vmatpush2.msra.mxu0 0.0
      %3197 = vmatprep.subr.mxu0 0.0
      %3198 = vmatpush2.msra.mxu0 0.0
      %3199 = vmatprep.subr.mxu0 0.0
      %3200 = vmatpush2.msra.mxu0 0.0
      %3201 = vmatprep.subr.mxu0 0.0
      %3202 = vmatpush2.msra.mxu0 0.0
      %3203 = vmatprep.subr.mxu0 0.0
      %3204 = vmatpush2.msra.mxu0 0.0
      %3205 = vmatprep.subr.mxu0 0.0
      %3206 = vmatpush2.msra.mxu0 0.0
      %3207 = vmatprep.subr.mxu0 0.0
      %3208 = vmatpush2.msra.mxu0 0.0
      %3209 = vmatprep.subr.mxu0 0.0
      %3210 = vmatpush2.msra.mxu0 0.0
      %3211 = vmatprep.subr.mxu0 0.0
      %3212 = vmatpush2.msra.mxu0 0.0
      %3213 = vmatprep.subr.mxu0 0.0
      %3214 = vmatpush2.msra.mxu0 0.0
      %3215 = vmatprep.subr.mxu0 0.0
      %3216 = vmatpush2.msra.mxu0 0.0
      %3217 = vmatprep.mubr.f32.mxu0 0.0
      %3218 = vmatmul.mubr.f32.gmra.mxu0 %v2713
      %v3219 = vpop.f32.mrf.mxu0
      %v3220 = vadd.f32 0.0, %v3219
      %v3221 = vpop.f32.mrf.mxu0
      %v3222 = vadd.f32 0.0, %v3221
      %3223 = vmatprep.mubr.f32.mxu0 0.0
      %3224 = vmatmul.mubr.f32.gmra.mxu0 %v2714
      %v3225 = vpop.f32.mrf.mxu0
      %v3226 = vadd.f32 0.0, %v3225
      %v3227 = vpop.f32.mrf.mxu0
      %v3228 = vadd.f32 0.0, %v3227
      %3229 = vmatprep.mubr.f32.mxu0 0.0
      %3230 = vmatmul.mubr.f32.gmra.mxu0 %v2715
      %v3231 = vpop.f32.mrf.mxu0
      %v3232 = vadd.f32 0.0, %v3231
      %v3233 = vpop.f32.mrf.mxu0
      %v3234 = vadd.f32 0.0, %v3233
      %3235 = vmatprep.mubr.f32.mxu0 0.0
      %3236 = vmatmul.mubr.f32.gmra.mxu0 %v2716
      %v3237 = vpop.f32.mrf.mxu0
      %v3238 = vadd.f32 0.0, %v3237
      %v3239 = vpop.f32.mrf.mxu0
      %v3240 = vadd.f32 0.0, %v3239
      %3241 = vmatprep.mubr.f32.mxu0 0.0
      %3242 = vmatmul.mubr.f32.gmra.mxu0 %v2717
      %v3243 = vpop.f32.mrf.mxu0
      %v3244 = vadd.f32 0.0, %v3243
      %v3245 = vpop.f32.mrf.mxu0
      %v3246 = vadd.f32 0.0, %v3245
      %3247 = vmatprep.mubr.f32.mxu0 0.0
      %3248 = vmatmul.mubr.f32.gmra.mxu0 %v2718
      %v3249 = vpop.f32.mrf.mxu0
      %v3250 = vadd.f32 0.0, %v3249
      %v3251 = vpop.f32.mrf.mxu0
      %v3252 = vadd.f32 0.0, %v3251
      %3253 = vmatprep.mubr.f32.mxu0 0.0
      %3254 = vmatmul.mubr.f32.gmra.mxu0 %v2719
      %v3255 = vpop.f32.mrf.mxu0
      %v3256 = vadd.f32 0.0, %v3255
      %v3257 = vpop.f32.mrf.mxu0
      %v3258 = vadd.f32 0.0, %v3257
      %3259 = vmatprep.mubr.f32.mxu0 0.0
      %3260 = vmatmul.mubr.f32.gmra.mxu0 %v2720
      %v3261 = vpop.f32.mrf.mxu0
      %v3262 = vadd.f32 0.0, %v3261
      %v3263 = vpop.f32.mrf.mxu0
      %v3264 = vadd.f32 0.0, %v3263
      %3265 = vmatprep.mubr.f32.mxu0 0.0
      %3266 = vmatmul.mubr.f32.gmra.mxu0 %v2721
      %v3267 = vpop.f32.mrf.mxu0
      %v3268 = vadd.f32 0.0, %v3267
      %v3269 = vpop.f32.mrf.mxu0
      %v3270 = vadd.f32 0.0, %v3269
      %3271 = vmatprep.mubr.f32.mxu0 0.0
      %3272 = vmatmul.mubr.f32.gmra.mxu0 %v2722
      %v3273 = vpop.f32.mrf.mxu0
      %v3274 = vadd.f32 0.0, %v3273
      %v3275 = vpop.f32.mrf.mxu0
      %v3276 = vadd.f32 0.0, %v3275
      %3277 = vmatprep.mubr.f32.mxu0 0.0
      %3278 = vmatmul.mubr.f32.gmra.mxu0 %v2723
      %v3279 = vpop.f32.mrf.mxu0
      %v3280 = vadd.f32 0.0, %v3279
      %v3281 = vpop.f32.mrf.mxu0
      %v3282 = vadd.f32 0.0, %v3281
      %3283 = vmatprep.mubr.f32.mxu0 0.0
      %3284 = vmatmul.mubr.f32.gmra.mxu0 %v2724
      %v3285 = vpop.f32.mrf.mxu0
      %v3286 = vadd.f32 0.0, %v3285
      %v3287 = vpop.f32.mrf.mxu0
      %v3288 = vadd.f32 0.0, %v3287
      %3289 = vmatprep.mubr.f32.mxu0 0.0
      %3290 = vmatmul.mubr.f32.gmra.mxu0 %v2725
      %v3291 = vpop.f32.mrf.mxu0
      %v3292 = vadd.f32 0.0, %v3291
      %v3293 = vpop.f32.mrf.mxu0
      %v3294 = vadd.f32 0.0, %v3293
      %3295 = vmatprep.mubr.f32.mxu0 0.0
      %3296 = vmatmul.mubr.f32.gmra.mxu0 %v2726
      %v3297 = vpop.f32.mrf.mxu0
      %v3298 = vadd.f32 0.0, %v3297
      %v3299 = vpop.f32.mrf.mxu0
      %v3300 = vadd.f32 0.0, %v3299
      %3301 = vmatprep.mubr.f32.mxu0 0.0
      %3302 = vmatmul.mubr.f32.gmra.mxu0 %v2727
      %v3303 = vpop.f32.mrf.mxu0
      %v3304 = vadd.f32 0.0, %v3303
      %v3305 = vpop.f32.mrf.mxu0
      %v3306 = vadd.f32 0.0, %v3305
      %3307 = vmatprep.mubr.f32.mxu0 0.0
      %3308 = vmatmul.mubr.f32.gmra.mxu0 %v2728
      %v3309 = vpop.f32.mrf.mxu0
      %v3310 = vadd.f32 0.0, %v3309
      %v3311 = vpop.f32.mrf.mxu0
      %v3312 = vadd.f32 0.0, %v3311
      %3313 = vdwg.mxu0
      %v3314 = vadd.f32 %v3026, %v3220
      %v3315 = vadd.f32 %v3028, %v3222
      %v3316 = vadd.f32 %v3032, %v3226
      %v3317 = vadd.f32 %v3034, %v3228
      %v3318 = vadd.f32 %v3038, %v3232
      %v3319 = vadd.f32 %v3040, %v3234
      %v3320 = vadd.f32 %v3044, %v3238
      %v3321 = vadd.f32 %v3046, %v3240
      %v3322 = vadd.f32 %v3050, %v3244
      %v3323 = vadd.f32 %v3052, %v3246
      %v3324 = vadd.f32 %v3056, %v3250
      %v3325 = vadd.f32 %v3058, %v3252
      %v3326 = vadd.f32 %v3062, %v3256
      %v3327 = vadd.f32 %v3064, %v3258
      %v3328 = vadd.f32 %v3068, %v3262
      %v3329 = vadd.f32 %v3070, %v3264
      %v3330 = vadd.f32 %v3074, %v3268
      %v3331 = vadd.f32 %v3076, %v3270
      %v3332 = vadd.f32 %v3080, %v3274
      %v3333 = vadd.f32 %v3082, %v3276
      %v3334 = vadd.f32 %v3086, %v3280
      %v3335 = vadd.f32 %v3088, %v3282
      %v3336 = vadd.f32 %v3092, %v3286
      %v3337 = vadd.f32 %v3094, %v3288
      %v3338 = vadd.f32 %v3098, %v3292
      %v3339 = vadd.f32 %v3100, %v3294
      %v3340 = vadd.f32 %v3104, %v3298
      %v3341 = vadd.f32 %v3106, %v3300
      %v3342 = vadd.f32 %v3110, %v3304
      %v3343 = vadd.f32 %v3112, %v3306
      %v3344 = vadd.f32 %v3116, %v3310
      %v3345 = vadd.f32 %v3118, %v3312
      %s3346 = scalar_lea.vmem %s2, 768
      %v3347 = vld [vmem:[%s3346] sm:$0xff]
      %v3348 = vld [vmem:[%s3346 + $0x8] sm:$0xff]
      %v3349 = vld [vmem:[%s3346 + $0x10] sm:$0xff]
      %v3350 = vld [vmem:[%s3346 + $0x18] sm:$0xff]
      %v3351 = vld [vmem:[%s3346 + $0x20] sm:$0xff]
      %v3352 = vld [vmem:[%s3346 + $0x28] sm:$0xff]
      %v3353 = vld [vmem:[%s3346 + $0x30] sm:$0xff]
      %v3354 = vld [vmem:[%s3346 + $0x38] sm:$0xff]
      %v3355 = vld [vmem:[%s3346 + $0x40] sm:$0xff]
      %v3356 = vld [vmem:[%s3346 + $0x48] sm:$0xff]
      %v3357 = vld [vmem:[%s3346 + $0x50] sm:$0xff]
      %v3358 = vld [vmem:[%s3346 + $0x58] sm:$0xff]
      %v3359 = vld [vmem:[%s3346 + $0x60] sm:$0xff]
      %v3360 = vld [vmem:[%s3346 + $0x68] sm:$0xff]
      %v3361 = vld [vmem:[%s3346 + $0x70] sm:$0xff]
      %v3362 = vld [vmem:[%s3346 + $0x78] sm:$0xff]
      %v3363 = vld [vmem:[%s3346 + $0x80] sm:$0xff]
      %v3364 = vld [vmem:[%s3346 + $0x88] sm:$0xff]
      %v3365 = vld [vmem:[%s3346 + $0x90] sm:$0xff]
      %v3366 = vld [vmem:[%s3346 + $0x98] sm:$0xff]
      %v3367 = vld [vmem:[%s3346 + $0xa0] sm:$0xff]
      %v3368 = vld [vmem:[%s3346 + $0xa8] sm:$0xff]
      %v3369 = vld [vmem:[%s3346 + $0xb0] sm:$0xff]
      %v3370 = vld [vmem:[%s3346 + $0xb8] sm:$0xff]
      %v3371 = vld [vmem:[%s3346 + $0xc0] sm:$0xff]
      %v3372 = vld [vmem:[%s3346 + $0xc8] sm:$0xff]
      %v3373 = vld [vmem:[%s3346 + $0xd0] sm:$0xff]
      %v3374 = vld [vmem:[%s3346 + $0xd8] sm:$0xff]
      %v3375 = vld [vmem:[%s3346 + $0xe0] sm:$0xff]
      %v3376 = vld [vmem:[%s3346 + $0xe8] sm:$0xff]
      %v3377 = vld [vmem:[%s3346 + $0xf0] sm:$0xff]
      %v3378 = vld [vmem:[%s3346 + $0xf8] sm:$0xff]
      %3379 = vmatprep.subr.mxu0 %v3378
      %3380 = vmatpush1.msra.mxu0 %v3377
      %3381 = vmatprep.subr.mxu0 %v3376
      %3382 = vmatpush1.msra.mxu0 %v3375
      %3383 = vmatprep.subr.mxu0 %v3374
      %3384 = vmatpush1.msra.mxu0 %v3373
      %3385 = vmatprep.subr.mxu0 %v3372
      %3386 = vmatpush1.msra.mxu0 %v3371
      %3387 = vmatprep.subr.mxu0 %v3370
      %3388 = vmatpush1.msra.mxu0 %v3369
      %3389 = vmatprep.subr.mxu0 %v3368
      %3390 = vmatpush1.msra.mxu0 %v3367
      %3391 = vmatprep.subr.mxu0 %v3366
      %3392 = vmatpush1.msra.mxu0 %v3365
      %3393 = vmatprep.subr.mxu0 %v3364
      %3394 = vmatpush1.msra.mxu0 %v3363
      %3395 = vmatprep.subr.mxu0 %v3362
      %3396 = vmatpush1.msra.mxu0 %v3361
      %3397 = vmatprep.subr.mxu0 %v3360
      %3398 = vmatpush1.msra.mxu0 %v3359
      %3399 = vmatprep.subr.mxu0 %v3358
      %3400 = vmatpush1.msra.mxu0 %v3357
      %3401 = vmatprep.subr.mxu0 %v3356
      %3402 = vmatpush1.msra.mxu0 %v3355
      %3403 = vmatprep.subr.mxu0 %v3354
      %3404 = vmatpush1.msra.mxu0 %v3353
      %3405 = vmatprep.subr.mxu0 %v3352
      %3406 = vmatpush1.msra.mxu0 %v3351
      %3407 = vmatprep.subr.mxu0 %v3350
      %3408 = vmatpush1.msra.mxu0 %v3349
      %3409 = vmatprep.subr.mxu0 %v3348
      %3410 = vmatpush1.msra.mxu0 %v3347
      %3411 = vmatprep.subr.mxu0 0.0
      %3412 = vmatpush2.msra.mxu0 0.0
      %3413 = vmatprep.subr.mxu0 0.0
      %3414 = vmatpush2.msra.mxu0 0.0
      %3415 = vmatprep.subr.mxu0 0.0
      %3416 = vmatpush2.msra.mxu0 0.0
      %3417 = vmatprep.subr.mxu0 0.0
      %3418 = vmatpush2.msra.mxu0 0.0
      %3419 = vmatprep.subr.mxu0 0.0
      %3420 = vmatpush2.msra.mxu0 0.0
      %3421 = vmatprep.subr.mxu0 0.0
      %3422 = vmatpush2.msra.mxu0 0.0
      %3423 = vmatprep.subr.mxu0 0.0
      %3424 = vmatpush2.msra.mxu0 0.0
      %3425 = vmatprep.subr.mxu0 0.0
      %3426 = vmatpush2.msra.mxu0 0.0
      %3427 = vmatprep.subr.mxu0 0.0
      %3428 = vmatpush2.msra.mxu0 0.0
      %3429 = vmatprep.subr.mxu0 0.0
      %3430 = vmatpush2.msra.mxu0 0.0
      %3431 = vmatprep.subr.mxu0 0.0
      %3432 = vmatpush2.msra.mxu0 0.0
      %3433 = vmatprep.subr.mxu0 0.0
      %3434 = vmatpush2.msra.mxu0 0.0
      %3435 = vmatprep.subr.mxu0 0.0
      %3436 = vmatpush2.msra.mxu0 0.0
      %3437 = vmatprep.subr.mxu0 0.0
      %3438 = vmatpush2.msra.mxu0 0.0
      %3439 = vmatprep.subr.mxu0 0.0
      %3440 = vmatpush2.msra.mxu0 0.0
      %3441 = vmatprep.subr.mxu0 0.0
      %3442 = vmatpush2.msra.mxu0 0.0
      %3443 = vmatprep.mubr.f32.mxu0 0.0
      %3444 = vmatmul.mubr.f32.gmra.mxu0 %v2715
      %v3445 = vpop.f32.mrf.mxu0
      %v3446 = vadd.f32 0.0, %v3445
      %v3447 = vpop.f32.mrf.mxu0
      %v3448 = vadd.f32 0.0, %v3447
      %3449 = vmatprep.mubr.f32.mxu0 0.0
      %3450 = vmatmul.mubr.f32.gmra.mxu0 %v2716
      %v3451 = vpop.f32.mrf.mxu0
      %v3452 = vadd.f32 0.0, %v3451
      %v3453 = vpop.f32.mrf.mxu0
      %v3454 = vadd.f32 0.0, %v3453
      %3455 = vmatprep.mubr.f32.mxu0 0.0
      %3456 = vmatmul.mubr.f32.gmra.mxu0 %v2717
      %v3457 = vpop.f32.mrf.mxu0
      %v3458 = vadd.f32 0.0, %v3457
      %v3459 = vpop.f32.mrf.mxu0
      %v3460 = vadd.f32 0.0, %v3459
      %3461 = vmatprep.mubr.f32.mxu0 0.0
      %3462 = vmatmul.mubr.f32.gmra.mxu0 %v2718
      %v3463 = vpop.f32.mrf.mxu0
      %v3464 = vadd.f32 0.0, %v3463
      %v3465 = vpop.f32.mrf.mxu0
      %v3466 = vadd.f32 0.0, %v3465
      %3467 = vmatprep.mubr.f32.mxu0 0.0
      %3468 = vmatmul.mubr.f32.gmra.mxu0 %v2719
      %v3469 = vpop.f32.mrf.mxu0
      %v3470 = vadd.f32 0.0, %v3469
      %v3471 = vpop.f32.mrf.mxu0
      %v3472 = vadd.f32 0.0, %v3471
      %3473 = vmatprep.mubr.f32.mxu0 0.0
      %3474 = vmatmul.mubr.f32.gmra.mxu0 %v2720
      %v3475 = vpop.f32.mrf.mxu0
      %v3476 = vadd.f32 0.0, %v3475
      %v3477 = vpop.f32.mrf.mxu0
      %v3478 = vadd.f32 0.0, %v3477
      %3479 = vmatprep.mubr.f32.mxu0 0.0
      %3480 = vmatmul.mubr.f32.gmra.mxu0 %v2721
      %v3481 = vpop.f32.mrf.mxu0
      %v3482 = vadd.f32 0.0, %v3481
      %v3483 = vpop.f32.mrf.mxu0
      %v3484 = vadd.f32 0.0, %v3483
      %3485 = vmatprep.mubr.f32.mxu0 0.0
      %3486 = vmatmul.mubr.f32.gmra.mxu0 %v2722
      %v3487 = vpop.f32.mrf.mxu0
      %v3488 = vadd.f32 0.0, %v3487
      %v3489 = vpop.f32.mrf.mxu0
      %v3490 = vadd.f32 0.0, %v3489
      %3491 = vmatprep.mubr.f32.mxu0 0.0
      %3492 = vmatmul.mubr.f32.gmra.mxu0 %v2723
      %v3493 = vpop.f32.mrf.mxu0
      %v3494 = vadd.f32 0.0, %v3493
      %v3495 = vpop.f32.mrf.mxu0
      %v3496 = vadd.f32 0.0, %v3495
      %3497 = vmatprep.mubr.f32.mxu0 0.0
      %3498 = vmatmul.mubr.f32.gmra.mxu0 %v2724
      %v3499 = vpop.f32.mrf.mxu0
      %v3500 = vadd.f32 0.0, %v3499
      %v3501 = vpop.f32.mrf.mxu0
      %v3502 = vadd.f32 0.0, %v3501
      %3503 = vmatprep.mubr.f32.mxu0 0.0
      %3504 = vmatmul.mubr.f32.gmra.mxu0 %v2725
      %v3505 = vpop.f32.mrf.mxu0
      %v3506 = vadd.f32 0.0, %v3505
      %v3507 = vpop.f32.mrf.mxu0
      %v3508 = vadd.f32 0.0, %v3507
      %3509 = vmatprep.mubr.f32.mxu0 0.0
      %3510 = vmatmul.mubr.f32.gmra.mxu0 %v2726
      %v3511 = vpop.f32.mrf.mxu0
      %v3512 = vadd.f32 0.0, %v3511
      %v3513 = vpop.f32.mrf.mxu0
      %v3514 = vadd.f32 0.0, %v3513
      %3515 = vmatprep.mubr.f32.mxu0 0.0
      %3516 = vmatmul.mubr.f32.gmra.mxu0 %v2727
      %v3517 = vpop.f32.mrf.mxu0
      %v3518 = vadd.f32 0.0, %v3517
      %v3519 = vpop.f32.mrf.mxu0
      %v3520 = vadd.f32 0.0, %v3519
      %3521 = vmatprep.mubr.f32.mxu0 0.0
      %3522 = vmatmul.mubr.f32.gmra.mxu0 %v2728
      %v3523 = vpop.f32.mrf.mxu0
      %v3524 = vadd.f32 0.0, %v3523
      %v3525 = vpop.f32.mrf.mxu0
      %v3526 = vadd.f32 0.0, %v3525
      %3527 = vmatprep.mubr.f32.mxu0 0.0
      %3528 = vmatmul.mubr.f32.gmra.mxu0 %v2729
      %v3529 = vpop.f32.mrf.mxu0
      %v3530 = vadd.f32 0.0, %v3529
      %v3531 = vpop.f32.mrf.mxu0
      %v3532 = vadd.f32 0.0, %v3531
      %3533 = vmatprep.mubr.f32.mxu0 0.0
      %3534 = vmatmul.mubr.f32.gmra.mxu0 %v2730
      %v3535 = vpop.f32.mrf.mxu0
      %v3536 = vadd.f32 0.0, %v3535
      %v3537 = vpop.f32.mrf.mxu0
      %v3538 = vadd.f32 0.0, %v3537
      %3539 = vdwg.mxu0
      %v3540 = vadd.f32 %v3314, %v3446
      %v3541 = vadd.f32 %v3315, %v3448
      %v3542 = vadd.f32 %v3316, %v3452
      %v3543 = vadd.f32 %v3317, %v3454
      %v3544 = vadd.f32 %v3318, %v3458
      %v3545 = vadd.f32 %v3319, %v3460
      %v3546 = vadd.f32 %v3320, %v3464
      %v3547 = vadd.f32 %v3321, %v3466
      %v3548 = vadd.f32 %v3322, %v3470
      %v3549 = vadd.f32 %v3323, %v3472
      %v3550 = vadd.f32 %v3324, %v3476
      %v3551 = vadd.f32 %v3325, %v3478
      %v3552 = vadd.f32 %v3326, %v3482
      %v3553 = vadd.f32 %v3327, %v3484
      %v3554 = vadd.f32 %v3328, %v3488
      %v3555 = vadd.f32 %v3329, %v3490
      %v3556 = vadd.f32 %v3330, %v3494
      %v3557 = vadd.f32 %v3331, %v3496
      %v3558 = vadd.f32 %v3332, %v3500
      %v3559 = vadd.f32 %v3333, %v3502
      %v3560 = vadd.f32 %v3334, %v3506
      %v3561 = vadd.f32 %v3335, %v3508
      %v3562 = vadd.f32 %v3336, %v3512
      %v3563 = vadd.f32 %v3337, %v3514
      %v3564 = vadd.f32 %v3338, %v3518
      %v3565 = vadd.f32 %v3339, %v3520
      %v3566 = vadd.f32 %v3340, %v3524
      %v3567 = vadd.f32 %v3341, %v3526
      %v3568 = vadd.f32 %v3342, %v3530
      %v3569 = vadd.f32 %v3343, %v3532
      %v3570 = vadd.f32 %v3344, %v3536
      %v3571 = vadd.f32 %v3345, %v3538
      %s3572 = scalar_lea.vmem %s2, 1024
      %v3573 = vld [vmem:[%s3572] sm:$0xff]
      %v3574 = vld [vmem:[%s3572 + $0x8] sm:$0xff]
      %v3575 = vld [vmem:[%s3572 + $0x10] sm:$0xff]
      %v3576 = vld [vmem:[%s3572 + $0x18] sm:$0xff]
      %v3577 = vld [vmem:[%s3572 + $0x20] sm:$0xff]
      %v3578 = vld [vmem:[%s3572 + $0x28] sm:$0xff]
      %v3579 = vld [vmem:[%s3572 + $0x30] sm:$0xff]
      %v3580 = vld [vmem:[%s3572 + $0x38] sm:$0xff]
      %v3581 = vld [vmem:[%s3572 + $0x40] sm:$0xff]
      %v3582 = vld [vmem:[%s3572 + $0x48] sm:$0xff]
      %v3583 = vld [vmem:[%s3572 + $0x50] sm:$0xff]
      %v3584 = vld [vmem:[%s3572 + $0x58] sm:$0xff]
      %v3585 = vld [vmem:[%s3572 + $0x60] sm:$0xff]
      %v3586 = vld [vmem:[%s3572 + $0x68] sm:$0xff]
      %v3587 = vld [vmem:[%s3572 + $0x70] sm:$0xff]
      %v3588 = vld [vmem:[%s3572 + $0x78] sm:$0xff]
      %v3589 = vld [vmem:[%s3572 + $0x80] sm:$0xff]
      %v3590 = vld [vmem:[%s3572 + $0x88] sm:$0xff]
      %v3591 = vld [vmem:[%s3572 + $0x90] sm:$0xff]
      %v3592 = vld [vmem:[%s3572 + $0x98] sm:$0xff]
      %v3593 = vld [vmem:[%s3572 + $0xa0] sm:$0xff]
      %v3594 = vld [vmem:[%s3572 + $0xa8] sm:$0xff]
      %v3595 = vld [vmem:[%s3572 + $0xb0] sm:$0xff]
      %v3596 = vld [vmem:[%s3572 + $0xb8] sm:$0xff]
      %v3597 = vld [vmem:[%s3572 + $0xc0] sm:$0xff]
      %v3598 = vld [vmem:[%s3572 + $0xc8] sm:$0xff]
      %v3599 = vld [vmem:[%s3572 + $0xd0] sm:$0xff]
      %v3600 = vld [vmem:[%s3572 + $0xd8] sm:$0xff]
      %v3601 = vld [vmem:[%s3572 + $0xe0] sm:$0xff]
      %v3602 = vld [vmem:[%s3572 + $0xe8] sm:$0xff]
      %v3603 = vld [vmem:[%s3572 + $0xf0] sm:$0xff]
      %v3604 = vld [vmem:[%s3572 + $0xf8] sm:$0xff]
      %3605 = vmatprep.subr.mxu0 %v3604
      %3606 = vmatpush1.msra.mxu0 %v3603
      %3607 = vmatprep.subr.mxu0 %v3602
      %3608 = vmatpush1.msra.mxu0 %v3601
      %3609 = vmatprep.subr.mxu0 %v3600
      %3610 = vmatpush1.msra.mxu0 %v3599
      %3611 = vmatprep.subr.mxu0 %v3598
      %3612 = vmatpush1.msra.mxu0 %v3597
      %3613 = vmatprep.subr.mxu0 %v3596
      %3614 = vmatpush1.msra.mxu0 %v3595
      %3615 = vmatprep.subr.mxu0 %v3594
      %3616 = vmatpush1.msra.mxu0 %v3593
      %3617 = vmatprep.subr.mxu0 %v3592
      %3618 = vmatpush1.msra.mxu0 %v3591
      %3619 = vmatprep.subr.mxu0 %v3590
      %3620 = vmatpush1.msra.mxu0 %v3589
      %3621 = vmatprep.subr.mxu0 %v3588
      %3622 = vmatpush1.msra.mxu0 %v3587
      %3623 = vmatprep.subr.mxu0 %v3586
      %3624 = vmatpush1.msra.mxu0 %v3585
      %3625 = vmatprep.subr.mxu0 %v3584
      %3626 = vmatpush1.msra.mxu0 %v3583
      %3627 = vmatprep.subr.mxu0 %v3582
      %3628 = vmatpush1.msra.mxu0 %v3581
      %3629 = vmatprep.subr.mxu0 %v3580
      %3630 = vmatpush1.msra.mxu0 %v3579
      %3631 = vmatprep.subr.mxu0 %v3578
      %3632 = vmatpush1.msra.mxu0 %v3577
      %3633 = vmatprep.subr.mxu0 %v3576
      %3634 = vmatpush1.msra.mxu0 %v3575
      %3635 = vmatprep.subr.mxu0 %v3574
      %3636 = vmatpush1.msra.mxu0 %v3573
      %3637 = vmatprep.subr.mxu0 0.0
      %3638 = vmatpush2.msra.mxu0 0.0
      %3639 = vmatprep.subr.mxu0 0.0
      %3640 = vmatpush2.msra.mxu0 0.0
      %3641 = vmatprep.subr.mxu0 0.0
      %3642 = vmatpush2.msra.mxu0 0.0
      %3643 = vmatprep.subr.mxu0 0.0
      %3644 = vmatpush2.msra.mxu0 0.0
      %3645 = vmatprep.subr.mxu0 0.0
      %3646 = vmatpush2.msra.mxu0 0.0
      %3647 = vmatprep.subr.mxu0 0.0
      %3648 = vmatpush2.msra.mxu0 0.0
      %3649 = vmatprep.subr.mxu0 0.0
      %3650 = vmatpush2.msra.mxu0 0.0
      %3651 = vmatprep.subr.mxu0 0.0
      %3652 = vmatpush2.msra.mxu0 0.0
      %3653 = vmatprep.subr.mxu0 0.0
      %3654 = vmatpush2.msra.mxu0 0.0
      %3655 = vmatprep.subr.mxu0 0.0
      %3656 = vmatpush2.msra.mxu0 0.0
      %3657 = vmatprep.subr.mxu0 0.0
      %3658 = vmatpush2.msra.mxu0 0.0
      %3659 = vmatprep.subr.mxu0 0.0
      %3660 = vmatpush2.msra.mxu0 0.0
      %3661 = vmatprep.subr.mxu0 0.0
      %3662 = vmatpush2.msra.mxu0 0.0
      %3663 = vmatprep.subr.mxu0 0.0
      %3664 = vmatpush2.msra.mxu0 0.0
      %3665 = vmatprep.subr.mxu0 0.0
      %3666 = vmatpush2.msra.mxu0 0.0
      %3667 = vmatprep.subr.mxu0 0.0
      %3668 = vmatpush2.msra.mxu0 0.0
      %3669 = vmatprep.mubr.f32.mxu0 0.0
      %3670 = vmatmul.mubr.f32.gmra.mxu0 %v2717
      %v3671 = vpop.f32.mrf.mxu0
      %v3672 = vadd.f32 0.0, %v3671
      %v3673 = vpop.f32.mrf.mxu0
      %v3674 = vadd.f32 0.0, %v3673
      %3675 = vmatprep.mubr.f32.mxu0 0.0
      %3676 = vmatmul.mubr.f32.gmra.mxu0 %v2718
      %v3677 = vpop.f32.mrf.mxu0
      %v3678 = vadd.f32 0.0, %v3677
      %v3679 = vpop.f32.mrf.mxu0
      %v3680 = vadd.f32 0.0, %v3679
      %3681 = vmatprep.mubr.f32.mxu0 0.0
      %3682 = vmatmul.mubr.f32.gmra.mxu0 %v2719
      %v3683 = vpop.f32.mrf.mxu0
      %v3684 = vadd.f32 0.0, %v3683
      %v3685 = vpop.f32.mrf.mxu0
      %v3686 = vadd.f32 0.0, %v3685
      %3687 = vmatprep.mubr.f32.mxu0 0.0
      %3688 = vmatmul.mubr.f32.gmra.mxu0 %v2720
      %v3689 = vpop.f32.mrf.mxu0
      %v3690 = vadd.f32 0.0, %v3689
      %v3691 = vpop.f32.mrf.mxu0
      %v3692 = vadd.f32 0.0, %v3691
      %3693 = vmatprep.mubr.f32.mxu0 0.0
      %3694 = vmatmul.mubr.f32.gmra.mxu0 %v2721
      %v3695 = vpop.f32.mrf.mxu0
      %v3696 = vadd.f32 0.0, %v3695
      %v3697 = vpop.f32.mrf.mxu0
      %v3698 = vadd.f32 0.0, %v3697
      %3699 = vmatprep.mubr.f32.mxu0 0.0
      %3700 = vmatmul.mubr.f32.gmra.mxu0 %v2722
      %v3701 = vpop.f32.mrf.mxu0
      %v3702 = vadd.f32 0.0, %v3701
      %v3703 = vpop.f32.mrf.mxu0
      %v3704 = vadd.f32 0.0, %v3703
      %3705 = vmatprep.mubr.f32.mxu0 0.0
      %3706 = vmatmul.mubr.f32.gmra.mxu0 %v2723
      %v3707 = vpop.f32.mrf.mxu0
      %v3708 = vadd.f32 0.0, %v3707
      %v3709 = vpop.f32.mrf.mxu0
      %v3710 = vadd.f32 0.0, %v3709
      %3711 = vmatprep.mubr.f32.mxu0 0.0
      %3712 = vmatmul.mubr.f32.gmra.mxu0 %v2724
      %v3713 = vpop.f32.mrf.mxu0
      %v3714 = vadd.f32 0.0, %v3713
      %v3715 = vpop.f32.mrf.mxu0
      %v3716 = vadd.f32 0.0, %v3715
      %3717 = vmatprep.mubr.f32.mxu0 0.0
      %3718 = vmatmul.mubr.f32.gmra.mxu0 %v2725
      %v3719 = vpop.f32.mrf.mxu0
      %v3720 = vadd.f32 0.0, %v3719
      %v3721 = vpop.f32.mrf.mxu0
      %v3722 = vadd.f32 0.0, %v3721
      %3723 = vmatprep.mubr.f32.mxu0 0.0
      %3724 = vmatmul.mubr.f32.gmra.mxu0 %v2726
      %v3725 = vpop.f32.mrf.mxu0
      %v3726 = vadd.f32 0.0, %v3725
      %v3727 = vpop.f32.mrf.mxu0
      %v3728 = vadd.f32 0.0, %v3727
      %3729 = vmatprep.mubr.f32.mxu0 0.0
      %3730 = vmatmul.mubr.f32.gmra.mxu0 %v2727
      %v3731 = vpop.f32.mrf.mxu0
      %v3732 = vadd.f32 0.0, %v3731
      %v3733 = vpop.f32.mrf.mxu0
      %v3734 = vadd.f32 0.0, %v3733
      %3735 = vmatprep.mubr.f32.mxu0 0.0
      %3736 = vmatmul.mubr.f32.gmra.mxu0 %v2728
      %v3737 = vpop.f32.mrf.mxu0
      %v3738 = vadd.f32 0.0, %v3737
      %v3739 = vpop.f32.mrf.mxu0
      %v3740 = vadd.f32 0.0, %v3739
      %3741 = vmatprep.mubr.f32.mxu0 0.0
      %3742 = vmatmul.mubr.f32.gmra.mxu0 %v2729
      %v3743 = vpop.f32.mrf.mxu0
      %v3744 = vadd.f32 0.0, %v3743
      %v3745 = vpop.f32.mrf.mxu0
      %v3746 = vadd.f32 0.0, %v3745
      %3747 = vmatprep.mubr.f32.mxu0 0.0
      %3748 = vmatmul.mubr.f32.gmra.mxu0 %v2730
      %v3749 = vpop.f32.mrf.mxu0
      %v3750 = vadd.f32 0.0, %v3749
      %v3751 = vpop.f32.mrf.mxu0
      %v3752 = vadd.f32 0.0, %v3751
      %3753 = vmatprep.mubr.f32.mxu0 0.0
      %3754 = vmatmul.mubr.f32.gmra.mxu0 %v2731
      %v3755 = vpop.f32.mrf.mxu0
      %v3756 = vadd.f32 0.0, %v3755
      %v3757 = vpop.f32.mrf.mxu0
      %v3758 = vadd.f32 0.0, %v3757
      %3759 = vmatprep.mubr.f32.mxu0 0.0
      %3760 = vmatmul.mubr.f32.gmra.mxu0 %v2732
      %v3761 = vpop.f32.mrf.mxu0
      %v3762 = vadd.f32 0.0, %v3761
      %v3763 = vpop.f32.mrf.mxu0
      %v3764 = vadd.f32 0.0, %v3763
      %3765 = vdwg.mxu0
      %v3766 = vadd.f32 %v3540, %v3672
      %v3767 = vadd.f32 %v3541, %v3674
      %v3768 = vadd.f32 %v3542, %v3678
      %v3769 = vadd.f32 %v3543, %v3680
      %v3770 = vadd.f32 %v3544, %v3684
      %v3771 = vadd.f32 %v3545, %v3686
      %v3772 = vadd.f32 %v3546, %v3690
      %v3773 = vadd.f32 %v3547, %v3692
      %v3774 = vadd.f32 %v3548, %v3696
      %v3775 = vadd.f32 %v3549, %v3698
      %v3776 = vadd.f32 %v3550, %v3702
      %v3777 = vadd.f32 %v3551, %v3704
      %v3778 = vadd.f32 %v3552, %v3708
      %v3779 = vadd.f32 %v3553, %v3710
      %v3780 = vadd.f32 %v3554, %v3714
      %v3781 = vadd.f32 %v3555, %v3716
      %v3782 = vadd.f32 %v3556, %v3720
      %v3783 = vadd.f32 %v3557, %v3722
      %v3784 = vadd.f32 %v3558, %v3726
      %v3785 = vadd.f32 %v3559, %v3728
      %v3786 = vadd.f32 %v3560, %v3732
      %v3787 = vadd.f32 %v3561, %v3734
      %v3788 = vadd.f32 %v3562, %v3738
      %v3789 = vadd.f32 %v3563, %v3740
      %v3790 = vadd.f32 %v3564, %v3744
      %v3791 = vadd.f32 %v3565, %v3746
      %v3792 = vadd.f32 %v3566, %v3750
      %v3793 = vadd.f32 %v3567, %v3752
      %v3794 = vadd.f32 %v3568, %v3756
      %v3795 = vadd.f32 %v3569, %v3758
      %v3796 = vadd.f32 %v3570, %v3762
      %v3797 = vadd.f32 %v3571, %v3764
      %v3798 = vmax.f32 %v3766, %v3767
      %v3799 = vmax.f32 %v3768, %v3769
      %v3800 = vmax.f32 %v3770, %v3771
      %v3801 = vmax.f32 %v3772, %v3773
      %v3802 = vmax.f32 %v3774, %v3775
      %v3803 = vmax.f32 %v3776, %v3777
      %v3804 = vmax.f32 %v3778, %v3779
      %v3805 = vmax.f32 %v3780, %v3781
      %v3806 = vmax.f32 %v3782, %v3783
      %v3807 = vmax.f32 %v3784, %v3785
      %v3808 = vmax.f32 %v3786, %v3787
      %v3809 = vmax.f32 %v3788, %v3789
      %v3810 = vmax.f32 %v3790, %v3791
      %v3811 = vmax.f32 %v3792, %v3793
      %v3812 = vmax.f32 %v3794, %v3795
      %v3813 = vmax.f32 %v3796, %v3797
      %v3814 = vmax.f32 %v3798, %v3800
      %v3815 = vmax.f32 %v3799, %v3801
      %v3816 = vmax.f32 %v3802, %v3804
      %v3817 = vmax.f32 %v3803, %v3805
      %v3818 = vmax.f32 %v3806, %v3808
      %v3819 = vmax.f32 %v3807, %v3809
      %v3820 = vmax.f32 %v3810, %v3812
      %v3821 = vmax.f32 %v3811, %v3813
      %v3822 = vld [vmem:[%s5 + $0x1] sm:$0x1]
      %v3823 = vlaneseq
      %v3824 = vshrl.u32 %v3823, 7
      %v3825 = vsub.s32 0, %v3824
      %v3826 = vrot.slane %v3822, %v3825
      %v3827 = vadd.f32 %v3814, %v3826
      %v3828 = vadd.f32 %v3815, %v3826
      %v3829 = vadd.f32 %v3816, %v3826
      %v3830 = vadd.f32 %v3817, %v3826
      %v3831 = vadd.f32 %v3818, %v3826
      %v3832 = vadd.f32 %v3819, %v3826
      %v3833 = vadd.f32 %v3820, %v3826
      %v3834 = vadd.f32 %v3821, %v3826
      %v3835 = vmax.f32 %v3827, 0.0
      %v3836 = vmax.f32 %v3828, 0.0
      %v3837 = vmax.f32 %v3829, 0.0
      %v3838 = vmax.f32 %v3830, 0.0
      %v3839 = vmax.f32 %v3831, 0.0
      %v3840 = vmax.f32 %v3832, 0.0
      %v3841 = vmax.f32 %v3833, 0.0
      %v3842 = vmax.f32 %v3834, 0.0
      %v3843 = vld [vmem:[%s3] sm:$0xff]
      %v3844 = vld [vmem:[%s3 + $0x8] sm:$0xff]
      %v3845 = vld [vmem:[%s3 + $0x10] sm:$0xff]
      %v3846 = vld [vmem:[%s3 + $0x18] sm:$0xff]
      %v3847 = vld [vmem:[%s3 + $0x20] sm:$0xff]
      %v3848 = vld [vmem:[%s3 + $0x28] sm:$0xff]
      %v3849 = vld [vmem:[%s3 + $0x30] sm:$0xff]
      %v3850 = vld [vmem:[%s3 + $0x38] sm:$0xff]
      %v3851 = vld [vmem:[%s3 + $0x40] sm:$0xff]
      %v3852 = vld [vmem:[%s3 + $0x48] sm:$0xff]
      %v3853 = vld [vmem:[%s3 + $0x50] sm:$0xff]
      %v3854 = vld [vmem:[%s3 + $0x58] sm:$0xff]
      %v3855 = vld [vmem:[%s3 + $0x60] sm:$0xff]
      %v3856 = vld [vmem:[%s3 + $0x68] sm:$0xff]
      %v3857 = vld [vmem:[%s3 + $0x70] sm:$0xff]
      %v3858 = vld [vmem:[%s3 + $0x78] sm:$0xff]
      %v3859 = vld [vmem:[%s3 + $0x80] sm:$0xff]
      %v3860 = vld [vmem:[%s3 + $0x88] sm:$0xff]
      %v3861 = vld [vmem:[%s3 + $0x90] sm:$0xff]
      %v3862 = vld [vmem:[%s3 + $0x98] sm:$0xff]
      %v3863 = vld [vmem:[%s3 + $0xa0] sm:$0xff]
      %v3864 = vld [vmem:[%s3 + $0xa8] sm:$0xff]
      %v3865 = vld [vmem:[%s3 + $0xb0] sm:$0xff]
      %v3866 = vld [vmem:[%s3 + $0xb8] sm:$0xff]
      %v3867 = vld [vmem:[%s3 + $0xc0] sm:$0xff]
      %v3868 = vld [vmem:[%s3 + $0xc8] sm:$0xff]
      %v3869 = vld [vmem:[%s3 + $0xd0] sm:$0xff]
      %v3870 = vld [vmem:[%s3 + $0xd8] sm:$0xff]
      %v3871 = vld [vmem:[%s3 + $0xe0] sm:$0xff]
      %v3872 = vld [vmem:[%s3 + $0xe8] sm:$0xff]
      %v3873 = vld [vmem:[%s3 + $0xf0] sm:$0xff]
      %v3874 = vld [vmem:[%s3 + $0xf8] sm:$0xff]
      %v3875 = vld [vmem:[%s3 + $0x100] sm:$0xff]
      %v3876 = vld [vmem:[%s3 + $0x108] sm:$0xff]
      %v3877 = vld [vmem:[%s3 + $0x110] sm:$0xff]
      %v3878 = vld [vmem:[%s3 + $0x118] sm:$0xff]
      %v3879 = vld [vmem:[%s3 + $0x120] sm:$0xff]
      %v3880 = vld [vmem:[%s3 + $0x128] sm:$0xff]
      %v3881 = vld [vmem:[%s3 + $0x130] sm:$0xff]
      %v3882 = vld [vmem:[%s3 + $0x138] sm:$0xff]
      %v3883 = vld [vmem:[%s3 + $0x140] sm:$0xff]
      %v3884 = vld [vmem:[%s3 + $0x148] sm:$0xff]
      %v3885 = vld [vmem:[%s3 + $0x150] sm:$0xff]
      %v3886 = vld [vmem:[%s3 + $0x158] sm:$0xff]
      %v3887 = vld [vmem:[%s3 + $0x160] sm:$0xff]
      %v3888 = vld [vmem:[%s3 + $0x168] sm:$0xff]
      %v3889 = vld [vmem:[%s3 + $0x170] sm:$0xff]
      %v3890 = vld [vmem:[%s3 + $0x178] sm:$0xff]
      %v3891 = vld [vmem:[%s3 + $0x180] sm:$0xff]
      %v3892 = vld [vmem:[%s3 + $0x188] sm:$0xff]
      %v3893 = vld [vmem:[%s3 + $0x190] sm:$0xff]
      %v3894 = vld [vmem:[%s3 + $0x198] sm:$0xff]
      %v3895 = vld [vmem:[%s3 + $0x1a0] sm:$0xff]
      %v3896 = vld [vmem:[%s3 + $0x1a8] sm:$0xff]
      %v3897 = vld [vmem:[%s3 + $0x1b0] sm:$0xff]
      %v3898 = vld [vmem:[%s3 + $0x1b8] sm:$0xff]
      %v3899 = vld [vmem:[%s3 + $0x1c0] sm:$0xff]
      %v3900 = vld [vmem:[%s3 + $0x1c8] sm:$0xff]
      %v3901 = vld [vmem:[%s3 + $0x1d0] sm:$0xff]
      %v3902 = vld [vmem:[%s3 + $0x1d8] sm:$0xff]
      %v3903 = vld [vmem:[%s3 + $0x1e0] sm:$0xff]
      %v3904 = vld [vmem:[%s3 + $0x1e8] sm:$0xff]
      %v3905 = vld [vmem:[%s3 + $0x1f0] sm:$0xff]
      %v3906 = vld [vmem:[%s3 + $0x1f8] sm:$0xff]
      %v3907 = vld [vmem:[%s5 + $0x2] sm:$0x1]
      %v3908 = vlaneseq
      %v3909 = vshrl.u32 %v3908, 7
      %v3910 = vsub.s32 0, %v3909
      %v3911 = vrot.slane %v3907, %v3910
      %3912 = vmatprep.subr.mxu0 0.0
      %3913 = vmatpush1.msra.mxu0 %v3858
      %3914 = vmatprep.subr.mxu0 0.0
      %3915 = vmatpush1.msra.mxu0 %v3857
      %3916 = vmatprep.subr.mxu0 0.0
      %3917 = vmatpush1.msra.mxu0 %v3856
      %3918 = vmatprep.subr.mxu0 0.0
      %3919 = vmatpush1.msra.mxu0 %v3855
      %3920 = vmatprep.subr.mxu0 0.0
      %3921 = vmatpush1.msra.mxu0 %v3854
      %3922 = vmatprep.subr.mxu0 0.0
      %3923 = vmatpush1.msra.mxu0 %v3853
      %3924 = vmatprep.subr.mxu0 0.0
      %3925 = vmatpush1.msra.mxu0 %v3852
      %3926 = vmatprep.subr.mxu0 0.0
      %3927 = vmatpush1.msra.mxu0 %v3851
      %3928 = vmatprep.subr.mxu0 0.0
      %3929 = vmatpush1.msra.mxu0 %v3850
      %3930 = vmatprep.subr.mxu0 0.0
      %3931 = vmatpush1.msra.mxu0 %v3849
      %3932 = vmatprep.subr.mxu0 0.0
      %3933 = vmatpush1.msra.mxu0 %v3848
      %3934 = vmatprep.subr.mxu0 0.0
      %3935 = vmatpush1.msra.mxu0 %v3847
      %3936 = vmatprep.subr.mxu0 0.0
      %3937 = vmatpush1.msra.mxu0 %v3846
      %3938 = vmatprep.subr.mxu0 0.0
      %3939 = vmatpush1.msra.mxu0 %v3845
      %3940 = vmatprep.subr.mxu0 0.0
      %3941 = vmatpush1.msra.mxu0 %v3844
      %3942 = vmatprep.subr.mxu0 0.0
      %3943 = vmatpush1.msra.mxu0 %v3843
      %3944 = vmatprep.subr.mxu0 0.0
      %3945 = vmatpush2.msra.mxu0 %v3874
      %3946 = vmatprep.subr.mxu0 0.0
      %3947 = vmatpush2.msra.mxu0 %v3873
      %3948 = vmatprep.subr.mxu0 0.0
      %3949 = vmatpush2.msra.mxu0 %v3872
      %3950 = vmatprep.subr.mxu0 0.0
      %3951 = vmatpush2.msra.mxu0 %v3871
      %3952 = vmatprep.subr.mxu0 0.0
      %3953 = vmatpush2.msra.mxu0 %v3870
      %3954 = vmatprep.subr.mxu0 0.0
      %3955 = vmatpush2.msra.mxu0 %v3869
      %3956 = vmatprep.subr.mxu0 0.0
      %3957 = vmatpush2.msra.mxu0 %v3868
      %3958 = vmatprep.subr.mxu0 0.0
      %3959 = vmatpush2.msra.mxu0 %v3867
      %3960 = vmatprep.subr.mxu0 0.0
      %3961 = vmatpush2.msra.mxu0 %v3866
      %3962 = vmatprep.subr.mxu0 0.0
      %3963 = vmatpush2.msra.mxu0 %v3865
      %3964 = vmatprep.subr.mxu0 0.0
      %3965 = vmatpush2.msra.mxu0 %v3864
      %3966 = vmatprep.subr.mxu0 0.0
      %3967 = vmatpush2.msra.mxu0 %v3863
      %3968 = vmatprep.subr.mxu0 0.0
      %3969 = vmatpush2.msra.mxu0 %v3862
      %3970 = vmatprep.subr.mxu0 0.0
      %3971 = vmatpush2.msra.mxu0 %v3861
      %3972 = vmatprep.subr.mxu0 0.0
      %3973 = vmatpush2.msra.mxu0 %v3860
      %3974 = vmatprep.subr.mxu0 0.0
      %3975 = vmatpush2.msra.mxu0 %v3859
      %3976 = vmatprep.mubr.f32.mxu0 %v3837
      %3977 = vmatmul.mubr.f32.gmra.mxu0 %v3835
      %v3978 = vpop.f32.mrf.mxu0
      %v3979 = vadd.f32 %v3911, %v3978
      %v3980 = vpop.f32.mrf.mxu0
      %3981 = vmatprep.mubr.f32.mxu0 %v3838
      %3982 = vmatmul.mubr.f32.gmra.mxu0 %v3836
      %v3983 = vpop.f32.mrf.mxu0
      %v3984 = vadd.f32 %v3911, %v3983
      %v3985 = vpop.f32.mrf.mxu0
      %3986 = vdwg.mxu0
      %3987 = vmatprep.subr.mxu0 0.0
      %3988 = vmatpush1.msra.mxu0 %v3890
      %3989 = vmatprep.subr.mxu0 0.0
      %3990 = vmatpush1.msra.mxu0 %v3889
      %3991 = vmatprep.subr.mxu0 0.0
      %3992 = vmatpush1.msra.mxu0 %v3888
      %3993 = vmatprep.subr.mxu0 0.0
      %3994 = vmatpush1.msra.mxu0 %v3887
      %3995 = vmatprep.subr.mxu0 0.0
      %3996 = vmatpush1.msra.mxu0 %v3886
      %3997 = vmatprep.subr.mxu0 0.0
      %3998 = vmatpush1.msra.mxu0 %v3885
      %3999 = vmatprep.subr.mxu0 0.0
      %4000 = vmatpush1.msra.mxu0 %v3884
      %4001 = vmatprep.subr.mxu0 0.0
      %4002 = vmatpush1.msra.mxu0 %v3883
      %4003 = vmatprep.subr.mxu0 0.0
      %4004 = vmatpush1.msra.mxu0 %v3882
      %4005 = vmatprep.subr.mxu0 0.0
      %4006 = vmatpush1.msra.mxu0 %v3881
      %4007 = vmatprep.subr.mxu0 0.0
      %4008 = vmatpush1.msra.mxu0 %v3880
      %4009 = vmatprep.subr.mxu0 0.0
      %4010 = vmatpush1.msra.mxu0 %v3879
      %4011 = vmatprep.subr.mxu0 0.0
      %4012 = vmatpush1.msra.mxu0 %v3878
      %4013 = vmatprep.subr.mxu0 0.0
      %4014 = vmatpush1.msra.mxu0 %v3877
      %4015 = vmatprep.subr.mxu0 0.0
      %4016 = vmatpush1.msra.mxu0 %v3876
      %4017 = vmatprep.subr.mxu0 0.0
      %4018 = vmatpush1.msra.mxu0 %v3875
      %4019 = vmatprep.subr.mxu0 0.0
      %4020 = vmatpush2.msra.mxu0 %v3906
      %4021 = vmatprep.subr.mxu0 0.0
      %4022 = vmatpush2.msra.mxu0 %v3905
      %4023 = vmatprep.subr.mxu0 0.0
      %4024 = vmatpush2.msra.mxu0 %v3904
      %4025 = vmatprep.subr.mxu0 0.0
      %4026 = vmatpush2.msra.mxu0 %v3903
      %4027 = vmatprep.subr.mxu0 0.0
      %4028 = vmatpush2.msra.mxu0 %v3902
      %4029 = vmatprep.subr.mxu0 0.0
      %4030 = vmatpush2.msra.mxu0 %v3901
      %4031 = vmatprep.subr.mxu0 0.0
      %4032 = vmatpush2.msra.mxu0 %v3900
      %4033 = vmatprep.subr.mxu0 0.0
      %4034 = vmatpush2.msra.mxu0 %v3899
      %4035 = vmatprep.subr.mxu0 0.0
      %4036 = vmatpush2.msra.mxu0 %v3898
      %4037 = vmatprep.subr.mxu0 0.0
      %4038 = vmatpush2.msra.mxu0 %v3897
      %4039 = vmatprep.subr.mxu0 0.0
      %4040 = vmatpush2.msra.mxu0 %v3896
      %4041 = vmatprep.subr.mxu0 0.0
      %4042 = vmatpush2.msra.mxu0 %v3895
      %4043 = vmatprep.subr.mxu0 0.0
      %4044 = vmatpush2.msra.mxu0 %v3894
      %4045 = vmatprep.subr.mxu0 0.0
      %4046 = vmatpush2.msra.mxu0 %v3893
      %4047 = vmatprep.subr.mxu0 0.0
      %4048 = vmatpush2.msra.mxu0 %v3892
      %4049 = vmatprep.subr.mxu0 0.0
      %4050 = vmatpush2.msra.mxu0 %v3891
      %4051 = vmatprep.mubr.f32.mxu0 %v3841
      %4052 = vmatmul.mubr.f32.gmra.mxu0 %v3839
      %v4053 = vpop.f32.mrf.mxu0
      %v4054 = vadd.f32 %v3979, %v4053
      %v4055 = vpop.f32.mrf.mxu0
      %4056 = vmatprep.mubr.f32.mxu0 %v3842
      %4057 = vmatmul.mubr.f32.gmra.mxu0 %v3840
      %v4058 = vpop.f32.mrf.mxu0
      %v4059 = vadd.f32 %v3984, %v4058
      %v4060 = vpop.f32.mrf.mxu0
      %4061 = vdwg.mxu0
      %v4062 = vmax.f32 %v4054, 0.0
      %v4063 = vmax.f32 %v4059, 0.0
      %v4064 = vld [vmem:[%s4] sm:$0xff]
      %v4065 = vld [vmem:[%s4 + $0x8] sm:$0xff]
      %v4066 = vld [vmem:[%s4 + $0x10] sm:$0xff]
      %v4067 = vld [vmem:[%s4 + $0x18] sm:$0xff]
      %v4068 = vld [vmem:[%s4 + $0x20] sm:$0xff]
      %v4069 = vld [vmem:[%s4 + $0x28] sm:$0xff]
      %v4070 = vld [vmem:[%s4 + $0x30] sm:$0xff]
      %v4071 = vld [vmem:[%s4 + $0x38] sm:$0xff]
      %v4072 = vld [vmem:[%s4 + $0x40] sm:$0xff]
      %v4073 = vld [vmem:[%s4 + $0x48] sm:$0xff]
      %v4074 = vld [vmem:[%s4 + $0x50] sm:$0xff]
      %v4075 = vld [vmem:[%s4 + $0x58] sm:$0xff]
      %v4076 = vld [vmem:[%s4 + $0x60] sm:$0xff]
      %v4077 = vld [vmem:[%s4 + $0x68] sm:$0xff]
      %v4078 = vld [vmem:[%s4 + $0x70] sm:$0xff]
      %v4079 = vld [vmem:[%s4 + $0x78] sm:$0xff]
      %v4080 = vld [vmem:[%s5 + $0x3] sm:$0x1]
      %v4081 = vlaneseq
      %v4082 = vshrl.u32 %v4081, 7
      %v4083 = vsub.s32 0, %v4082
      %v4084 = vrot.slane %v4080, %v4083
      %4085 = vmatprep.subr.mxu0 0.0
      %4086 = vmatpush1.msra.mxu0 %v4079
      %4087 = vmatprep.subr.mxu0 0.0
      %4088 = vmatpush1.msra.mxu0 %v4078
      %4089 = vmatprep.subr.mxu0 0.0
      %4090 = vmatpush1.msra.mxu0 %v4077
      %4091 = vmatprep.subr.mxu0 0.0
      %4092 = vmatpush1.msra.mxu0 %v4076
      %4093 = vmatprep.subr.mxu0 0.0
      %4094 = vmatpush1.msra.mxu0 %v4075
      %4095 = vmatprep.subr.mxu0 0.0
      %4096 = vmatpush1.msra.mxu0 %v4074
      %4097 = vmatprep.subr.mxu0 0.0
      %4098 = vmatpush1.msra.mxu0 %v4073
      %4099 = vmatprep.subr.mxu0 0.0
      %4100 = vmatpush1.msra.mxu0 %v4072
      %4101 = vmatprep.subr.mxu0 0.0
      %4102 = vmatpush1.msra.mxu0 %v4071
      %4103 = vmatprep.subr.mxu0 0.0
      %4104 = vmatpush1.msra.mxu0 %v4070
      %4105 = vmatprep.subr.mxu0 0.0
      %4106 = vmatpush1.msra.mxu0 %v4069
      %4107 = vmatprep.subr.mxu0 0.0
      %4108 = vmatpush1.msra.mxu0 %v4068
      %4109 = vmatprep.subr.mxu0 0.0
      %4110 = vmatpush1.msra.mxu0 %v4067
      %4111 = vmatprep.subr.mxu0 0.0
      %4112 = vmatpush1.msra.mxu0 %v4066
      %4113 = vmatprep.subr.mxu0 0.0
      %4114 = vmatpush1.msra.mxu0 %v4065
      %4115 = vmatprep.subr.mxu0 0.0
      %4116 = vmatpush1.msra.mxu0 %v4064
      %4117 = vmatprep.subr.mxu0 0.0
      %4118 = vmatpush2.msra.mxu0 0.0
      %4119 = vmatprep.subr.mxu0 0.0
      %4120 = vmatpush2.msra.mxu0 0.0
      %4121 = vmatprep.subr.mxu0 0.0
      %4122 = vmatpush2.msra.mxu0 0.0
      %4123 = vmatprep.subr.mxu0 0.0
      %4124 = vmatpush2.msra.mxu0 0.0
      %4125 = vmatprep.subr.mxu0 0.0
      %4126 = vmatpush2.msra.mxu0 0.0
      %4127 = vmatprep.subr.mxu0 0.0
      %4128 = vmatpush2.msra.mxu0 0.0
      %4129 = vmatprep.subr.mxu0 0.0
      %4130 = vmatpush2.msra.mxu0 0.0
      %4131 = vmatprep.subr.mxu0 0.0
      %4132 = vmatpush2.msra.mxu0 0.0
      %4133 = vmatprep.subr.mxu0 0.0
      %4134 = vmatpush2.msra.mxu0 0.0
      %4135 = vmatprep.subr.mxu0 0.0
      %4136 = vmatpush2.msra.mxu0 0.0
      %4137 = vmatprep.subr.mxu0 0.0
      %4138 = vmatpush2.msra.mxu0 0.0
      %4139 = vmatprep.subr.mxu0 0.0
      %4140 = vmatpush2.msra.mxu0 0.0
      %4141 = vmatprep.subr.mxu0 0.0
      %4142 = vmatpush2.msra.mxu0 0.0
      %4143 = vmatprep.subr.mxu0 0.0
      %4144 = vmatpush2.msra.mxu0 0.0
      %4145 = vmatprep.subr.mxu0 0.0
      %4146 = vmatpush2.msra.mxu0 0.0
      %4147 = vmatprep.subr.mxu0 0.0
      %4148 = vmatpush2.msra.mxu0 0.0
      %4149 = vmatprep.mubr.f32.mxu0 0.0
      %4150 = vmatmul.mubr.f32.gmra.mxu0 %v4062
      %v4151 = vpop.f32.mrf.mxu0
      %v4152 = vadd.f32 %v4084, %v4151
      %v4153 = vpop.f32.mrf.mxu0
      %4154 = vmatprep.mubr.f32.mxu0 0.0
      %4155 = vmatmul.mubr.f32.gmra.mxu0 %v4063
      %v4156 = vpop.f32.mrf.mxu0
      %v4157 = vadd.f32 %v4084, %v4156
      %v4158 = vpop.f32.mrf.mxu0
      %4159 = vdwg.mxu0
      %4160 = vmax.xlane.f32.xlu0 %v4152
      %v4161 = vpop.xlane.xlu0 %4160
      %4162 = vmax.xlane.f32.xlu0 %v4157
      %v4163 = vpop.xlane.xlu0 %4162
      %v4164 = vsub.f32 %v4152, %v4161
      %v4165 = vsub.f32 %v4157, %v4163
      %v4166 = vmul.f32 %v4164, 1.442695
      %v4167 = vpow.pop %v4166
      %v4168 = vmul.f32 %v4165, 1.442695
      %v4169 = vpow.pop %v4168
      %4170 = vadd.xlane.f32.xlu0 %v4167
      %v4171 = vpop.xlane.xlu0 %4170
      %4172 = vadd.xlane.f32.xlu0 %v4169
      %v4173 = vpop.xlane.xlu0 %4172
      %v4174 = vlog2.pop %v4171
      %v4175 = vmul.f32 %v4174, 0.6931472
      %v4176 = vlog2.pop %v4173
      %v4177 = vmul.f32 %v4176, 0.6931472
      %v4178 = vadd.f32 %v4175, %v4161
      %v4179 = vadd.f32 %v4177, %v4163
      %v4180 = vsub.f32 %v4152, %v4178
      %v4181 = vsub.f32 %v4157, %v4179
      %4182 = vst [vmem:[%s253] sm:$0xff] %v4180
      %4183 = vst [vmem:[%s253 + $0x8] sm:$0xff] %v4181
      %s4184 = smul.u32 2, %s17
      %p4185 = scmp.lt.s32.totalorder %s4184, 3
      %s4186 = scalar_select %p4185, %s4184, 3
      %s4187 = smul.addr %s4186, 8
      %s4188 = scalar_lea.vmem %s6, %s4187
      // Predicated region
      $region45: #{torchplus_forward.1} parent=43 // pred_check
        %p4189 = pneg %p166
      $region46: #{torchplus_forward.1} parent=43 // pred_check_branch
        %4191 = sbr.rel (%p4189) target = $region48
      $region47: #{torchplus_forward.1} parent=43 // pred_region
        %s4192 = smul.u32 2, %s17
      $region48: #{torchplus_forward.1} parent=43 // pred_fallthru
        _
    $region44: #{torchplus_forward.1} parent=5 // pred_fallthru
      _
    %p4193 = scmp.le.s32.totalorder 2, %s12
    // Predicated region
    $region49: #{torchplus_forward.1} parent=5 // pred_check
      %p4194 = pneg %p4193
    $region50: #{torchplus_forward.1} parent=5 // pred_check_branch
      %4196 = sbr.rel (%p4194) target = $region52
    $region51: #{torchplus_forward.1} parent=5 // pred_region
      %s4197 = ssub.s32 %s12, 2
      // Predicated region
      $region53: #{torchplus_forward.1} parent=51 // pred_check
        %p4198 = pneg %p172
      $region54: #{torchplus_forward.1} parent=51 // pred_check_branch
        %4200 = sbr.rel (%p4198) target = $region56
      $region55: #{torchplus_forward.1} parent=51 // pred_region
        %s4201 = smul.u32 2, %s18
        %p4202 = scmp.lt.s32.totalorder %s4201, 3
        %s4203 = scalar_select %p4202, %s4201, 3
        %s4204 = smul.addr %s4203, 8
        %s4205 = scalar_lea.vmem %s6, %s4204
      $region56: #{torchplus_forward.1} parent=51 // pred_fallthru
        _
    $region52: #{torchplus_forward.1} parent=5 // pred_fallthru
      _
  $region6: #{torchplus_forward.1} parent=0 // loop_footer
    %s16 = sadd.s32 1, %s12
  $region7: #{torchplus_forward.1} parent=0 // loop_footer_branch
    %11 = sbr.rel target = $region3
  $region8: #{torchplus_forward.1} parent=0 // loop_exit
    _

</llo_original>
